<compile_context>
chip_gen: v7x
topology: tpu7x:2x2x1
jax: 0.10.0
libtpu: 0.0.40
codegen_flags: <defaults>
</compile_context>

<pallas_src>
import jax
import jax.numpy as jnp
from jax import lax
from jax.experimental import pallas as pl
from jax.experimental.pallas import tpu as pltpu

# ---- small synthetic config (consistent with DeepseekDecoderLayer __init__) ----
S = 16           # sequence length
H = 32           # config.hidden_size
NH = 4           # config.num_attention_heads
NKV = 2          # config.num_key_value_heads
HD = H // NH     # head_dim = 8
HD2 = HD // 2    # rotary half = 4
GROUP = NH // NKV
INTER = 64       # config.intermediate_size
EPS = 1e-6       # config.rms_norm_eps
ROPE_THETA = 10000.0

TQ = 8           # query-tile rows per grid step
SCALE = 1.0 / (HD ** 0.5)
NEG_INF = -1e30


def _rmsnorm(x_f32, w):
    var = jnp.mean(x_f32 * x_f32, axis=-1, keepdims=True)
    return x_f32 * lax.rsqrt(var + EPS) * w


def _expand_kv(t):
    # (NKV, s, d) -> (NH, s, d); query head h uses kv head h // GROUP.
    return jnp.broadcast_to(t[:, None], (NKV, GROUP) + t.shape[1:]).reshape(
        (NH,) + t.shape[1:])


def decoder_layer_kernel(xt_ref, xf_ref, cq_ref, sq_ref, ck_ref, sk_ref,
                         wln1_ref, wln2_ref,
                         wq_ref, wk_ref, wv_ref, wo_ref, wgu_ref, wd_ref,
                         out_ref):
    i = pl.program_id(0)

    xt = xt_ref[...].astype(jnp.float32)          # (TQ, H) this query tile
    xf = xf_ref[...].astype(jnp.float32)          # (S, H)  full sequence (resident)

    # ---- input RMSNorm ----
    w1 = wln1_ref[...]
    nxt = _rmsnorm(xt, w1).astype(jnp.bfloat16)   # (TQ, H)
    nxf = _rmsnorm(xf, w1).astype(jnp.bfloat16)   # (S, H)

    # ---- head-batched QKV projections (bf16 MXU, f32 accumulate) ----
    # Q / K are projected directly into their two rotary half-planes.
    qh = jnp.einsum('nsh,nhd->nsd',
                    jnp.broadcast_to(nxt[None], (2 * NH, TQ, H)), wq_ref[...],
                    preferred_element_type=jnp.float32)        # (2*NH, TQ, HD2)
    kh = jnp.einsum('nsh,nhd->nsd',
                    jnp.broadcast_to(nxf[None], (2 * NKV, S, H)), wk_ref[...],
                    preferred_element_type=jnp.float32)        # (2*NKV, S, HD2)
    v = jnp.einsum('nsh,nhd->nsd',
                   jnp.broadcast_to(nxf[None], (NKV, S, H)), wv_ref[...],
                   preferred_element_type=jnp.float32)         # (NKV, S, HD)

    # ---- neox RoPE in half-plane form (no rotate_half slicing / rolling) ----
    cq = cq_ref[...][None] * SCALE                # fold 1/sqrt(HD) into Q
    sq = sq_ref[...][None] * SCALE
    ck = ck_ref[...][None]
    sk = sk_ref[...][None]
    q_a, q_b = qh[:NH], qh[NH:]                   # leading-axis slices (free)
    k_a, k_b = kh[:NKV], kh[NKV:]
    q_ra = q_a * cq - q_b * sq
    q_rb = q_b * cq + q_a * sq
    k_ra = _expand_kv(k_a * ck - k_b * sk)        # rotate K once per KV head
    k_rb = _expand_kv(k_b * ck + k_a * sk)
    v_e = _expand_kv(v)                           # (NH, S, HD)

    # ---- heads-batched causal attention ----
    s = (jnp.einsum('nqd,nkd->nqk', q_ra, k_ra, preferred_element_type=jnp.float32)
         + jnp.einsum('nqd,nkd->nqk', q_rb, k_rb, preferred_element_type=jnp.float32))
    rowg = i * TQ + lax.broadcasted_iota(jnp.int32, (TQ, S), 0)
    colg = lax.broadcasted_iota(jnp.int32, (TQ, S), 1)
    s = jnp.where((colg <= rowg)[None], s, NEG_INF)
    m = jnp.max(s, axis=-1, keepdims=True)
    e = jnp.exp(s - m)
    p = e * pl.reciprocal(jnp.sum(e, axis=-1, keepdims=True), approx=True)
    o = jnp.einsum('nqk,nkd->nqd', p, v_e, preferred_element_type=jnp.float32)

    # ---- output projection: head-batched matmul + sum over heads (no concat) ----
    attn = jnp.einsum('nqd,ndh->nqh', o.astype(jnp.bfloat16), wo_ref[...],
                      preferred_element_type=jnp.float32).sum(axis=0)   # (TQ, H)

    h1 = xt + attn

    # ---- post_attention RMSNorm + fused gate/up MLP ----
    nh1 = _rmsnorm(h1, wln2_ref[...]).astype(jnp.bfloat16)
    gu = jnp.dot(nh1, wgu_ref[...], preferred_element_type=jnp.float32)  # (TQ, 2*INTER)
    g, u = gu[:, :INTER], gu[:, INTER:]
    act = g * jax.nn.sigmoid(g)                   # SiLU in f32
    mlp = jnp.dot((act * u).astype(jnp.bfloat16), wd_ref[...],
                  preferred_element_type=jnp.float32)

    out_ref[...] = (h1 + mlp).astype(out_ref.dtype)


def deepseek_decoder_layer(positions, hidden_states, params):
    # RoPE half-tables (positions -> cos/sin) — glue, not kernel work.
    inv_freq = 1.0 / (ROPE_THETA ** (jnp.arange(0, HD, 2, dtype=jnp.float32) / HD))
    freqs = positions.astype(jnp.float32)[:, None] * inv_freq[None, :]   # (S, HD2)
    cos = jnp.cos(freqs)
    sin = jnp.sin(freqs)

    # Weight re-layouts (parameter plumbing, done once outside the kernel):
    # split Q/K weights into rotary half-planes, head-major.
    def split_halves(w, nheads):                  # (H, nheads*HD) -> (2*nheads, H, HD2)
        w4 = w.reshape(H, nheads, 2, HD2)
        return jnp.transpose(w4, (2, 1, 0, 3)).reshape(2 * nheads, H, HD2)

    wq_h = split_halves(params["wq"], NH)
    wk_h = split_halves(params["wk"], NKV)
    wv_3 = jnp.transpose(params["wv"].reshape(H, NKV, HD), (1, 0, 2))    # (NKV, H, HD)
    wo_3 = params["wo"].reshape(NH, HD, H)                               # (NH, HD, H)
    wgu = jnp.concatenate([params["wg"], params["wu"]], axis=1)          # (H, 2*INTER)
    wd = params["wd"]
    wln1 = params["wln1"][None, :].astype(jnp.float32)
    wln2 = params["wln2"][None, :].astype(jnp.float32)

    args = (hidden_states, hidden_states, cos, sin, cos, sin,
            wln1, wln2, wq_h, wk_h, wv_3, wo_3, wgu, wd)

    def tiled(shape):
        return pl.BlockSpec(shape, lambda i, _n=len(shape): (i,) + (0,) * (_n - 1))

    def resident(a):
        return pl.BlockSpec(a.shape, lambda i, _n=a.ndim: (0,) * _n)

    in_specs = [
        tiled((TQ, H)),            # x tile   (residual / Q / MLP path)
        resident(hidden_states),   # full x   (K/V path, VMEM-resident)
        tiled((TQ, HD2)),          # cos for this Q tile
        tiled((TQ, HD2)),          # sin for this Q tile
        resident(cos),             # cos for all K positions
        resident(sin),
        resident(wln1), resident(wln2),
        resident(wq_h), resident(wk_h), resident(wv_3), resident(wo_3),
        resident(wgu), resident(wd),
    ]

    flops = (2 * S * H * (NH + 2 * NKV) * HD      # qkv projections
             + 4 * NH * S * S * HD                # QK^T + PV
             + 2 * S * NH * HD * H                # output projection
             + 6 * S * H * INTER)                 # gate/up + down
    weight_bytes = sum(int(a.size) * a.dtype.itemsize for a in args)
    cost = pl.CostEstimate(flops=int(flops),
                           transcendentals=int(NH * S * S + S * INTER),
                           bytes_accessed=int(weight_bytes + S * H * 4))

    return pl.pallas_call(
        decoder_layer_kernel,
        out_shape=jax.ShapeDtypeStruct(hidden_states.shape, hidden_states.dtype),
        grid=(S // TQ,),
        in_specs=in_specs,
        out_specs=tiled((TQ, H)),
        compiler_params=pltpu.CompilerParams(
            dimension_semantics=("parallel",)),
        cost_estimate=cost,
    )(*args)


# ---------------- pure-JAX reference (mirrors the PyTorch forward) ----------------
def _rotate_half(x):
    half = x.shape[-1] // 2
    return jnp.concatenate([-x[..., half:], x[..., :half]], axis=-1)


def _reference(positions, x, params):
    p32 = {k: v.astype(jnp.float32) for k, v in params.items()}
    inv_freq = 1.0 / (ROPE_THETA ** (jnp.arange(0, HD, 2, dtype=jnp.float32) / HD))
    freqs = positions.astype(jnp.float32)[:, None] * inv_freq[None, :]
    cos = jnp.concatenate([jnp.cos(freqs), jnp.cos(freqs)], axis=-1)
    sin = jnp.concatenate([jnp.sin(freqs), jnp.sin(freqs)], axis=-1)

    def rms(v, w):
        var = jnp.mean(v * v, axis=-1, keepdims=True)
        return v * lax.rsqrt(var + EPS) * w

    nx = rms(x, p32["wln1"])
    q, k, v = nx @ p32["wq"], nx @ p32["wk"], nx @ p32["wv"]
    causal = jnp.tril(jnp.ones((S, S), bool))
    outs = []
    for h in range(NH):
        kvh = h // GROUP
        qh = q[:, h * HD:(h + 1) * HD]
        kh = k[:, kvh * HD:(kvh + 1) * HD]
        vh = v[:, kvh * HD:(kvh + 1) * HD]
        qh = qh * cos + _rotate_half(qh) * sin
        kh = kh * cos + _rotate_half(kh) * sin
        sc = (qh @ kh.T) / (HD ** 0.5)
        sc = jnp.where(causal, sc, -jnp.inf)
        outs.append(jax.nn.softmax(sc, axis=-1) @ vh)
    h1 = x + jnp.concatenate(outs, -1) @ p32["wo"]
    nh1 = rms(h1, p32["wln2"])
    g, u = nh1 @ p32["wg"], nh1 @ p32["wu"]
    return h1 + (jax.nn.silu(g) * u) @ p32["wd"]


if __name__ == "__main__":
    key = jax.random.PRNGKey(0)
    keys = jax.random.split(key, 8)

    def init(k, shape, fan_in):
        return (jax.random.normal(k, shape, jnp.float32)
                / jnp.sqrt(fan_in)).astype(jnp.bfloat16)   # weights stored bf16

    params = {
        "wln1": jnp.ones((H,), jnp.float32),
        "wln2": jnp.ones((H,), jnp.float32),
        "wq": init(keys[0], (H, NH * HD), H),
        "wk": init(keys[1], (H, NKV * HD), H),
        "wv": init(keys[2], (H, NKV * HD), H),
        "wo": init(keys[3], (NH * HD, H), NH * HD),
        "wg": init(keys[4], (H, INTER), H),
        "wu": init(keys[5], (H, INTER), H),
        "wd": init(keys[6], (INTER, H), INTER),
    }

    positions = jnp.arange(S, dtype=jnp.int32)
    hidden_states = jax.random.normal(keys[7], (S, H), jnp.float32)

    out = deepseek_decoder_layer(positions, hidden_states, params)
    out = jax.block_until_ready(out)

    ref = _reference(positions, hidden_states, params)
    assert out.shape == (S, H) and out.dtype == jnp.float32
    max_err = float(jnp.max(jnp.abs(out - ref)))
    assert jnp.allclose(out, ref, rtol=3e-2, atol=3e-2), \
        f"mismatch vs reference (max abs err {max_err})"

    print("KERNEL_OK")
</pallas_src>

<mosaic_0001>
module attributes {stable_mosaic.version = 11 : i64} {
  func.func @decoder_layer_kernel(%arg0: i32, %arg1: memref<8x32xf32, #tpu.memory_space<vmem>>, %arg2: memref<16x32xf32, #tpu.memory_space<vmem>>, %arg3: memref<8x4xf32, #tpu.memory_space<vmem>>, %arg4: memref<8x4xf32, #tpu.memory_space<vmem>>, %arg5: memref<16x4xf32, #tpu.memory_space<vmem>>, %arg6: memref<16x4xf32, #tpu.memory_space<vmem>>, %arg7: memref<1x32xf32, #tpu.memory_space<vmem>>, %arg8: memref<1x32xf32, #tpu.memory_space<vmem>>, %arg9: memref<8x32x4xbf16, #tpu.memory_space<vmem>>, %arg10: memref<4x32x4xbf16, #tpu.memory_space<vmem>>, %arg11: memref<2x32x8xbf16, #tpu.memory_space<vmem>>, %arg12: memref<4x8x32xbf16, #tpu.memory_space<vmem>>, %arg13: memref<32x128xbf16, #tpu.memory_space<vmem>>, %arg14: memref<64x32xbf16, #tpu.memory_space<vmem>>, %arg15: memref<8x32xf32, #tpu.memory_space<vmem>>) attributes {dimension_semantics = [#tpu.dimension_semantics<parallel>], iteration_bounds = array<i64: 2>, scalar_prefetch = 0 : i64, scratch_operands = 0 : i64, tpu.core_type = #tpu.core_type<tc>, window_params = [{transform_indices = @transform_0, window_bounds = array<i64: 8, 32>}, {pipeline_mode = #tpu.pipeline_mode<synchronous>, transform_indices = @transform_1, window_bounds = array<i64: 16, 32>}, {transform_indices = @transform_2, window_bounds = array<i64: 8, 4>}, {transform_indices = @transform_3, window_bounds = array<i64: 8, 4>}, {pipeline_mode = #tpu.pipeline_mode<synchronous>, transform_indices = @transform_4, window_bounds = array<i64: 16, 4>}, {pipeline_mode = #tpu.pipeline_mode<synchronous>, transform_indices = @transform_5, window_bounds = array<i64: 16, 4>}, {pipeline_mode = #tpu.pipeline_mode<synchronous>, transform_indices = @transform_6, window_bounds = array<i64: 1, 32>}, {pipeline_mode = #tpu.pipeline_mode<synchronous>, transform_indices = @transform_7, window_bounds = array<i64: 1, 32>}, {pipeline_mode = #tpu.pipeline_mode<synchronous>, transform_indices = @transform_8, window_bounds = array<i64: 8, 32, 4>}, {pipeline_mode = #tpu.pipeline_mode<synchronous>, transform_indices = @transform_9, window_bounds = array<i64: 4, 32, 4>}, {pipeline_mode = #tpu.pipeline_mode<synchronous>, transform_indices = @transform_10, window_bounds = array<i64: 2, 32, 8>}, {pipeline_mode = #tpu.pipeline_mode<synchronous>, transform_indices = @transform_11, window_bounds = array<i64: 4, 8, 32>}, {pipeline_mode = #tpu.pipeline_mode<synchronous>, transform_indices = @transform_12, window_bounds = array<i64: 32, 128>}, {pipeline_mode = #tpu.pipeline_mode<synchronous>, transform_indices = @transform_13, window_bounds = array<i64: 64, 32>}, {transform_indices = @transform_14, window_bounds = array<i64: 8, 32>}]} {
    %c0 = arith.constant 0 : index
    %c0_0 = arith.constant 0 : index
    %0 = vector.load %arg1[%c0, %c0_0] : memref<8x32xf32, #tpu.memory_space<vmem>>, vector<8x32xf32>
    %c0_1 = arith.constant 0 : index
    %c0_2 = arith.constant 0 : index
    %1 = vector.load %arg2[%c0_1, %c0_2] : memref<16x32xf32, #tpu.memory_space<vmem>>, vector<16x32xf32>
    %c0_3 = arith.constant 0 : index
    %c0_4 = arith.constant 0 : index
    %2 = vector.load %arg7[%c0_3, %c0_4] : memref<1x32xf32, #tpu.memory_space<vmem>>, vector<1x32xf32>
    %3 = arith.mulf %0, %0 : vector<8x32xf32>
    %cst = arith.constant dense<0.000000e+00> : vector<8xf32>
    %4 = vector.multi_reduction <add>, %3, %cst [1] : vector<8x32xf32> to vector<8xf32>
    %5 = vector.shape_cast %4 : vector<8xf32> to vector<8x1xf32>
    %cst_5 = arith.constant 3.200000e+01 : f32
    %6 = vector.broadcast %cst_5 : f32 to vector<8x1xf32>
    %7 = arith.divf %5, %6 : vector<8x1xf32>
    %cst_6 = arith.constant 9.99999997E-7 : f32
    %8 = vector.broadcast %cst_6 : f32 to vector<8x1xf32>
    %9 = arith.addf %7, %8 : vector<8x1xf32>
    %10 = math.rsqrt %9 : vector<8x1xf32>
    %11 = vector.broadcast %10 : vector<8x1xf32> to vector<8x32xf32>
    %12 = arith.mulf %0, %11 : vector<8x32xf32>
    %13 = vector.broadcast %2 : vector<1x32xf32> to vector<8x32xf32>
    %14 = arith.mulf %12, %13 : vector<8x32xf32>
    %15 = arith.truncf %14 : vector<8x32xf32> to vector<8x32xbf16>
    %16 = arith.mulf %1, %1 : vector<16x32xf32>
    %cst_7 = arith.constant dense<0.000000e+00> : vector<16xf32>
    %17 = vector.multi_reduction <add>, %16, %cst_7 [1] : vector<16x32xf32> to vector<16xf32>
    %18 = vector.shape_cast %17 : vector<16xf32> to vector<16x1xf32>
    %cst_8 = arith.constant 3.200000e+01 : f32
    %19 = vector.broadcast %cst_8 : f32 to vector<16x1xf32>
    %20 = arith.divf %18, %19 : vector<16x1xf32>
    %cst_9 = arith.constant 9.99999997E-7 : f32
    %21 = vector.broadcast %cst_9 : f32 to vector<16x1xf32>
    %22 = arith.addf %20, %21 : vector<16x1xf32>
    %23 = math.rsqrt %22 : vector<16x1xf32>
    %24 = vector.broadcast %23 : vector<16x1xf32> to vector<16x32xf32>
    %25 = arith.mulf %1, %24 : vector<16x32xf32>
    %26 = vector.broadcast %2 : vector<1x32xf32> to vector<16x32xf32>
    %27 = arith.mulf %25, %26 : vector<16x32xf32>
    %28 = arith.truncf %27 : vector<16x32xf32> to vector<16x32xbf16>
    %29 = vector.shape_cast %15 : vector<8x32xbf16> to vector<1x8x32xbf16>
    %30 = vector.shape_cast %29 : vector<1x8x32xbf16> to vector<1x8x32xbf16>
    %31 = vector.broadcast %30 : vector<1x8x32xbf16> to vector<8x8x32xbf16>
    %c0_10 = arith.constant 0 : index
    %c0_11 = arith.constant 0 : index
    %c0_12 = arith.constant 0 : index
    %32 = vector.load %arg9[%c0_10, %c0_11, %c0_12] : memref<8x32x4xbf16, #tpu.memory_space<vmem>>, vector<8x32x4xbf16>
    "tpu.trace_start"() <{level = 10 : i32, message = "nsh,nhd->nsd"}> : () -> ()
    %cst_13 = arith.constant dense<0.000000e+00> : vector<8x8x4xf32>
    %33 = tpu.matmul %31, %32, %cst_13 {dimension_numbers = #tpu.dot_dimension_numbers<[2], [1], [1], [2], [0, 0, 0, 1, 1, 2], [0], [0]>} : vector<8x8x32xbf16>, vector<8x32x4xbf16>, vector<8x8x4xf32> -> vector<8x8x4xf32>
    "tpu.trace_stop"() : () -> ()
    %34 = vector.shape_cast %28 : vector<16x32xbf16> to vector<1x16x32xbf16>
    %35 = vector.shape_cast %34 : vector<1x16x32xbf16> to vector<1x16x32xbf16>
    %36 = vector.broadcast %35 : vector<1x16x32xbf16> to vector<4x16x32xbf16>
    %c0_14 = arith.constant 0 : index
    %c0_15 = arith.constant 0 : index
    %c0_16 = arith.constant 0 : index
    %37 = vector.load %arg10[%c0_14, %c0_15, %c0_16] : memref<4x32x4xbf16, #tpu.memory_space<vmem>>, vector<4x32x4xbf16>
    "tpu.trace_start"() <{level = 10 : i32, message = "nsh,nhd->nsd"}> : () -> ()
    %cst_17 = arith.constant dense<0.000000e+00> : vector<4x16x4xf32>
    %38 = tpu.matmul %36, %37, %cst_17 {dimension_numbers = #tpu.dot_dimension_numbers<[2], [1], [1], [2], [0, 0, 0, 1, 1, 2], [0], [0]>} : vector<4x16x32xbf16>, vector<4x32x4xbf16>, vector<4x16x4xf32> -> vector<4x16x4xf32>
    "tpu.trace_stop"() : () -> ()
    %39 = vector.shape_cast %28 : vector<16x32xbf16> to vector<1x16x32xbf16>
    %40 = vector.shape_cast %39 : vector<1x16x32xbf16> to vector<1x16x32xbf16>
    %41 = vector.broadcast %40 : vector<1x16x32xbf16> to vector<2x16x32xbf16>
    %c0_18 = arith.constant 0 : index
    %c0_19 = arith.constant 0 : index
    %c0_20 = arith.constant 0 : index
    %42 = vector.load %arg11[%c0_18, %c0_19, %c0_20] : memref<2x32x8xbf16, #tpu.memory_space<vmem>>, vector<2x32x8xbf16>
    "tpu.trace_start"() <{level = 10 : i32, message = "nsh,nhd->nsd"}> : () -> ()
    %cst_21 = arith.constant dense<0.000000e+00> : vector<2x16x8xf32>
    %43 = tpu.matmul %41, %42, %cst_21 {dimension_numbers = #tpu.dot_dimension_numbers<[2], [1], [1], [2], [0, 0, 0, 1, 1, 2], [0], [0]>} : vector<2x16x32xbf16>, vector<2x32x8xbf16>, vector<2x16x8xf32> -> vector<2x16x8xf32>
    "tpu.trace_stop"() : () -> ()
    %c0_22 = arith.constant 0 : index
    %c0_23 = arith.constant 0 : index
    %44 = vector.load %arg3[%c0_22, %c0_23] : memref<8x4xf32, #tpu.memory_space<vmem>>, vector<8x4xf32>
    %45 = vector.shape_cast %44 : vector<8x4xf32> to vector<1x8x4xf32>
    %cst_24 = arith.constant 0.353553385 : f32
    %46 = vector.broadcast %cst_24 : f32 to vector<1x8x4xf32>
    %47 = arith.mulf %45, %46 : vector<1x8x4xf32>
    %c0_25 = arith.constant 0 : index
    %c0_26 = arith.constant 0 : index
    %48 = vector.load %arg4[%c0_25, %c0_26] : memref<8x4xf32, #tpu.memory_space<vmem>>, vector<8x4xf32>
    %49 = vector.shape_cast %48 : vector<8x4xf32> to vector<1x8x4xf32>
    %cst_27 = arith.constant 0.353553385 : f32
    %50 = vector.broadcast %cst_27 : f32 to vector<1x8x4xf32>
    %51 = arith.mulf %49, %50 : vector<1x8x4xf32>
    %c0_28 = arith.constant 0 : index
    %c0_29 = arith.constant 0 : index
    %52 = vector.load %arg5[%c0_28, %c0_29] : memref<16x4xf32, #tpu.memory_space<vmem>>, vector<16x4xf32>
    %53 = vector.shape_cast %52 : vector<16x4xf32> to vector<1x16x4xf32>
    %c0_30 = arith.constant 0 : index
    %c0_31 = arith.constant 0 : index
    %54 = vector.load %arg6[%c0_30, %c0_31] : memref<16x4xf32, #tpu.memory_space<vmem>>, vector<16x4xf32>
    %55 = vector.shape_cast %54 : vector<16x4xf32> to vector<1x16x4xf32>
    %56 = vector.extract_strided_slice %33 {offsets = [0, 0, 0], sizes = [4, 8, 4], strides = [1, 1, 1]} : vector<8x8x4xf32> to vector<4x8x4xf32>
    %57 = vector.extract_strided_slice %33 {offsets = [4, 0, 0], sizes = [4, 8, 4], strides = [1, 1, 1]} : vector<8x8x4xf32> to vector<4x8x4xf32>
    %58 = vector.extract_strided_slice %38 {offsets = [0, 0, 0], sizes = [2, 16, 4], strides = [1, 1, 1]} : vector<4x16x4xf32> to vector<2x16x4xf32>
    %59 = vector.extract_strided_slice %38 {offsets = [2, 0, 0], sizes = [2, 16, 4], strides = [1, 1, 1]} : vector<4x16x4xf32> to vector<2x16x4xf32>
    %60 = vector.broadcast %47 : vector<1x8x4xf32> to vector<4x8x4xf32>
    %61 = arith.mulf %56, %60 : vector<4x8x4xf32>
    %62 = vector.broadcast %51 : vector<1x8x4xf32> to vector<4x8x4xf32>
    %63 = arith.mulf %57, %62 : vector<4x8x4xf32>
    %64 = arith.subf %61, %63 : vector<4x8x4xf32>
    %65 = vector.broadcast %47 : vector<1x8x4xf32> to vector<4x8x4xf32>
    %66 = arith.mulf %57, %65 : vector<4x8x4xf32>
    %67 = vector.broadcast %51 : vector<1x8x4xf32> to vector<4x8x4xf32>
    %68 = arith.mulf %56, %67 : vector<4x8x4xf32>
    %69 = arith.addf %66, %68 : vector<4x8x4xf32>
    %70 = vector.broadcast %53 : vector<1x16x4xf32> to vector<2x16x4xf32>
    %71 = arith.mulf %58, %70 : vector<2x16x4xf32>
    %72 = vector.broadcast %55 : vector<1x16x4xf32> to vector<2x16x4xf32>
    %73 = arith.mulf %59, %72 : vector<2x16x4xf32>
    %74 = arith.subf %71, %73 : vector<2x16x4xf32>
    %75 = vector.shape_cast %74 : vector<2x16x4xf32> to vector<2x1x16x4xf32>
    %76 = vector.shape_cast %75 : vector<2x1x16x4xf32> to vector<2x1x16x4xf32>
    %77 = vector.broadcast %76 : vector<2x1x16x4xf32> to vector<2x2x16x4xf32>
    %78 = vector.shape_cast %77 : vector<2x2x16x4xf32> to vector<4x16x4xf32>
    %79 = vector.broadcast %53 : vector<1x16x4xf32> to vector<2x16x4xf32>
    %80 = arith.mulf %59, %79 : vector<2x16x4xf32>
    %81 = vector.broadcast %55 : vector<1x16x4xf32> to vector<2x16x4xf32>
    %82 = arith.mulf %58, %81 : vector<2x16x4xf32>
    %83 = arith.addf %80, %82 : vector<2x16x4xf32>
    %84 = vector.shape_cast %83 : vector<2x16x4xf32> to vector<2x1x16x4xf32>
    %85 = vector.shape_cast %84 : vector<2x1x16x4xf32> to vector<2x1x16x4xf32>
    %86 = vector.broadcast %85 : vector<2x1x16x4xf32> to vector<2x2x16x4xf32>
    %87 = vector.shape_cast %86 : vector<2x2x16x4xf32> to vector<4x16x4xf32>
    %88 = vector.shape_cast %43 : vector<2x16x8xf32> to vector<2x1x16x8xf32>
    %89 = vector.shape_cast %88 : vector<2x1x16x8xf32> to vector<2x1x16x8xf32>
    %90 = vector.broadcast %89 : vector<2x1x16x8xf32> to vector<2x2x16x8xf32>
    %91 = vector.shape_cast %90 : vector<2x2x16x8xf32> to vector<4x16x8xf32>
    "tpu.trace_start"() <{level = 10 : i32, message = "nqd,nkd->nqk"}> : () -> ()
    %cst_32 = arith.constant dense<0.000000e+00> : vector<4x8x16xf32>
    %92 = tpu.matmul %64, %78, %cst_32 {dimension_numbers = #tpu.dot_dimension_numbers<[2], [2], [1], [1], [0, 0, 0, 1, 1, 1], [0], [0]>} : vector<4x8x4xf32>, vector<4x16x4xf32>, vector<4x8x16xf32> -> vector<4x8x16xf32>
    %cst_33 = arith.constant dense<0.000000e+00> : vector<4x8x16xf32>
    %93 = tpu.matmul %69, %87, %cst_33 {dimension_numbers = #tpu.dot_dimension_numbers<[2], [2], [1], [1], [0, 0, 0, 1, 1, 1], [0], [0]>} : vector<4x8x4xf32>, vector<4x16x4xf32>, vector<4x8x16xf32> -> vector<4x8x16xf32>
    "tpu.trace_stop"() : () -> ()
    %94 = arith.addf %92, %93 : vector<4x8x16xf32>
    %c8_i32 = arith.constant 8 : i32
    %95 = arith.muli %arg0, %c8_i32 : i32
    %96 = tpu.iota {dimensions = array<i32: 0>} : vector<8x16xi32>
    %97 = vector.broadcast %95 : i32 to vector<8x16xi32>
    %98 = arith.addi %97, %96 : vector<8x16xi32>
    %99 = tpu.iota {dimensions = array<i32: 1>} : vector<8x16xi32>
    %100 = arith.cmpi sle, %99, %98 : vector<8x16xi32>
    %101 = vector.shape_cast %100 : vector<8x16xi1> to vector<1x8x16xi1>
    %cst_34 = arith.constant -1.000000e+30 : f32
    %102 = vector.shape_cast %101 : vector<1x8x16xi1> to vector<1x8x16xi1>
    %103 = vector.broadcast %102 : vector<1x8x16xi1> to vector<4x8x16xi1>
    %104 = vector.broadcast %cst_34 : f32 to vector<4x8x16xf32>
    %105 = arith.select %103, %94, %104 : vector<4x8x16xi1>, vector<4x8x16xf32>
    %cst_35 = arith.constant dense<0xFF800000> : vector<4x8xf32>
    %106 = vector.multi_reduction <maximumf>, %105, %cst_35 [2] : vector<4x8x16xf32> to vector<4x8xf32>
    %107 = vector.shape_cast %106 : vector<4x8xf32> to vector<4x8x1xf32>
    %108 = vector.broadcast %107 : vector<4x8x1xf32> to vector<4x8x16xf32>
    %109 = arith.subf %105, %108 : vector<4x8x16xf32>
    %110 = math.exp %109 : vector<4x8x16xf32>
    %cst_36 = arith.constant dense<0.000000e+00> : vector<4x8xf32>
    %111 = vector.multi_reduction <add>, %110, %cst_36 [2] : vector<4x8x16xf32> to vector<4x8xf32>
    %112 = vector.shape_cast %111 : vector<4x8xf32> to vector<4x8x1xf32>
    %113 = tpu.reciprocal %112 {approx = true} : vector<4x8x1xf32> -> vector<4x8x1xf32>
    %114 = vector.broadcast %113 : vector<4x8x1xf32> to vector<4x8x16xf32>
    %115 = arith.mulf %110, %114 : vector<4x8x16xf32>
    "tpu.trace_start"() <{level = 10 : i32, message = "nqk,nkd->nqd"}> : () -> ()
    %cst_37 = arith.constant dense<0.000000e+00> : vector<4x8x8xf32>
    %116 = tpu.matmul %115, %91, %cst_37 {dimension_numbers = #tpu.dot_dimension_numbers<[2], [1], [1], [2], [0, 0, 0, 1, 1, 2], [0], [0]>} : vector<4x8x16xf32>, vector<4x16x8xf32>, vector<4x8x8xf32> -> vector<4x8x8xf32>
    "tpu.trace_stop"() : () -> ()
    %117 = arith.truncf %116 : vector<4x8x8xf32> to vector<4x8x8xbf16>
    %c0_38 = arith.constant 0 : index
    %c0_39 = arith.constant 0 : index
    %c0_40 = arith.constant 0 : index
    %118 = vector.load %arg12[%c0_38, %c0_39, %c0_40] : memref<4x8x32xbf16, #tpu.memory_space<vmem>>, vector<4x8x32xbf16>
    "tpu.trace_start"() <{level = 10 : i32, message = "nqd,ndh->nqh"}> : () -> ()
    %cst_41 = arith.constant dense<0.000000e+00> : vector<4x8x32xf32>
    %119 = tpu.matmul %117, %118, %cst_41 {dimension_numbers = #tpu.dot_dimension_numbers<[2], [1], [1], [2], [0, 0, 0, 1, 1, 2], [0], [0]>} : vector<4x8x8xbf16>, vector<4x8x32xbf16>, vector<4x8x32xf32> -> vector<4x8x32xf32>
    "tpu.trace_stop"() : () -> ()
    %cst_42 = arith.constant dense<0.000000e+00> : vector<8x32xf32>
    %120 = vector.multi_reduction <add>, %119, %cst_42 [0] : vector<4x8x32xf32> to vector<8x32xf32>
    %121 = arith.addf %0, %120 : vector<8x32xf32>
    %c0_43 = arith.constant 0 : index
    %c0_44 = arith.constant 0 : index
    %122 = vector.load %arg8[%c0_43, %c0_44] : memref<1x32xf32, #tpu.memory_space<vmem>>, vector<1x32xf32>
    %123 = arith.mulf %121, %121 : vector<8x32xf32>
    %cst_45 = arith.constant dense<0.000000e+00> : vector<8xf32>
    %124 = vector.multi_reduction <add>, %123, %cst_45 [1] : vector<8x32xf32> to vector<8xf32>
    %125 = vector.shape_cast %124 : vector<8xf32> to vector<8x1xf32>
    %cst_46 = arith.constant 3.200000e+01 : f32
    %126 = vector.broadcast %cst_46 : f32 to vector<8x1xf32>
    %127 = arith.divf %125, %126 : vector<8x1xf32>
    %cst_47 = arith.constant 9.99999997E-7 : f32
    %128 = vector.broadcast %cst_47 : f32 to vector<8x1xf32>
    %129 = arith.addf %127, %128 : vector<8x1xf32>
    %130 = math.rsqrt %129 : vector<8x1xf32>
    %131 = vector.broadcast %130 : vector<8x1xf32> to vector<8x32xf32>
    %132 = arith.mulf %121, %131 : vector<8x32xf32>
    %133 = vector.broadcast %122 : vector<1x32xf32> to vector<8x32xf32>
    %134 = arith.mulf %132, %133 : vector<8x32xf32>
    %135 = arith.truncf %134 : vector<8x32xf32> to vector<8x32xbf16>
    %c0_48 = arith.constant 0 : index
    %c0_49 = arith.constant 0 : index
    %136 = vector.load %arg13[%c0_48, %c0_49] : memref<32x128xbf16, #tpu.memory_space<vmem>>, vector<32x128xbf16>
    %cst_50 = arith.constant dense<0.000000e+00> : vector<8x128xf32>
    %137 = tpu.matmul %135, %136, %cst_50 {dimension_numbers = #tpu.dot_dimension_numbers<[1], [0], [0], [1], [0, 0, 1, 1], [], []>} : vector<8x32xbf16>, vector<32x128xbf16>, vector<8x128xf32> -> vector<8x128xf32>
    %138 = vector.extract_strided_slice %137 {offsets = [0, 0], sizes = [8, 64], strides = [1, 1]} : vector<8x128xf32> to vector<8x64xf32>
    %139 = vector.extract_strided_slice %137 {offsets = [0, 64], sizes = [8, 64], strides = [1, 1]} : vector<8x128xf32> to vector<8x64xf32>
    %140 = arith.negf %138 : vector<8x64xf32>
    %141 = math.exp %140 : vector<8x64xf32>
    %cst_51 = arith.constant 1.000000e+00 : f32
    %142 = vector.broadcast %cst_51 : f32 to vector<8x64xf32>
    %143 = arith.addf %142, %141 : vector<8x64xf32>
    %144 = arith.divf %142, %143 : vector<8x64xf32>
    %145 = arith.mulf %138, %144 : vector<8x64xf32>
    %146 = arith.mulf %145, %139 : vector<8x64xf32>
    %147 = arith.truncf %146 : vector<8x64xf32> to vector<8x64xbf16>
    %c0_52 = arith.constant 0 : index
    %c0_53 = arith.constant 0 : index
    %148 = vector.load %arg14[%c0_52, %c0_53] : memref<64x32xbf16, #tpu.memory_space<vmem>>, vector<64x32xbf16>
    %cst_54 = arith.constant dense<0.000000e+00> : vector<8x32xf32>
    %149 = tpu.matmul %147, %148, %cst_54 {dimension_numbers = #tpu.dot_dimension_numbers<[1], [0], [0], [1], [0, 0, 1, 1], [], []>} : vector<8x64xbf16>, vector<64x32xbf16>, vector<8x32xf32> -> vector<8x32xf32>
    %150 = arith.addf %121, %149 : vector<8x32xf32>
    %c0_55 = arith.constant 0 : index
    %c0_56 = arith.constant 0 : index
    %151 = vector.load %arg15[%c0_55, %c0_56] : memref<8x32xf32, #tpu.memory_space<vmem>>, vector<8x32xf32>
    tpu.vector_store %arg15[%c0_55, %c0_56], %150 {strides = array<i32>} : memref<8x32xf32, #tpu.memory_space<vmem>>, vector<8x32xf32>,
    return
  }
  func.func @transform_0(%arg0: i32) -> (i32, i32) {
    %c0_i32 = arith.constant 0 : i32
    %c0_i32_0 = arith.constant 0 : i32
    return %arg0, %c0_i32 : i32, i32
  }
  func.func @transform_1(%arg0: i32) -> (i32, i32) {
    %c0_i32 = arith.constant 0 : i32
    %c0_i32_0 = arith.constant 0 : i32
    %c0_i32_1 = arith.constant 0 : i32
    return %c0_i32, %c0_i32_0 : i32, i32
  }
  func.func @transform_2(%arg0: i32) -> (i32, i32) {
    %c0_i32 = arith.constant 0 : i32
    %c0_i32_0 = arith.constant 0 : i32
    return %arg0, %c0_i32 : i32, i32
  }
  func.func @transform_3(%arg0: i32) -> (i32, i32) {
    %c0_i32 = arith.constant 0 : i32
    %c0_i32_0 = arith.constant 0 : i32
    return %arg0, %c0_i32 : i32, i32
  }
  func.func @transform_4(%arg0: i32) -> (i32, i32) {
    %c0_i32 = arith.constant 0 : i32
    %c0_i32_0 = arith.constant 0 : i32
    %c0_i32_1 = arith.constant 0 : i32
    return %c0_i32, %c0_i32_0 : i32, i32
  }
  func.func @transform_5(%arg0: i32) -> (i32, i32) {
    %c0_i32 = arith.constant 0 : i32
    %c0_i32_0 = arith.constant 0 : i32
    %c0_i32_1 = arith.constant 0 : i32
    return %c0_i32, %c0_i32_0 : i32, i32
  }
  func.func @transform_6(%arg0: i32) -> (i32, i32) {
    %c0_i32 = arith.constant 0 : i32
    %c0_i32_0 = arith.constant 0 : i32
    %c0_i32_1 = arith.constant 0 : i32
    return %c0_i32, %c0_i32_0 : i32, i32
  }
  func.func @transform_7(%arg0: i32) -> (i32, i32) {
    %c0_i32 = arith.constant 0 : i32
    %c0_i32_0 = arith.constant 0 : i32
    %c0_i32_1 = arith.constant 0 : i32
    return %c0_i32, %c0_i32_0 : i32, i32
  }
  func.func @transform_8(%arg0: i32) -> (i32, i32, i32) {
    %c0_i32 = arith.constant 0 : i32
    %c0_i32_0 = arith.constant 0 : i32
    %c0_i32_1 = arith.constant 0 : i32
    %c0_i32_2 = arith.constant 0 : i32
    return %c0_i32, %c0_i32_0, %c0_i32_1 : i32, i32, i32
  }
  func.func @transform_9(%arg0: i32) -> (i32, i32, i32) {
    %c0_i32 = arith.constant 0 : i32
    %c0_i32_0 = arith.constant 0 : i32
    %c0_i32_1 = arith.constant 0 : i32
    %c0_i32_2 = arith.constant 0 : i32
    return %c0_i32, %c0_i32_0, %c0_i32_1 : i32, i32, i32
  }
  func.func @transform_10(%arg0: i32) -> (i32, i32, i32) {
    %c0_i32 = arith.constant 0 : i32
    %c0_i32_0 = arith.constant 0 : i32
    %c0_i32_1 = arith.constant 0 : i32
    %c0_i32_2 = arith.constant 0 : i32
    return %c0_i32, %c0_i32_0, %c0_i32_1 : i32, i32, i32
  }
  func.func @transform_11(%arg0: i32) -> (i32, i32, i32) {
    %c0_i32 = arith.constant 0 : i32
    %c0_i32_0 = arith.constant 0 : i32
    %c0_i32_1 = arith.constant 0 : i32
    %c0_i32_2 = arith.constant 0 : i32
    return %c0_i32, %c0_i32_0, %c0_i32_1 : i32, i32, i32
  }
  func.func @transform_12(%arg0: i32) -> (i32, i32) {
    %c0_i32 = arith.constant 0 : i32
    %c0_i32_0 = arith.constant 0 : i32
    %c0_i32_1 = arith.constant 0 : i32
    return %c0_i32, %c0_i32_0 : i32, i32
  }
  func.func @transform_13(%arg0: i32) -> (i32, i32) {
    %c0_i32 = arith.constant 0 : i32
    %c0_i32_0 = arith.constant 0 : i32
    %c0_i32_1 = arith.constant 0 : i32
    return %c0_i32, %c0_i32_0 : i32, i32
  }
  func.func @transform_14(%arg0: i32) -> (i32, i32) {
    %c0_i32 = arith.constant 0 : i32
    %c0_i32_0 = arith.constant 0 : i32
    return %arg0, %c0_i32 : i32, i32
  }
}

</mosaic_0001>

<llo_original>
// kernel: tpu_custom_call.1
$region0: #{tpu_custom_call.1}
  #allocation0 [shape = 'u32[]', space=smem, size = 0x4, offset = 0x4, fixed_abs, tag = 'smem constant byte address 0x4 - core index']
  #allocation1 [shape = 'u32[144,128]{1,0:T(1,128)}', space=vmem, size = 0x12000, scoped, tag = 'internal scratch']
  %s0 = inlined_call_operand.vmem [shape: f32[16,32], index: 0, kind: input, shape index: {}]
  %s1 = inlined_call_operand.vmem [shape: f32[16,32], index: 1, kind: input, shape index: {}]
  %s2 = inlined_call_operand.vmem [shape: f32[16,4], index: 2, kind: input, shape index: {}]
  %s3 = inlined_call_operand.vmem [shape: f32[16,4], index: 3, kind: input, shape index: {}]
  %s4 = inlined_call_operand.vmem [shape: f32[16,4], index: 4, kind: input, shape index: {}]
  %s5 = inlined_call_operand.vmem [shape: f32[16,4], index: 5, kind: input, shape index: {}]
  %s6 = inlined_call_operand.vmem [shape: f32[1,32], index: 6, kind: input, shape index: {}]
  %s7 = inlined_call_operand.vmem [shape: f32[1,32], index: 7, kind: input, shape index: {}]
  %s8 = inlined_call_operand.vmem [shape: bf16[8,32,4], index: 8, kind: input, shape index: {}]
  %s9 = inlined_call_operand.vmem [shape: bf16[4,32,4], index: 9, kind: input, shape index: {}]
  %s10 = inlined_call_operand.vmem [shape: bf16[2,32,8], index: 10, kind: input, shape index: {}]
  %s11 = inlined_call_operand.vmem [shape: bf16[4,8,32], index: 11, kind: input, shape index: {}]
  %s12 = inlined_call_operand.vmem [shape: bf16[32,128], index: 12, kind: input, shape index: {}]
  %s13 = inlined_call_operand.vmem [shape: bf16[64,32], index: 13, kind: input, shape index: {}]
  %s14 = inlined_call_operand.hbm [shape: f32[16,32], index: 14, kind: output, shape index: {}]
  %s15 = sld [smem:[#allocation0]]
  $region89: #{tpu_custom_call.1} parent=0
    _
  %s17 = ssub.s32 1, %s15
  %s18 = scalar_select 0, %s17, %s15
  $region1: #{tpu_custom_call.1} parent=0
    #allocation2 [shape = 'u8[8192]{0}', space=vmem, size = 0x2000, scoped, tag = 'output window, operand 0']
    #allocation3 [shape = 's32[2]{0}', space=sflag, size = 0x8, scoped, tag = 'scoped memory for tpu_custom_call.1']
    %19 = vsyncpa [#allocation3], 0
    %s20 = scalar_lea.sflag [#allocation3], 1
    %21 = vsyncpa %s20, 0
    loop: start=0, step=1, limit=4
    $region2: #{tpu_custom_call.1} parent=1 // loop_pre_header
      _
    $region3: #{tpu_custom_call.1} parent=1 // loop_header
      %s23 = sphi 0, %s27
      %p24 = scmp.ge.s32.totalorder %s23, 4
      %s33 = sphi 0, %s35
      %s36 = sphi 0, %s33
      %s37 = sphi 0, %s36
      %s53 = sphi 0, %s37
      %s57 = sphi 0, %s57
      %s59 = sphi 0, %s57
      %s60 = sphi 0, %s59
      %s74 = sphi 0, %s60
      %s80 = sphi 0, %s82
      %s83 = sphi 0, %s80
      %s84 = sphi 0, %s83
      %s100 = sphi 0, %s84
      %s106 = sphi 0, %s108
      %s109 = sphi 0, %s106
      %s110 = sphi 0, %s109
      %s126 = sphi 0, %s110
      %s130 = sphi 0, %s130
      %s132 = sphi 0, %s130
      %s133 = sphi 0, %s132
      %s147 = sphi 0, %s133
      %s151 = sphi 0, %s151
      %s153 = sphi 0, %s151
      %s154 = sphi 0, %s153
      %s168 = sphi 0, %s154
      %s172 = sphi 0, %s172
      %s174 = sphi 0, %s172
      %s175 = sphi 0, %s174
      %s189 = sphi 0, %s175
      %s193 = sphi 0, %s193
      %s195 = sphi 0, %s193
      %s196 = sphi 0, %s195
      %s210 = sphi 0, %s196
      %s214 = sphi 0, %s214
      %s216 = sphi 0, %s214
      %s217 = sphi 0, %s216
      %s231 = sphi 0, %s217
      %s235 = sphi 0, %s235
      %s237 = sphi 0, %s235
      %s238 = sphi 0, %s237
      %s252 = sphi 0, %s238
      %s256 = sphi 0, %s256
      %s258 = sphi 0, %s256
      %s259 = sphi 0, %s258
      %s273 = sphi 0, %s259
      %s277 = sphi 0, %s277
      %s279 = sphi 0, %s277
      %s280 = sphi 0, %s279
      %s294 = sphi 0, %s280
      %s298 = sphi 0, %s298
      %s300 = sphi 0, %s298
      %s301 = sphi 0, %s300
      %s315 = sphi 0, %s301
      %s319 = sphi 0, %s319
      %s321 = sphi 0, %s319
      %s322 = sphi 0, %s321
      %s336 = sphi 0, %s322
      %s342 = sphi 0, %s344
      %s345 = sphi 0, %s342
      %s346 = sphi 0, %s345
      %s362 = sphi 0, %s346
    $region4: #{tpu_custom_call.1} parent=1 // loop_header_branch
      %26 = sbr.rel (%p24) target = $region8
    $region5: #{tpu_custom_call.1} parent=1 // loop_body
      %s28 = ssub.s32 %s23, 1
      %s29 = ssub.s32 %s23, 2
      %s30 = sadd.s32 %s23, 1
      %s31 = ssub.s32 %s23, %s30
      %p32 = scmp.eq.s32.totalorder %s31, 0
      %s34 = sadd.s32 %s33, 1
      %s35 = scalar_select %p32, %s33, %s34
      %p38 = pneg %p32
      %p39 = scmp.eq.s32.totalorder %s23, 1
      %p40 = por %p38, %p39
      %p41 = scmp.ne.s32.totalorder %s33, %s36
      %p42 = scmp.eq.s32.totalorder %s23, 0
      %p43 = por %p41, %p42
      %p44 = scmp.ne.s32.totalorder %s33, %s36
      %p45 = scmp.eq.s32.totalorder %s28, 1
      %p46 = por %p44, %p45
      %p47 = scmp.ne.s32.totalorder %s36, %s37
      %p48 = scmp.eq.s32.totalorder %s28, 0
      %p49 = por %p47, %p48
      %p50 = scmp.ne.s32.totalorder %s36, %s37
      %p51 = scmp.eq.s32.totalorder %s29, 1
      %p52 = por %p50, %p51
      %p54 = scmp.ne.s32.totalorder %s37, %s53
      %p55 = scmp.eq.s32.totalorder %s29, 0
      %p56 = por %p54, %p55
      %s58 = sadd.s32 %s57, 1
      %p61 = scmp.eq.s32.totalorder %s23, 1
      %p62 = scmp.ne.s32.totalorder %s57, %s59
      %p63 = scmp.eq.s32.totalorder %s23, 0
      %p64 = por %p62, %p63
      %p65 = scmp.ne.s32.totalorder %s57, %s59
      %p66 = scmp.eq.s32.totalorder %s28, 1
      %p67 = por %p65, %p66
      %p68 = scmp.ne.s32.totalorder %s59, %s60
      %p69 = scmp.eq.s32.totalorder %s28, 0
      %p70 = por %p68, %p69
      %p71 = scmp.ne.s32.totalorder %s59, %s60
      %p72 = scmp.eq.s32.totalorder %s29, 1
      %p73 = por %p71, %p72
      %p75 = scmp.ne.s32.totalorder %s60, %s74
      %p76 = scmp.eq.s32.totalorder %s29, 0
      %p77 = por %p75, %p76
      %s78 = ssub.s32 %s23, %s30
      %p79 = scmp.eq.s32.totalorder %s78, 0
      %s81 = sadd.s32 %s80, 1
      %s82 = scalar_select %p79, %s80, %s81
      %p85 = pneg %p79
      %p86 = scmp.eq.s32.totalorder %s23, 1
      %p87 = por %p85, %p86
      %p88 = scmp.ne.s32.totalorder %s80, %s83
      %p89 = scmp.eq.s32.totalorder %s23, 0
      %p90 = por %p88, %p89
      %p91 = scmp.ne.s32.totalorder %s80, %s83
      %p92 = scmp.eq.s32.totalorder %s28, 1
      %p93 = por %p91, %p92
      %p94 = scmp.ne.s32.totalorder %s83, %s84
      %p95 = scmp.eq.s32.totalorder %s28, 0
      %p96 = por %p94, %p95
      %p97 = scmp.ne.s32.totalorder %s83, %s84
      %p98 = scmp.eq.s32.totalorder %s29, 1
      %p99 = por %p97, %p98
      %p101 = scmp.ne.s32.totalorder %s84, %s100
      %p102 = scmp.eq.s32.totalorder %s29, 0
      %p103 = por %p101, %p102
      %s104 = ssub.s32 %s23, %s30
      %p105 = scmp.eq.s32.totalorder %s104, 0
      %s107 = sadd.s32 %s106, 1
      %s108 = scalar_select %p105, %s106, %s107
      %p111 = pneg %p105
      %p112 = scmp.eq.s32.totalorder %s23, 1
      %p113 = por %p111, %p112
      %p114 = scmp.ne.s32.totalorder %s106, %s109
      %p115 = scmp.eq.s32.totalorder %s23, 0
      %p116 = por %p114, %p115
      %p117 = scmp.ne.s32.totalorder %s106, %s109
      %p118 = scmp.eq.s32.totalorder %s28, 1
      %p119 = por %p117, %p118
      %p120 = scmp.ne.s32.totalorder %s109, %s110
      %p121 = scmp.eq.s32.totalorder %s28, 0
      %p122 = por %p120, %p121
      %p123 = scmp.ne.s32.totalorder %s109, %s110
      %p124 = scmp.eq.s32.totalorder %s29, 1
      %p125 = por %p123, %p124
      %p127 = scmp.ne.s32.totalorder %s110, %s126
      %p128 = scmp.eq.s32.totalorder %s29, 0
      %p129 = por %p127, %p128
      %s131 = sadd.s32 %s130, 1
      %p134 = scmp.eq.s32.totalorder %s23, 1
      %p135 = scmp.ne.s32.totalorder %s130, %s132
      %p136 = scmp.eq.s32.totalorder %s23, 0
      %p137 = por %p135, %p136
      %p138 = scmp.ne.s32.totalorder %s130, %s132
      %p139 = scmp.eq.s32.totalorder %s28, 1
      %p140 = por %p138, %p139
      %p141 = scmp.ne.s32.totalorder %s132, %s133
      %p142 = scmp.eq.s32.totalorder %s28, 0
      %p143 = por %p141, %p142
      %p144 = scmp.ne.s32.totalorder %s132, %s133
      %p145 = scmp.eq.s32.totalorder %s29, 1
      %p146 = por %p144, %p145
      %p148 = scmp.ne.s32.totalorder %s133, %s147
      %p149 = scmp.eq.s32.totalorder %s29, 0
      %p150 = por %p148, %p149
      %s152 = sadd.s32 %s151, 1
      %p155 = scmp.eq.s32.totalorder %s23, 1
      %p156 = scmp.ne.s32.totalorder %s151, %s153
      %p157 = scmp.eq.s32.totalorder %s23, 0
      %p158 = por %p156, %p157
      %p159 = scmp.ne.s32.totalorder %s151, %s153
      %p160 = scmp.eq.s32.totalorder %s28, 1
      %p161 = por %p159, %p160
      %p162 = scmp.ne.s32.totalorder %s153, %s154
      %p163 = scmp.eq.s32.totalorder %s28, 0
      %p164 = por %p162, %p163
      %p165 = scmp.ne.s32.totalorder %s153, %s154
      %p166 = scmp.eq.s32.totalorder %s29, 1
      %p167 = por %p165, %p166
      %p169 = scmp.ne.s32.totalorder %s154, %s168
      %p170 = scmp.eq.s32.totalorder %s29, 0
      %p171 = por %p169, %p170
      %s173 = sadd.s32 %s172, 1
      %p176 = scmp.eq.s32.totalorder %s23, 1
      %p177 = scmp.ne.s32.totalorder %s172, %s174
      %p178 = scmp.eq.s32.totalorder %s23, 0
      %p179 = por %p177, %p178
      %p180 = scmp.ne.s32.totalorder %s172, %s174
      %p181 = scmp.eq.s32.totalorder %s28, 1
      %p182 = por %p180, %p181
      %p183 = scmp.ne.s32.totalorder %s174, %s175
      %p184 = scmp.eq.s32.totalorder %s28, 0
      %p185 = por %p183, %p184
      %p186 = scmp.ne.s32.totalorder %s174, %s175
      %p187 = scmp.eq.s32.totalorder %s29, 1
      %p188 = por %p186, %p187
      %p190 = scmp.ne.s32.totalorder %s175, %s189
      %p191 = scmp.eq.s32.totalorder %s29, 0
      %p192 = por %p190, %p191
      %s194 = sadd.s32 %s193, 1
      %p197 = scmp.eq.s32.totalorder %s23, 1
      %p198 = scmp.ne.s32.totalorder %s193, %s195
      %p199 = scmp.eq.s32.totalorder %s23, 0
      %p200 = por %p198, %p199
      %p201 = scmp.ne.s32.totalorder %s193, %s195
      %p202 = scmp.eq.s32.totalorder %s28, 1
      %p203 = por %p201, %p202
      %p204 = scmp.ne.s32.totalorder %s195, %s196
      %p205 = scmp.eq.s32.totalorder %s28, 0
      %p206 = por %p204, %p205
      %p207 = scmp.ne.s32.totalorder %s195, %s196
      %p208 = scmp.eq.s32.totalorder %s29, 1
      %p209 = por %p207, %p208
      %p211 = scmp.ne.s32.totalorder %s196, %s210
      %p212 = scmp.eq.s32.totalorder %s29, 0
      %p213 = por %p211, %p212
      %s215 = sadd.s32 %s214, 1
      %p218 = scmp.eq.s32.totalorder %s23, 1
      %p219 = scmp.ne.s32.totalorder %s214, %s216
      %p220 = scmp.eq.s32.totalorder %s23, 0
      %p221 = por %p219, %p220
      %p222 = scmp.ne.s32.totalorder %s214, %s216
      %p223 = scmp.eq.s32.totalorder %s28, 1
      %p224 = por %p222, %p223
      %p225 = scmp.ne.s32.totalorder %s216, %s217
      %p226 = scmp.eq.s32.totalorder %s28, 0
      %p227 = por %p225, %p226
      %p228 = scmp.ne.s32.totalorder %s216, %s217
      %p229 = scmp.eq.s32.totalorder %s29, 1
      %p230 = por %p228, %p229
      %p232 = scmp.ne.s32.totalorder %s217, %s231
      %p233 = scmp.eq.s32.totalorder %s29, 0
      %p234 = por %p232, %p233
      %s236 = sadd.s32 %s235, 1
      %p239 = scmp.eq.s32.totalorder %s23, 1
      %p240 = scmp.ne.s32.totalorder %s235, %s237
      %p241 = scmp.eq.s32.totalorder %s23, 0
      %p242 = por %p240, %p241
      %p243 = scmp.ne.s32.totalorder %s235, %s237
      %p244 = scmp.eq.s32.totalorder %s28, 1
      %p245 = por %p243, %p244
      %p246 = scmp.ne.s32.totalorder %s237, %s238
      %p247 = scmp.eq.s32.totalorder %s28, 0
      %p248 = por %p246, %p247
      %p249 = scmp.ne.s32.totalorder %s237, %s238
      %p250 = scmp.eq.s32.totalorder %s29, 1
      %p251 = por %p249, %p250
      %p253 = scmp.ne.s32.totalorder %s238, %s252
      %p254 = scmp.eq.s32.totalorder %s29, 0
      %p255 = por %p253, %p254
      %s257 = sadd.s32 %s256, 1
      %p260 = scmp.eq.s32.totalorder %s23, 1
      %p261 = scmp.ne.s32.totalorder %s256, %s258
      %p262 = scmp.eq.s32.totalorder %s23, 0
      %p263 = por %p261, %p262
      %p264 = scmp.ne.s32.totalorder %s256, %s258
      %p265 = scmp.eq.s32.totalorder %s28, 1
      %p266 = por %p264, %p265
      %p267 = scmp.ne.s32.totalorder %s258, %s259
      %p268 = scmp.eq.s32.totalorder %s28, 0
      %p269 = por %p267, %p268
      %p270 = scmp.ne.s32.totalorder %s258, %s259
      %p271 = scmp.eq.s32.totalorder %s29, 1
      %p272 = por %p270, %p271
      %p274 = scmp.ne.s32.totalorder %s259, %s273
      %p275 = scmp.eq.s32.totalorder %s29, 0
      %p276 = por %p274, %p275
      %s278 = sadd.s32 %s277, 1
      %p281 = scmp.eq.s32.totalorder %s23, 1
      %p282 = scmp.ne.s32.totalorder %s277, %s279
      %p283 = scmp.eq.s32.totalorder %s23, 0
      %p284 = por %p282, %p283
      %p285 = scmp.ne.s32.totalorder %s277, %s279
      %p286 = scmp.eq.s32.totalorder %s28, 1
      %p287 = por %p285, %p286
      %p288 = scmp.ne.s32.totalorder %s279, %s280
      %p289 = scmp.eq.s32.totalorder %s28, 0
      %p290 = por %p288, %p289
      %p291 = scmp.ne.s32.totalorder %s279, %s280
      %p292 = scmp.eq.s32.totalorder %s29, 1
      %p293 = por %p291, %p292
      %p295 = scmp.ne.s32.totalorder %s280, %s294
      %p296 = scmp.eq.s32.totalorder %s29, 0
      %p297 = por %p295, %p296
      %s299 = sadd.s32 %s298, 1
      %p302 = scmp.eq.s32.totalorder %s23, 1
      %p303 = scmp.ne.s32.totalorder %s298, %s300
      %p304 = scmp.eq.s32.totalorder %s23, 0
      %p305 = por %p303, %p304
      %p306 = scmp.ne.s32.totalorder %s298, %s300
      %p307 = scmp.eq.s32.totalorder %s28, 1
      %p308 = por %p306, %p307
      %p309 = scmp.ne.s32.totalorder %s300, %s301
      %p310 = scmp.eq.s32.totalorder %s28, 0
      %p311 = por %p309, %p310
      %p312 = scmp.ne.s32.totalorder %s300, %s301
      %p313 = scmp.eq.s32.totalorder %s29, 1
      %p314 = por %p312, %p313
      %p316 = scmp.ne.s32.totalorder %s301, %s315
      %p317 = scmp.eq.s32.totalorder %s29, 0
      %p318 = por %p316, %p317
      %s320 = sadd.s32 %s319, 1
      %p323 = scmp.eq.s32.totalorder %s23, 1
      %p324 = scmp.ne.s32.totalorder %s319, %s321
      %p325 = scmp.eq.s32.totalorder %s23, 0
      %p326 = por %p324, %p325
      %p327 = scmp.ne.s32.totalorder %s319, %s321
      %p328 = scmp.eq.s32.totalorder %s28, 1
      %p329 = por %p327, %p328
      %p330 = scmp.ne.s32.totalorder %s321, %s322
      %p331 = scmp.eq.s32.totalorder %s28, 0
      %p332 = por %p330, %p331
      %p333 = scmp.ne.s32.totalorder %s321, %s322
      %p334 = scmp.eq.s32.totalorder %s29, 1
      %p335 = por %p333, %p334
      %p337 = scmp.ne.s32.totalorder %s322, %s336
      %p338 = scmp.eq.s32.totalorder %s29, 0
      %p339 = por %p337, %p338
      %s340 = ssub.s32 %s23, %s30
      %p341 = scmp.eq.s32.totalorder %s340, 0
      %s343 = sadd.s32 %s342, 1
      %s344 = scalar_select %p341, %s342, %s343
      %p347 = pneg %p341
      %p348 = scmp.eq.s32.totalorder %s23, 1
      %p349 = por %p347, %p348
      %p350 = scmp.ne.s32.totalorder %s342, %s345
      %p351 = scmp.eq.s32.totalorder %s23, 0
      %p352 = por %p350, %p351
      %p353 = scmp.ne.s32.totalorder %s342, %s345
      %p354 = scmp.eq.s32.totalorder %s28, 1
      %p355 = por %p353, %p354
      %p356 = scmp.ne.s32.totalorder %s345, %s346
      %p357 = scmp.eq.s32.totalorder %s28, 0
      %p358 = por %p356, %p357
      %p359 = scmp.ne.s32.totalorder %s345, %s346
      %p360 = scmp.eq.s32.totalorder %s29, 1
      %p361 = por %p359, %p360
      %p363 = scmp.ne.s32.totalorder %s346, %s362
      %p364 = scmp.eq.s32.totalorder %s29, 0
      %p365 = por %p363, %p364
      %p366 = scmp.le.s32.totalorder 1, %s23
      %p367 = scmp.lt.s32.totalorder %s23, 3
      %p368 = pnand %p366, %p367
      %p369 = pneg %p368
      // Predicated region
      $region9: #{tpu_custom_call.1} parent=5 // pred_check
        _
      $region10: #{tpu_custom_call.1} parent=5 // pred_check_branch
        %371 = sbr.rel (%p368) target = $region12
      $region11: #{tpu_custom_call.1} parent=5 // pred_region
        %s372 = ssub.s32 %s23, 1
        // Predicated region
        $region13: #{tpu_custom_call.1} parent=11 // pred_check
          %p373 = pneg %p70
        $region14: #{tpu_custom_call.1} parent=11 // pred_check_branch
          %375 = sbr.rel (%p373) target = $region16
        $region15: #{tpu_custom_call.1} parent=11 // pred_region
          _
        $region16: #{tpu_custom_call.1} parent=11 // pred_fallthru
          _
        // Predicated region
        $region17: #{tpu_custom_call.1} parent=11 // pred_check
          %p376 = pneg %p143
        $region18: #{tpu_custom_call.1} parent=11 // pred_check_branch
          %378 = sbr.rel (%p376) target = $region20
        $region19: #{tpu_custom_call.1} parent=11 // pred_region
          _
        $region20: #{tpu_custom_call.1} parent=11 // pred_fallthru
          _
        // Predicated region
        $region21: #{tpu_custom_call.1} parent=11 // pred_check
          %p379 = pneg %p164
        $region22: #{tpu_custom_call.1} parent=11 // pred_check_branch
          %381 = sbr.rel (%p379) target = $region24
        $region23: #{tpu_custom_call.1} parent=11 // pred_region
          _
        $region24: #{tpu_custom_call.1} parent=11 // pred_fallthru
          _
        // Predicated region
        $region25: #{tpu_custom_call.1} parent=11 // pred_check
          %p382 = pneg %p185
        $region26: #{tpu_custom_call.1} parent=11 // pred_check_branch
          %384 = sbr.rel (%p382) target = $region28
        $region27: #{tpu_custom_call.1} parent=11 // pred_region
          _
        $region28: #{tpu_custom_call.1} parent=11 // pred_fallthru
          _
        // Predicated region
        $region29: #{tpu_custom_call.1} parent=11 // pred_check
          %p385 = pneg %p206
        $region30: #{tpu_custom_call.1} parent=11 // pred_check_branch
          %387 = sbr.rel (%p385) target = $region32
        $region31: #{tpu_custom_call.1} parent=11 // pred_region
          _
        $region32: #{tpu_custom_call.1} parent=11 // pred_fallthru
          _
        // Predicated region
        $region33: #{tpu_custom_call.1} parent=11 // pred_check
          %p388 = pneg %p227
        $region34: #{tpu_custom_call.1} parent=11 // pred_check_branch
          %390 = sbr.rel (%p388) target = $region36
        $region35: #{tpu_custom_call.1} parent=11 // pred_region
          _
        $region36: #{tpu_custom_call.1} parent=11 // pred_fallthru
          _
        // Predicated region
        $region37: #{tpu_custom_call.1} parent=11 // pred_check
          %p391 = pneg %p248
        $region38: #{tpu_custom_call.1} parent=11 // pred_check_branch
          %393 = sbr.rel (%p391) target = $region40
        $region39: #{tpu_custom_call.1} parent=11 // pred_region
          _
        $region40: #{tpu_custom_call.1} parent=11 // pred_fallthru
          _
        // Predicated region
        $region41: #{tpu_custom_call.1} parent=11 // pred_check
          %p394 = pneg %p269
        $region42: #{tpu_custom_call.1} parent=11 // pred_check_branch
          %396 = sbr.rel (%p394) target = $region44
        $region43: #{tpu_custom_call.1} parent=11 // pred_region
          _
        $region44: #{tpu_custom_call.1} parent=11 // pred_fallthru
          _
        // Predicated region
        $region45: #{tpu_custom_call.1} parent=11 // pred_check
          %p397 = pneg %p290
        $region46: #{tpu_custom_call.1} parent=11 // pred_check_branch
          %399 = sbr.rel (%p397) target = $region48
        $region47: #{tpu_custom_call.1} parent=11 // pred_region
          _
        $region48: #{tpu_custom_call.1} parent=11 // pred_fallthru
          _
        // Predicated region
        $region49: #{tpu_custom_call.1} parent=11 // pred_check
          %p400 = pneg %p311
        $region50: #{tpu_custom_call.1} parent=11 // pred_check_branch
          %402 = sbr.rel (%p400) target = $region52
        $region51: #{tpu_custom_call.1} parent=11 // pred_region
          _
        $region52: #{tpu_custom_call.1} parent=11 // pred_fallthru
          _
        // Predicated region
        $region53: #{tpu_custom_call.1} parent=11 // pred_check
          %p403 = pneg %p332
        $region54: #{tpu_custom_call.1} parent=11 // pred_check_branch
          %405 = sbr.rel (%p403) target = $region56
        $region55: #{tpu_custom_call.1} parent=11 // pred_region
          _
        $region56: #{tpu_custom_call.1} parent=11 // pred_fallthru
          _
      $region12: #{tpu_custom_call.1} parent=5 // pred_fallthru
        _
      %p406 = scmp.lt.s32.totalorder %s23, 2
      // Predicated region
      $region57: #{tpu_custom_call.1} parent=5 // pred_check
        %p407 = pneg %p406
      $region58: #{tpu_custom_call.1} parent=5 // pred_check_branch
        %409 = sbr.rel (%p407) target = $region60
      $region59: #{tpu_custom_call.1} parent=5 // pred_region
        // Predicated region
        $region61: #{tpu_custom_call.1} parent=59 // pred_check
          %p410 = pneg %p43
        $region62: #{tpu_custom_call.1} parent=59 // pred_check_branch
          %412 = sbr.rel (%p410) target = $region64
        $region63: #{tpu_custom_call.1} parent=59 // pred_region
          %p413 = scmp.lt.s32.totalorder %s23, 1
          %s414 = scalar_select %p413, %s23, 1
          %s415 = smul.addr %s414, 8
          %s416 = scalar_lea.vmem %s0, %s415
        $region64: #{tpu_custom_call.1} parent=59 // pred_fallthru
          _
        // Predicated region
        $region65: #{tpu_custom_call.1} parent=59 // pred_check
          %p417 = pneg %p90
        $region66: #{tpu_custom_call.1} parent=59 // pred_check_branch
          %419 = sbr.rel (%p417) target = $region68
        $region67: #{tpu_custom_call.1} parent=59 // pred_region
          %p420 = scmp.lt.s32.totalorder %s23, 1
          %s421 = scalar_select %p420, %s23, 1
          %s422 = smul.addr %s421, 8
          %s423 = scalar_lea.vmem %s2, %s422
        $region68: #{tpu_custom_call.1} parent=59 // pred_fallthru
          _
        // Predicated region
        $region69: #{tpu_custom_call.1} parent=59 // pred_check
          %p424 = pneg %p116
        $region70: #{tpu_custom_call.1} parent=59 // pred_check_branch
          %426 = sbr.rel (%p424) target = $region72
        $region71: #{tpu_custom_call.1} parent=59 // pred_region
          %p427 = scmp.lt.s32.totalorder %s23, 1
          %s428 = scalar_select %p427, %s23, 1
          %s429 = smul.addr %s428, 8
          %s430 = scalar_lea.vmem %s3, %s429
        $region72: #{tpu_custom_call.1} parent=59 // pred_fallthru
          _
      $region60: #{tpu_custom_call.1} parent=5 // pred_fallthru
        _
      %p431 = scmp.le.s32.totalorder 1, %s23
      %p432 = scmp.lt.s32.totalorder %s23, 3
      %p433 = pnand %p431, %p432
      %p434 = pneg %p433
      // Predicated region
      $region73: #{tpu_custom_call.1} parent=5 // pred_check
        _
      $region74: #{tpu_custom_call.1} parent=5 // pred_check_branch
        %436 = sbr.rel (%p433) target = $region76
      $region75: #{tpu_custom_call.1} parent=5 // pred_region
        %s437 = ssub.s32 %s23, 1
        %p438 = scmp.lt.s32.totalorder %s28, 1
        %s439 = scalar_select %p438, %s28, 1
        %s440 = smul.addr %s439, 8
        %s441 = scalar_lea.vmem %s0, %s440
        %p442 = pneg %p49
        %p443 = pneg %p46
        %p444 = pneg %p70
        %p445 = pneg %p67
        %p446 = scmp.lt.s32.totalorder %s28, 1
        %s447 = scalar_select %p446, %s28, 1
        %s448 = smul.addr %s447, 8
        %s449 = scalar_lea.vmem %s2, %s448
        %p450 = pneg %p96
        %p451 = pneg %p93
        %p452 = scmp.lt.s32.totalorder %s28, 1
        %s453 = scalar_select %p452, %s28, 1
        %s454 = smul.addr %s453, 8
        %s455 = scalar_lea.vmem %s3, %s454
        %p456 = pneg %p122
        %p457 = pneg %p119
        %p458 = pneg %p143
        %p459 = pneg %p140
        %p460 = pneg %p164
        %p461 = pneg %p161
        %p462 = pneg %p185
        %p463 = pneg %p182
        %p464 = pneg %p206
        %p465 = pneg %p203
        %p466 = pneg %p227
        %p467 = pneg %p224
        %p468 = pneg %p248
        %p469 = pneg %p245
        %p470 = pneg %p269
        %p471 = pneg %p266
        %p472 = pneg %p290
        %p473 = pneg %p287
        %p474 = pneg %p311
        %p475 = pneg %p308
        %p476 = pneg %p332
        %p477 = pneg %p329
        %p478 = pneg %p358
        %p479 = pneg %p355
        %s480 = sand.u32 %s345, 1
        %s481 = scalar_lea.sflag [#allocation3], %s480
        %s482 = sand.u32 %s345, 1
        %s483 = smul.addr %s482, 8
        %s484 = scalar_lea.vmem [#allocation2], %s483
        %p485 = scmp.lt.s32.totalorder %s28, 1
        %s486 = scalar_select %p485, %s28, 1
        %s487 = smul.addr %s486, 8
        %s488 = scalar_lea.vmem %s0, %s487
        %p489 = scmp.lt.s32.totalorder %s28, 1
        %s490 = scalar_select %p489, %s28, 1
        %s491 = smul.addr %s490, 8
        %s492 = scalar_lea.vmem %s2, %s491
        %p493 = scmp.lt.s32.totalorder %s28, 1
        %s494 = scalar_select %p493, %s28, 1
        %s495 = smul.addr %s494, 8
        %s496 = scalar_lea.vmem %s3, %s495
        %v498 = vld [vmem:[%s488] sm:$0xff]
        %v499 = vld [vmem:[%s1] sm:$0xff]
        %v500 = vld [vmem:[%s1 + $0x8] sm:$0xff]
        %v501 = vld [vmem:[%s6] sm:$0x1]
        %v502 = vmul.f32 %v498, %v498
        %vm503 = vcmask 261120
        %v504 = vsel %vm503, %v502, 0.0
        %505 = vadd.xlane.f32.xlu0 %v504
        %v506 = vpop.xlane.xlu0 %505
        %v507 = vrcp.pop 32.0
        %v508 = vmul.f32 %v506, %v507
        %v509 = vadd.f32 %v508, 1e-06
        %v510 = vrsqrt.pop %v509
        %v511 = vmul.f32 %v498, %v510
        %v513 = vlaneseq
        %v514 = vshrl.u32 %v513, 7
        %v515 = vsub.s32 0, %v514
        %v516 = vrot.slane %v501, %v515
        %v518 = vmul.f32 %v511, %v516
        %v519 = vpack.c.bf16 %v518, %v518
        %v520 = vmul.f32 %v499, %v499
        %v521 = vmul.f32 %v500, %v500
        %v522 = vsel %vm503, %v520, 0.0
        %523 = vadd.xlane.f32.xlu0 %v522
        %v524 = vpop.xlane.xlu0 %523
        %v525 = vsel %vm503, %v521, 0.0
        %526 = vadd.xlane.f32.xlu0 %v525
        %v527 = vpop.xlane.xlu0 %526
        %v528 = vmul.f32 %v524, %v507
        %v529 = vmul.f32 %v527, %v507
        %v530 = vadd.f32 %v528, 1e-06
        %v531 = vadd.f32 %v529, 1e-06
        %v532 = vrsqrt.pop %v530
        %v533 = vrsqrt.pop %v531
        %v534 = vmul.f32 %v499, %v532
        %v535 = vmul.f32 %v500, %v533
        %v536 = vmul.f32 %v534, %v516
        %v537 = vmul.f32 %v535, %v516
        %v538 = vpack.c.bf16 %v537, %v536
        %v539 = vld [vmem:[%s8] sm:$0xf]
        %v540 = vld [vmem:[%s8 + $0x4] sm:$0xf]
        %v541 = vld [vmem:[%s8 + $0x8] sm:$0xf]
        %v542 = vld [vmem:[%s8 + $0xc] sm:$0xf]
        %v543 = vld [vmem:[%s8 + $0x10] sm:$0xf]
        %v544 = vld [vmem:[%s8 + $0x14] sm:$0xf]
        %v545 = vld [vmem:[%s8 + $0x18] sm:$0xf]
        %v546 = vld [vmem:[%s8 + $0x1c] sm:$0xf]
        %v547 = vld [vmem:[%s8 + $0x20] sm:$0xf]
        %v548 = vld [vmem:[%s8 + $0x24] sm:$0xf]
        %v549 = vld [vmem:[%s8 + $0x28] sm:$0xf]
        %v550 = vld [vmem:[%s8 + $0x2c] sm:$0xf]
        %v551 = vld [vmem:[%s8 + $0x30] sm:$0xf]
        %v552 = vld [vmem:[%s8 + $0x34] sm:$0xf]
        %v553 = vld [vmem:[%s8 + $0x38] sm:$0xf]
        %v554 = vld [vmem:[%s8 + $0x3c] sm:$0xf]
        %v555 = vld [vmem:[%s8 + $0x40] sm:$0xf]
        %v556 = vld [vmem:[%s8 + $0x44] sm:$0xf]
        %v557 = vld [vmem:[%s8 + $0x48] sm:$0xf]
        %v558 = vld [vmem:[%s8 + $0x4c] sm:$0xf]
        %v559 = vld [vmem:[%s8 + $0x50] sm:$0xf]
        %v560 = vld [vmem:[%s8 + $0x54] sm:$0xf]
        %v561 = vld [vmem:[%s8 + $0x58] sm:$0xf]
        %v562 = vld [vmem:[%s8 + $0x5c] sm:$0xf]
        %v563 = vld [vmem:[%s8 + $0x60] sm:$0xf]
        %v564 = vld [vmem:[%s8 + $0x64] sm:$0xf]
        %v565 = vld [vmem:[%s8 + $0x68] sm:$0xf]
        %v566 = vld [vmem:[%s8 + $0x6c] sm:$0xf]
        %v567 = vld [vmem:[%s8 + $0x70] sm:$0xf]
        %v568 = vld [vmem:[%s8 + $0x74] sm:$0xf]
        %v569 = vld [vmem:[%s8 + $0x78] sm:$0xf]
        %v570 = vld [vmem:[%s8 + $0x7c] sm:$0xf]
        %v575 = vunpack.c.l.b16 %v539
        %v576 = vunpack.c.l.b16 %v540
        %v577 = vunpack.c.l.b16 %v541
        %v578 = vunpack.c.l.b16 %v542
        %v579 = vpack.c.b16 %v576, %v575
        %v580 = vpack.c.b16 %v578, %v577
        %v584 = vsel %vm503, %v519, 0
        %586 = vmatprep.subr.bf16.mxu0 0
        %587 = vmatpush1.bf16.msra.mxu0 %v579
        %588 = vmatprep.subr.bf16.mxu0 0
        %589 = vmatpush1.bf16.msra.mxu0 %v580
        %590 = vmatprep.subr.bf16.mxu0 0
        %591 = vmatpush1.bf16.msra.mxu0 0
        %592 = vmatprep.subr.bf16.mxu0 0
        %593 = vmatpush1.bf16.msra.mxu0 0
        %594 = vmatprep.subr.bf16.mxu0 0
        %595 = vmatpush1.bf16.msra.mxu0 0
        %596 = vmatprep.subr.bf16.mxu0 0
        %597 = vmatpush1.bf16.msra.mxu0 0
        %598 = vmatprep.subr.bf16.mxu0 0
        %599 = vmatpush1.bf16.msra.mxu0 0
        %600 = vmatprep.subr.bf16.mxu0 0
        %601 = vmatpush1.bf16.msra.mxu0 0
        %602 = vmatprep.subr.bf16.mxu0 0
        %603 = vmatpush1.bf16.msra.mxu0 0
        %604 = vmatprep.subr.bf16.mxu0 0
        %605 = vmatpush1.bf16.msra.mxu0 0
        %606 = vmatprep.subr.bf16.mxu0 0
        %607 = vmatpush1.bf16.msra.mxu0 0
        %608 = vmatprep.subr.bf16.mxu0 0
        %609 = vmatpush1.bf16.msra.mxu0 0
        %610 = vmatprep.subr.bf16.mxu0 0
        %611 = vmatpush1.bf16.msra.mxu0 0
        %612 = vmatprep.subr.bf16.mxu0 0
        %613 = vmatpush1.bf16.msra.mxu0 0
        %614 = vmatprep.subr.bf16.mxu0 0
        %615 = vmatpush1.bf16.msra.mxu0 0
        %616 = vmatprep.subr.bf16.mxu0 0
        %617 = vmatpush1.bf16.msra.mxu0 0
        %618 = vmatprep.mubr.bf16.mxu0 0
        %619 = vmatmul.mubr.bf16.gmra.mrb[0].mxu0 %v584
        %v620 = vpop.f32.mrb[0].mxu0
        %v621 = vadd.f32 0.0, %v620
        %v622 = vpop.f32.mrb[0].mxu0
        %v623 = vpop.f32.mrb[0].mxu0
        %v624 = vpop.f32.mrb[0].mxu0
        %625 = vdwg.mxu0
        %v630 = vunpack.c.l.b16 %v543
        %v631 = vunpack.c.l.b16 %v544
        %v632 = vunpack.c.l.b16 %v545
        %v633 = vunpack.c.l.b16 %v546
        %v634 = vpack.c.b16 %v631, %v630
        %v635 = vpack.c.b16 %v633, %v632
        %638 = vmatprep.subr.bf16.mxu0 0
        %639 = vmatpush1.bf16.msra.mxu0 %v634
        %640 = vmatprep.subr.bf16.mxu0 0
        %641 = vmatpush1.bf16.msra.mxu0 %v635
        %642 = vmatprep.subr.bf16.mxu0 0
        %643 = vmatpush1.bf16.msra.mxu0 0
        %644 = vmatprep.subr.bf16.mxu0 0
        %645 = vmatpush1.bf16.msra.mxu0 0
        %646 = vmatprep.subr.bf16.mxu0 0
        %647 = vmatpush1.bf16.msra.mxu0 0
        %648 = vmatprep.subr.bf16.mxu0 0
        %649 = vmatpush1.bf16.msra.mxu0 0
        %650 = vmatprep.subr.bf16.mxu0 0
        %651 = vmatpush1.bf16.msra.mxu0 0
        %652 = vmatprep.subr.bf16.mxu0 0
        %653 = vmatpush1.bf16.msra.mxu0 0
        %654 = vmatprep.subr.bf16.mxu0 0
        %655 = vmatpush1.bf16.msra.mxu0 0
        %656 = vmatprep.subr.bf16.mxu0 0
        %657 = vmatpush1.bf16.msra.mxu0 0
        %658 = vmatprep.subr.bf16.mxu0 0
        %659 = vmatpush1.bf16.msra.mxu0 0
        %660 = vmatprep.subr.bf16.mxu0 0
        %661 = vmatpush1.bf16.msra.mxu0 0
        %662 = vmatprep.subr.bf16.mxu0 0
        %663 = vmatpush1.bf16.msra.mxu0 0
        %664 = vmatprep.subr.bf16.mxu0 0
        %665 = vmatpush1.bf16.msra.mxu0 0
        %666 = vmatprep.subr.bf16.mxu0 0
        %667 = vmatpush1.bf16.msra.mxu0 0
        %668 = vmatprep.subr.bf16.mxu0 0
        %669 = vmatpush1.bf16.msra.mxu0 0
        %670 = vmatprep.mubr.bf16.mxu0 0
        %671 = vmatmul.mubr.bf16.gmra.mrb[0].mxu0 %v584
        %v672 = vpop.f32.mrb[0].mxu0
        %v673 = vadd.f32 0.0, %v672
        %v674 = vpop.f32.mrb[0].mxu0
        %v675 = vpop.f32.mrb[0].mxu0
        %v676 = vpop.f32.mrb[0].mxu0
        %677 = vdwg.mxu0
        %v682 = vunpack.c.l.b16 %v547
        %v683 = vunpack.c.l.b16 %v548
        %v684 = vunpack.c.l.b16 %v549
        %v685 = vunpack.c.l.b16 %v550
        %v686 = vpack.c.b16 %v683, %v682
        %v687 = vpack.c.b16 %v685, %v684
        %690 = vmatprep.subr.bf16.mxu0 0
        %691 = vmatpush1.bf16.msra.mxu0 %v686
        %692 = vmatprep.subr.bf16.mxu0 0
        %693 = vmatpush1.bf16.msra.mxu0 %v687
        %694 = vmatprep.subr.bf16.mxu0 0
        %695 = vmatpush1.bf16.msra.mxu0 0
        %696 = vmatprep.subr.bf16.mxu0 0
        %697 = vmatpush1.bf16.msra.mxu0 0
        %698 = vmatprep.subr.bf16.mxu0 0
        %699 = vmatpush1.bf16.msra.mxu0 0
        %700 = vmatprep.subr.bf16.mxu0 0
        %701 = vmatpush1.bf16.msra.mxu0 0
        %702 = vmatprep.subr.bf16.mxu0 0
        %703 = vmatpush1.bf16.msra.mxu0 0
        %704 = vmatprep.subr.bf16.mxu0 0
        %705 = vmatpush1.bf16.msra.mxu0 0
        %706 = vmatprep.subr.bf16.mxu0 0
        %707 = vmatpush1.bf16.msra.mxu0 0
        %708 = vmatprep.subr.bf16.mxu0 0
        %709 = vmatpush1.bf16.msra.mxu0 0
        %710 = vmatprep.subr.bf16.mxu0 0
        %711 = vmatpush1.bf16.msra.mxu0 0
        %712 = vmatprep.subr.bf16.mxu0 0
        %713 = vmatpush1.bf16.msra.mxu0 0
        %714 = vmatprep.subr.bf16.mxu0 0
        %715 = vmatpush1.bf16.msra.mxu0 0
        %716 = vmatprep.subr.bf16.mxu0 0
        %717 = vmatpush1.bf16.msra.mxu0 0
        %718 = vmatprep.subr.bf16.mxu0 0
        %719 = vmatpush1.bf16.msra.mxu0 0
        %720 = vmatprep.subr.bf16.mxu0 0
        %721 = vmatpush1.bf16.msra.mxu0 0
        %722 = vmatprep.mubr.bf16.mxu0 0
        %723 = vmatmul.mubr.bf16.gmra.mrb[0].mxu0 %v584
        %v724 = vpop.f32.mrb[0].mxu0
        %v725 = vadd.f32 0.0, %v724
        %v726 = vpop.f32.mrb[0].mxu0
        %v727 = vpop.f32.mrb[0].mxu0
        %v728 = vpop.f32.mrb[0].mxu0
        %729 = vdwg.mxu0
        %v734 = vunpack.c.l.b16 %v551
        %v735 = vunpack.c.l.b16 %v552
        %v736 = vunpack.c.l.b16 %v553
        %v737 = vunpack.c.l.b16 %v554
        %v738 = vpack.c.b16 %v735, %v734
        %v739 = vpack.c.b16 %v737, %v736
        %742 = vmatprep.subr.bf16.mxu0 0
        %743 = vmatpush1.bf16.msra.mxu0 %v738
        %744 = vmatprep.subr.bf16.mxu0 0
        %745 = vmatpush1.bf16.msra.mxu0 %v739
        %746 = vmatprep.subr.bf16.mxu0 0
        %747 = vmatpush1.bf16.msra.mxu0 0
        %748 = vmatprep.subr.bf16.mxu0 0
        %749 = vmatpush1.bf16.msra.mxu0 0
        %750 = vmatprep.subr.bf16.mxu0 0
        %751 = vmatpush1.bf16.msra.mxu0 0
        %752 = vmatprep.subr.bf16.mxu0 0
        %753 = vmatpush1.bf16.msra.mxu0 0
        %754 = vmatprep.subr.bf16.mxu0 0
        %755 = vmatpush1.bf16.msra.mxu0 0
        %756 = vmatprep.subr.bf16.mxu0 0
        %757 = vmatpush1.bf16.msra.mxu0 0
        %758 = vmatprep.subr.bf16.mxu0 0
        %759 = vmatpush1.bf16.msra.mxu0 0
        %760 = vmatprep.subr.bf16.mxu0 0
        %761 = vmatpush1.bf16.msra.mxu0 0
        %762 = vmatprep.subr.bf16.mxu0 0
        %763 = vmatpush1.bf16.msra.mxu0 0
        %764 = vmatprep.subr.bf16.mxu0 0
        %765 = vmatpush1.bf16.msra.mxu0 0
        %766 = vmatprep.subr.bf16.mxu0 0
        %767 = vmatpush1.bf16.msra.mxu0 0
        %768 = vmatprep.subr.bf16.mxu0 0
        %769 = vmatpush1.bf16.msra.mxu0 0
        %770 = vmatprep.subr.bf16.mxu0 0
        %771 = vmatpush1.bf16.msra.mxu0 0
        %772 = vmatprep.subr.bf16.mxu0 0
        %773 = vmatpush1.bf16.msra.mxu0 0
        %774 = vmatprep.mubr.bf16.mxu0 0
        %775 = vmatmul.mubr.bf16.gmra.mrb[0].mxu0 %v584
        %v776 = vpop.f32.mrb[0].mxu0
        %v777 = vadd.f32 0.0, %v776
        %v778 = vpop.f32.mrb[0].mxu0
        %v779 = vpop.f32.mrb[0].mxu0
        %v780 = vpop.f32.mrb[0].mxu0
        %781 = vdwg.mxu0
        %v786 = vunpack.c.l.b16 %v555
        %v787 = vunpack.c.l.b16 %v556
        %v788 = vunpack.c.l.b16 %v557
        %v789 = vunpack.c.l.b16 %v558
        %v790 = vpack.c.b16 %v787, %v786
        %v791 = vpack.c.b16 %v789, %v788
        %794 = vmatprep.subr.bf16.mxu0 0
        %795 = vmatpush1.bf16.msra.mxu0 %v790
        %796 = vmatprep.subr.bf16.mxu0 0
        %797 = vmatpush1.bf16.msra.mxu0 %v791
        %798 = vmatprep.subr.bf16.mxu0 0
        %799 = vmatpush1.bf16.msra.mxu0 0
        %800 = vmatprep.subr.bf16.mxu0 0
        %801 = vmatpush1.bf16.msra.mxu0 0
        %802 = vmatprep.subr.bf16.mxu0 0
        %803 = vmatpush1.bf16.msra.mxu0 0
        %804 = vmatprep.subr.bf16.mxu0 0
        %805 = vmatpush1.bf16.msra.mxu0 0
        %806 = vmatprep.subr.bf16.mxu0 0
        %807 = vmatpush1.bf16.msra.mxu0 0
        %808 = vmatprep.subr.bf16.mxu0 0
        %809 = vmatpush1.bf16.msra.mxu0 0
        %810 = vmatprep.subr.bf16.mxu0 0
        %811 = vmatpush1.bf16.msra.mxu0 0
        %812 = vmatprep.subr.bf16.mxu0 0
        %813 = vmatpush1.bf16.msra.mxu0 0
        %814 = vmatprep.subr.bf16.mxu0 0
        %815 = vmatpush1.bf16.msra.mxu0 0
        %816 = vmatprep.subr.bf16.mxu0 0
        %817 = vmatpush1.bf16.msra.mxu0 0
        %818 = vmatprep.subr.bf16.mxu0 0
        %819 = vmatpush1.bf16.msra.mxu0 0
        %820 = vmatprep.subr.bf16.mxu0 0
        %821 = vmatpush1.bf16.msra.mxu0 0
        %822 = vmatprep.subr.bf16.mxu0 0
        %823 = vmatpush1.bf16.msra.mxu0 0
        %824 = vmatprep.subr.bf16.mxu0 0
        %825 = vmatpush1.bf16.msra.mxu0 0
        %826 = vmatprep.mubr.bf16.mxu0 0
        %827 = vmatmul.mubr.bf16.gmra.mrb[0].mxu0 %v584
        %v828 = vpop.f32.mrb[0].mxu0
        %v829 = vadd.f32 0.0, %v828
        %v830 = vpop.f32.mrb[0].mxu0
        %v831 = vpop.f32.mrb[0].mxu0
        %v832 = vpop.f32.mrb[0].mxu0
        %833 = vdwg.mxu0
        %v838 = vunpack.c.l.b16 %v559
        %v839 = vunpack.c.l.b16 %v560
        %v840 = vunpack.c.l.b16 %v561
        %v841 = vunpack.c.l.b16 %v562
        %v842 = vpack.c.b16 %v839, %v838
        %v843 = vpack.c.b16 %v841, %v840
        %846 = vmatprep.subr.bf16.mxu0 0
        %847 = vmatpush1.bf16.msra.mxu0 %v842
        %848 = vmatprep.subr.bf16.mxu0 0
        %849 = vmatpush1.bf16.msra.mxu0 %v843
        %850 = vmatprep.subr.bf16.mxu0 0
        %851 = vmatpush1.bf16.msra.mxu0 0
        %852 = vmatprep.subr.bf16.mxu0 0
        %853 = vmatpush1.bf16.msra.mxu0 0
        %854 = vmatprep.subr.bf16.mxu0 0
        %855 = vmatpush1.bf16.msra.mxu0 0
        %856 = vmatprep.subr.bf16.mxu0 0
        %857 = vmatpush1.bf16.msra.mxu0 0
        %858 = vmatprep.subr.bf16.mxu0 0
        %859 = vmatpush1.bf16.msra.mxu0 0
        %860 = vmatprep.subr.bf16.mxu0 0
        %861 = vmatpush1.bf16.msra.mxu0 0
        %862 = vmatprep.subr.bf16.mxu0 0
        %863 = vmatpush1.bf16.msra.mxu0 0
        %864 = vmatprep.subr.bf16.mxu0 0
        %865 = vmatpush1.bf16.msra.mxu0 0
        %866 = vmatprep.subr.bf16.mxu0 0
        %867 = vmatpush1.bf16.msra.mxu0 0
        %868 = vmatprep.subr.bf16.mxu0 0
        %869 = vmatpush1.bf16.msra.mxu0 0
        %870 = vmatprep.subr.bf16.mxu0 0
        %871 = vmatpush1.bf16.msra.mxu0 0
        %872 = vmatprep.subr.bf16.mxu0 0
        %873 = vmatpush1.bf16.msra.mxu0 0
        %874 = vmatprep.subr.bf16.mxu0 0
        %875 = vmatpush1.bf16.msra.mxu0 0
        %876 = vmatprep.subr.bf16.mxu0 0
        %877 = vmatpush1.bf16.msra.mxu0 0
        %878 = vmatprep.mubr.bf16.mxu0 0
        %879 = vmatmul.mubr.bf16.gmra.mrb[0].mxu0 %v584
        %v880 = vpop.f32.mrb[0].mxu0
        %v881 = vadd.f32 0.0, %v880
        %v882 = vpop.f32.mrb[0].mxu0
        %v883 = vpop.f32.mrb[0].mxu0
        %v884 = vpop.f32.mrb[0].mxu0
        %885 = vdwg.mxu0
        %v890 = vunpack.c.l.b16 %v563
        %v891 = vunpack.c.l.b16 %v564
        %v892 = vunpack.c.l.b16 %v565
        %v893 = vunpack.c.l.b16 %v566
        %v894 = vpack.c.b16 %v891, %v890
        %v895 = vpack.c.b16 %v893, %v892
        %898 = vmatprep.subr.bf16.mxu0 0
        %899 = vmatpush1.bf16.msra.mxu0 %v894
        %900 = vmatprep.subr.bf16.mxu0 0
        %901 = vmatpush1.bf16.msra.mxu0 %v895
        %902 = vmatprep.subr.bf16.mxu0 0
        %903 = vmatpush1.bf16.msra.mxu0 0
        %904 = vmatprep.subr.bf16.mxu0 0
        %905 = vmatpush1.bf16.msra.mxu0 0
        %906 = vmatprep.subr.bf16.mxu0 0
        %907 = vmatpush1.bf16.msra.mxu0 0
        %908 = vmatprep.subr.bf16.mxu0 0
        %909 = vmatpush1.bf16.msra.mxu0 0
        %910 = vmatprep.subr.bf16.mxu0 0
        %911 = vmatpush1.bf16.msra.mxu0 0
        %912 = vmatprep.subr.bf16.mxu0 0
        %913 = vmatpush1.bf16.msra.mxu0 0
        %914 = vmatprep.subr.bf16.mxu0 0
        %915 = vmatpush1.bf16.msra.mxu0 0
        %916 = vmatprep.subr.bf16.mxu0 0
        %917 = vmatpush1.bf16.msra.mxu0 0
        %918 = vmatprep.subr.bf16.mxu0 0
        %919 = vmatpush1.bf16.msra.mxu0 0
        %920 = vmatprep.subr.bf16.mxu0 0
        %921 = vmatpush1.bf16.msra.mxu0 0
        %922 = vmatprep.subr.bf16.mxu0 0
        %923 = vmatpush1.bf16.msra.mxu0 0
        %924 = vmatprep.subr.bf16.mxu0 0
        %925 = vmatpush1.bf16.msra.mxu0 0
        %926 = vmatprep.subr.bf16.mxu0 0
        %927 = vmatpush1.bf16.msra.mxu0 0
        %928 = vmatprep.subr.bf16.mxu0 0
        %929 = vmatpush1.bf16.msra.mxu0 0
        %930 = vmatprep.mubr.bf16.mxu0 0
        %931 = vmatmul.mubr.bf16.gmra.mrb[0].mxu0 %v584
        %v932 = vpop.f32.mrb[0].mxu0
        %v933 = vadd.f32 0.0, %v932
        %v934 = vpop.f32.mrb[0].mxu0
        %v935 = vpop.f32.mrb[0].mxu0
        %v936 = vpop.f32.mrb[0].mxu0
        %937 = vdwg.mxu0
        %v942 = vunpack.c.l.b16 %v567
        %v943 = vunpack.c.l.b16 %v568
        %v944 = vunpack.c.l.b16 %v569
        %v945 = vunpack.c.l.b16 %v570
        %v946 = vpack.c.b16 %v943, %v942
        %v947 = vpack.c.b16 %v945, %v944
        %950 = vmatprep.subr.bf16.mxu0 0
        %951 = vmatpush1.bf16.msra.mxu0 %v946
        %952 = vmatprep.subr.bf16.mxu0 0
        %953 = vmatpush1.bf16.msra.mxu0 %v947
        %954 = vmatprep.subr.bf16.mxu0 0
        %955 = vmatpush1.bf16.msra.mxu0 0
        %956 = vmatprep.subr.bf16.mxu0 0
        %957 = vmatpush1.bf16.msra.mxu0 0
        %958 = vmatprep.subr.bf16.mxu0 0
        %959 = vmatpush1.bf16.msra.mxu0 0
        %960 = vmatprep.subr.bf16.mxu0 0
        %961 = vmatpush1.bf16.msra.mxu0 0
        %962 = vmatprep.subr.bf16.mxu0 0
        %963 = vmatpush1.bf16.msra.mxu0 0
        %964 = vmatprep.subr.bf16.mxu0 0
        %965 = vmatpush1.bf16.msra.mxu0 0
        %966 = vmatprep.subr.bf16.mxu0 0
        %967 = vmatpush1.bf16.msra.mxu0 0
        %968 = vmatprep.subr.bf16.mxu0 0
        %969 = vmatpush1.bf16.msra.mxu0 0
        %970 = vmatprep.subr.bf16.mxu0 0
        %971 = vmatpush1.bf16.msra.mxu0 0
        %972 = vmatprep.subr.bf16.mxu0 0
        %973 = vmatpush1.bf16.msra.mxu0 0
        %974 = vmatprep.subr.bf16.mxu0 0
        %975 = vmatpush1.bf16.msra.mxu0 0
        %976 = vmatprep.subr.bf16.mxu0 0
        %977 = vmatpush1.bf16.msra.mxu0 0
        %978 = vmatprep.subr.bf16.mxu0 0
        %979 = vmatpush1.bf16.msra.mxu0 0
        %980 = vmatprep.subr.bf16.mxu0 0
        %981 = vmatpush1.bf16.msra.mxu0 0
        %982 = vmatprep.mubr.bf16.mxu0 0
        %983 = vmatmul.mubr.bf16.gmra.mrb[0].mxu0 %v584
        %v984 = vpop.f32.mrb[0].mxu0
        %v985 = vadd.f32 0.0, %v984
        %v986 = vpop.f32.mrb[0].mxu0
        %v987 = vpop.f32.mrb[0].mxu0
        %v988 = vpop.f32.mrb[0].mxu0
        %989 = vdwg.mxu0
        %v990 = vld [vmem:[%s9] sm:$0xf]
        %v991 = vld [vmem:[%s9 + $0x4] sm:$0xf]
        %v992 = vld [vmem:[%s9 + $0x8] sm:$0xf]
        %v993 = vld [vmem:[%s9 + $0xc] sm:$0xf]
        %v994 = vld [vmem:[%s9 + $0x10] sm:$0xf]
        %v995 = vld [vmem:[%s9 + $0x14] sm:$0xf]
        %v996 = vld [vmem:[%s9 + $0x18] sm:$0xf]
        %v997 = vld [vmem:[%s9 + $0x1c] sm:$0xf]
        %v998 = vld [vmem:[%s9 + $0x20] sm:$0xf]
        %v999 = vld [vmem:[%s9 + $0x24] sm:$0xf]
        %v1000 = vld [vmem:[%s9 + $0x28] sm:$0xf]
        %v1001 = vld [vmem:[%s9 + $0x2c] sm:$0xf]
        %v1002 = vld [vmem:[%s9 + $0x30] sm:$0xf]
        %v1003 = vld [vmem:[%s9 + $0x34] sm:$0xf]
        %v1004 = vld [vmem:[%s9 + $0x38] sm:$0xf]
        %v1005 = vld [vmem:[%s9 + $0x3c] sm:$0xf]
        %v1010 = vunpack.c.l.b16 %v990
        %v1011 = vunpack.c.l.b16 %v991
        %v1012 = vunpack.c.l.b16 %v992
        %v1013 = vunpack.c.l.b16 %v993
        %v1014 = vpack.c.b16 %v1011, %v1010
        %v1015 = vpack.c.b16 %v1013, %v1012
        %v1019 = vsel %vm503, %v538, 0
        %1021 = vmatprep.subr.bf16.mxu0 0
        %1022 = vmatpush1.bf16.msra.mxu0 %v1014
        %1023 = vmatprep.subr.bf16.mxu0 0
        %1024 = vmatpush1.bf16.msra.mxu0 %v1015
        %1025 = vmatprep.subr.bf16.mxu0 0
        %1026 = vmatpush1.bf16.msra.mxu0 0
        %1027 = vmatprep.subr.bf16.mxu0 0
        %1028 = vmatpush1.bf16.msra.mxu0 0
        %1029 = vmatprep.subr.bf16.mxu0 0
        %1030 = vmatpush1.bf16.msra.mxu0 0
        %1031 = vmatprep.subr.bf16.mxu0 0
        %1032 = vmatpush1.bf16.msra.mxu0 0
        %1033 = vmatprep.subr.bf16.mxu0 0
        %1034 = vmatpush1.bf16.msra.mxu0 0
        %1035 = vmatprep.subr.bf16.mxu0 0
        %1036 = vmatpush1.bf16.msra.mxu0 0
        %1037 = vmatprep.subr.bf16.mxu0 0
        %1038 = vmatpush1.bf16.msra.mxu0 0
        %1039 = vmatprep.subr.bf16.mxu0 0
        %1040 = vmatpush1.bf16.msra.mxu0 0
        %1041 = vmatprep.subr.bf16.mxu0 0
        %1042 = vmatpush1.bf16.msra.mxu0 0
        %1043 = vmatprep.subr.bf16.mxu0 0
        %1044 = vmatpush1.bf16.msra.mxu0 0
        %1045 = vmatprep.subr.bf16.mxu0 0
        %1046 = vmatpush1.bf16.msra.mxu0 0
        %1047 = vmatprep.subr.bf16.mxu0 0
        %1048 = vmatpush1.bf16.msra.mxu0 0
        %1049 = vmatprep.subr.bf16.mxu0 0
        %1050 = vmatpush1.bf16.msra.mxu0 0
        %1051 = vmatprep.subr.bf16.mxu0 0
        %1052 = vmatpush1.bf16.msra.mxu0 0
        %1053 = vmatprep.mubr.bf16.mxu0 0
        %1054 = vmatmul.mubr.bf16.gmra.mrb[0].mxu0 %v1019
        %v1055 = vpop.f32.mrb[0].mxu0
        %v1056 = vadd.f32 0.0, %v1055
        %v1057 = vpop.f32.mrb[0].mxu0
        %v1058 = vpop.f32.mrb[0].mxu0
        %v1059 = vadd.f32 0.0, %v1058
        %v1060 = vpop.f32.mrb[0].mxu0
        %1061 = vdwg.mxu0
        %v1066 = vunpack.c.l.b16 %v994
        %v1067 = vunpack.c.l.b16 %v995
        %v1068 = vunpack.c.l.b16 %v996
        %v1069 = vunpack.c.l.b16 %v997
        %v1070 = vpack.c.b16 %v1067, %v1066
        %v1071 = vpack.c.b16 %v1069, %v1068
        %1074 = vmatprep.subr.bf16.mxu0 0
        %1075 = vmatpush1.bf16.msra.mxu0 %v1070
        %1076 = vmatprep.subr.bf16.mxu0 0
        %1077 = vmatpush1.bf16.msra.mxu0 %v1071
        %1078 = vmatprep.subr.bf16.mxu0 0
        %1079 = vmatpush1.bf16.msra.mxu0 0
        %1080 = vmatprep.subr.bf16.mxu0 0
        %1081 = vmatpush1.bf16.msra.mxu0 0
        %1082 = vmatprep.subr.bf16.mxu0 0
        %1083 = vmatpush1.bf16.msra.mxu0 0
        %1084 = vmatprep.subr.bf16.mxu0 0
        %1085 = vmatpush1.bf16.msra.mxu0 0
        %1086 = vmatprep.subr.bf16.mxu0 0
        %1087 = vmatpush1.bf16.msra.mxu0 0
        %1088 = vmatprep.subr.bf16.mxu0 0
        %1089 = vmatpush1.bf16.msra.mxu0 0
        %1090 = vmatprep.subr.bf16.mxu0 0
        %1091 = vmatpush1.bf16.msra.mxu0 0
        %1092 = vmatprep.subr.bf16.mxu0 0
        %1093 = vmatpush1.bf16.msra.mxu0 0
        %1094 = vmatprep.subr.bf16.mxu0 0
        %1095 = vmatpush1.bf16.msra.mxu0 0
        %1096 = vmatprep.subr.bf16.mxu0 0
        %1097 = vmatpush1.bf16.msra.mxu0 0
        %1098 = vmatprep.subr.bf16.mxu0 0
        %1099 = vmatpush1.bf16.msra.mxu0 0
        %1100 = vmatprep.subr.bf16.mxu0 0
        %1101 = vmatpush1.bf16.msra.mxu0 0
        %1102 = vmatprep.subr.bf16.mxu0 0
        %1103 = vmatpush1.bf16.msra.mxu0 0
        %1104 = vmatprep.subr.bf16.mxu0 0
        %1105 = vmatpush1.bf16.msra.mxu0 0
        %1106 = vmatprep.mubr.bf16.mxu0 0
        %1107 = vmatmul.mubr.bf16.gmra.mrb[0].mxu0 %v1019
        %v1108 = vpop.f32.mrb[0].mxu0
        %v1109 = vadd.f32 0.0, %v1108
        %v1110 = vpop.f32.mrb[0].mxu0
        %v1111 = vpop.f32.mrb[0].mxu0
        %v1112 = vadd.f32 0.0, %v1111
        %v1113 = vpop.f32.mrb[0].mxu0
        %1114 = vdwg.mxu0
        %v1119 = vunpack.c.l.b16 %v998
        %v1120 = vunpack.c.l.b16 %v999
        %v1121 = vunpack.c.l.b16 %v1000
        %v1122 = vunpack.c.l.b16 %v1001
        %v1123 = vpack.c.b16 %v1120, %v1119
        %v1124 = vpack.c.b16 %v1122, %v1121
        %1127 = vmatprep.subr.bf16.mxu0 0
        %1128 = vmatpush1.bf16.msra.mxu0 %v1123
        %1129 = vmatprep.subr.bf16.mxu0 0
        %1130 = vmatpush1.bf16.msra.mxu0 %v1124
        %1131 = vmatprep.subr.bf16.mxu0 0
        %1132 = vmatpush1.bf16.msra.mxu0 0
        %1133 = vmatprep.subr.bf16.mxu0 0
        %1134 = vmatpush1.bf16.msra.mxu0 0
        %1135 = vmatprep.subr.bf16.mxu0 0
        %1136 = vmatpush1.bf16.msra.mxu0 0
        %1137 = vmatprep.subr.bf16.mxu0 0
        %1138 = vmatpush1.bf16.msra.mxu0 0
        %1139 = vmatprep.subr.bf16.mxu0 0
        %1140 = vmatpush1.bf16.msra.mxu0 0
        %1141 = vmatprep.subr.bf16.mxu0 0
        %1142 = vmatpush1.bf16.msra.mxu0 0
        %1143 = vmatprep.subr.bf16.mxu0 0
        %1144 = vmatpush1.bf16.msra.mxu0 0
        %1145 = vmatprep.subr.bf16.mxu0 0
        %1146 = vmatpush1.bf16.msra.mxu0 0
        %1147 = vmatprep.subr.bf16.mxu0 0
        %1148 = vmatpush1.bf16.msra.mxu0 0
        %1149 = vmatprep.subr.bf16.mxu0 0
        %1150 = vmatpush1.bf16.msra.mxu0 0
        %1151 = vmatprep.subr.bf16.mxu0 0
        %1152 = vmatpush1.bf16.msra.mxu0 0
        %1153 = vmatprep.subr.bf16.mxu0 0
        %1154 = vmatpush1.bf16.msra.mxu0 0
        %1155 = vmatprep.subr.bf16.mxu0 0
        %1156 = vmatpush1.bf16.msra.mxu0 0
        %1157 = vmatprep.subr.bf16.mxu0 0
        %1158 = vmatpush1.bf16.msra.mxu0 0
        %1159 = vmatprep.mubr.bf16.mxu0 0
        %1160 = vmatmul.mubr.bf16.gmra.mrb[0].mxu0 %v1019
        %v1161 = vpop.f32.mrb[0].mxu0
        %v1162 = vadd.f32 0.0, %v1161
        %v1163 = vpop.f32.mrb[0].mxu0
        %v1164 = vpop.f32.mrb[0].mxu0
        %v1165 = vadd.f32 0.0, %v1164
        %v1166 = vpop.f32.mrb[0].mxu0
        %1167 = vdwg.mxu0
        %v1172 = vunpack.c.l.b16 %v1002
        %v1173 = vunpack.c.l.b16 %v1003
        %v1174 = vunpack.c.l.b16 %v1004
        %v1175 = vunpack.c.l.b16 %v1005
        %v1176 = vpack.c.b16 %v1173, %v1172
        %v1177 = vpack.c.b16 %v1175, %v1174
        %1180 = vmatprep.subr.bf16.mxu0 0
        %1181 = vmatpush1.bf16.msra.mxu0 %v1176
        %1182 = vmatprep.subr.bf16.mxu0 0
        %1183 = vmatpush1.bf16.msra.mxu0 %v1177
        %1184 = vmatprep.subr.bf16.mxu0 0
        %1185 = vmatpush1.bf16.msra.mxu0 0
        %1186 = vmatprep.subr.bf16.mxu0 0
        %1187 = vmatpush1.bf16.msra.mxu0 0
        %1188 = vmatprep.subr.bf16.mxu0 0
        %1189 = vmatpush1.bf16.msra.mxu0 0
        %1190 = vmatprep.subr.bf16.mxu0 0
        %1191 = vmatpush1.bf16.msra.mxu0 0
        %1192 = vmatprep.subr.bf16.mxu0 0
        %1193 = vmatpush1.bf16.msra.mxu0 0
        %1194 = vmatprep.subr.bf16.mxu0 0
        %1195 = vmatpush1.bf16.msra.mxu0 0
        %1196 = vmatprep.subr.bf16.mxu0 0
        %1197 = vmatpush1.bf16.msra.mxu0 0
        %1198 = vmatprep.subr.bf16.mxu0 0
        %1199 = vmatpush1.bf16.msra.mxu0 0
        %1200 = vmatprep.subr.bf16.mxu0 0
        %1201 = vmatpush1.bf16.msra.mxu0 0
        %1202 = vmatprep.subr.bf16.mxu0 0
        %1203 = vmatpush1.bf16.msra.mxu0 0
        %1204 = vmatprep.subr.bf16.mxu0 0
        %1205 = vmatpush1.bf16.msra.mxu0 0
        %1206 = vmatprep.subr.bf16.mxu0 0
        %1207 = vmatpush1.bf16.msra.mxu0 0
        %1208 = vmatprep.subr.bf16.mxu0 0
        %1209 = vmatpush1.bf16.msra.mxu0 0
        %1210 = vmatprep.subr.bf16.mxu0 0
        %1211 = vmatpush1.bf16.msra.mxu0 0
        %1212 = vmatprep.mubr.bf16.mxu0 0
        %1213 = vmatmul.mubr.bf16.gmra.mrb[0].mxu0 %v1019
        %v1214 = vpop.f32.mrb[0].mxu0
        %v1215 = vadd.f32 0.0, %v1214
        %v1216 = vpop.f32.mrb[0].mxu0
        %v1217 = vpop.f32.mrb[0].mxu0
        %v1218 = vadd.f32 0.0, %v1217
        %v1219 = vpop.f32.mrb[0].mxu0
        %1220 = vdwg.mxu0
        %v1221 = vld [vmem:[%s10] sm:$0xf]
        %v1222 = vld [vmem:[%s10 + $0x4] sm:$0xf]
        %v1223 = vld [vmem:[%s10 + $0x8] sm:$0xf]
        %v1224 = vld [vmem:[%s10 + $0xc] sm:$0xf]
        %v1225 = vld [vmem:[%s10 + $0x10] sm:$0xf]
        %v1226 = vld [vmem:[%s10 + $0x14] sm:$0xf]
        %v1227 = vld [vmem:[%s10 + $0x18] sm:$0xf]
        %v1228 = vld [vmem:[%s10 + $0x1c] sm:$0xf]
        %v1233 = vunpack.c.l.b16 %v1221
        %v1234 = vunpack.c.l.b16 %v1222
        %v1235 = vunpack.c.l.b16 %v1223
        %v1236 = vunpack.c.l.b16 %v1224
        %v1237 = vpack.c.b16 %v1234, %v1233
        %v1238 = vpack.c.b16 %v1236, %v1235
        %1241 = vmatprep.subr.bf16.mxu0 0
        %1242 = vmatpush1.bf16.msra.mxu0 %v1237
        %1243 = vmatprep.subr.bf16.mxu0 0
        %1244 = vmatpush1.bf16.msra.mxu0 %v1238
        %1245 = vmatprep.subr.bf16.mxu0 0
        %1246 = vmatpush1.bf16.msra.mxu0 0
        %1247 = vmatprep.subr.bf16.mxu0 0
        %1248 = vmatpush1.bf16.msra.mxu0 0
        %1249 = vmatprep.subr.bf16.mxu0 0
        %1250 = vmatpush1.bf16.msra.mxu0 0
        %1251 = vmatprep.subr.bf16.mxu0 0
        %1252 = vmatpush1.bf16.msra.mxu0 0
        %1253 = vmatprep.subr.bf16.mxu0 0
        %1254 = vmatpush1.bf16.msra.mxu0 0
        %1255 = vmatprep.subr.bf16.mxu0 0
        %1256 = vmatpush1.bf16.msra.mxu0 0
        %1257 = vmatprep.subr.bf16.mxu0 0
        %1258 = vmatpush1.bf16.msra.mxu0 0
        %1259 = vmatprep.subr.bf16.mxu0 0
        %1260 = vmatpush1.bf16.msra.mxu0 0
        %1261 = vmatprep.subr.bf16.mxu0 0
        %1262 = vmatpush1.bf16.msra.mxu0 0
        %1263 = vmatprep.subr.bf16.mxu0 0
        %1264 = vmatpush1.bf16.msra.mxu0 0
        %1265 = vmatprep.subr.bf16.mxu0 0
        %1266 = vmatpush1.bf16.msra.mxu0 0
        %1267 = vmatprep.subr.bf16.mxu0 0
        %1268 = vmatpush1.bf16.msra.mxu0 0
        %1269 = vmatprep.subr.bf16.mxu0 0
        %1270 = vmatpush1.bf16.msra.mxu0 0
        %1271 = vmatprep.subr.bf16.mxu0 0
        %1272 = vmatpush1.bf16.msra.mxu0 0
        %1273 = vmatprep.mubr.bf16.mxu0 0
        %1274 = vmatmul.mubr.bf16.gmra.mrb[0].mxu0 %v1019
        %v1275 = vpop.f32.mrb[0].mxu0
        %v1276 = vadd.f32 0.0, %v1275
        %v1277 = vpop.f32.mrb[0].mxu0
        %v1278 = vpop.f32.mrb[0].mxu0
        %v1279 = vadd.f32 0.0, %v1278
        %v1280 = vpop.f32.mrb[0].mxu0
        %1281 = vdwg.mxu0
        %v1286 = vunpack.c.l.b16 %v1225
        %v1287 = vunpack.c.l.b16 %v1226
        %v1288 = vunpack.c.l.b16 %v1227
        %v1289 = vunpack.c.l.b16 %v1228
        %v1290 = vpack.c.b16 %v1287, %v1286
        %v1291 = vpack.c.b16 %v1289, %v1288
        %1294 = vmatprep.subr.bf16.mxu0 0
        %1295 = vmatpush1.bf16.msra.mxu0 %v1290
        %1296 = vmatprep.subr.bf16.mxu0 0
        %1297 = vmatpush1.bf16.msra.mxu0 %v1291
        %1298 = vmatprep.subr.bf16.mxu0 0
        %1299 = vmatpush1.bf16.msra.mxu0 0
        %1300 = vmatprep.subr.bf16.mxu0 0
        %1301 = vmatpush1.bf16.msra.mxu0 0
        %1302 = vmatprep.subr.bf16.mxu0 0
        %1303 = vmatpush1.bf16.msra.mxu0 0
        %1304 = vmatprep.subr.bf16.mxu0 0
        %1305 = vmatpush1.bf16.msra.mxu0 0
        %1306 = vmatprep.subr.bf16.mxu0 0
        %1307 = vmatpush1.bf16.msra.mxu0 0
        %1308 = vmatprep.subr.bf16.mxu0 0
        %1309 = vmatpush1.bf16.msra.mxu0 0
        %1310 = vmatprep.subr.bf16.mxu0 0
        %1311 = vmatpush1.bf16.msra.mxu0 0
        %1312 = vmatprep.subr.bf16.mxu0 0
        %1313 = vmatpush1.bf16.msra.mxu0 0
        %1314 = vmatprep.subr.bf16.mxu0 0
        %1315 = vmatpush1.bf16.msra.mxu0 0
        %1316 = vmatprep.subr.bf16.mxu0 0
        %1317 = vmatpush1.bf16.msra.mxu0 0
        %1318 = vmatprep.subr.bf16.mxu0 0
        %1319 = vmatpush1.bf16.msra.mxu0 0
        %1320 = vmatprep.subr.bf16.mxu0 0
        %1321 = vmatpush1.bf16.msra.mxu0 0
        %1322 = vmatprep.subr.bf16.mxu0 0
        %1323 = vmatpush1.bf16.msra.mxu0 0
        %1324 = vmatprep.subr.bf16.mxu0 0
        %1325 = vmatpush1.bf16.msra.mxu0 0
        %1326 = vmatprep.mubr.bf16.mxu0 0
        %1327 = vmatmul.mubr.bf16.gmra.mrb[0].mxu0 %v1019
        %v1328 = vpop.f32.mrb[0].mxu0
        %v1329 = vadd.f32 0.0, %v1328
        %v1330 = vpop.f32.mrb[0].mxu0
        %v1331 = vpop.f32.mrb[0].mxu0
        %v1332 = vadd.f32 0.0, %v1331
        %v1333 = vpop.f32.mrb[0].mxu0
        %1334 = vdwg.mxu0
        %v1335 = vld [vmem:[%s492] sm:$0xff]
        %v1336 = vmul.f32 %v1335, 0.35355338
        %v1337 = vld [vmem:[%s496] sm:$0xff]
        %v1338 = vmul.f32 %v1337, 0.35355338
        %v1339 = vld [vmem:[%s4] sm:$0xff]
        %v1340 = vld [vmem:[%s4 + $0x8] sm:$0xff]
        %v1341 = vld [vmem:[%s5] sm:$0xff]
        %v1342 = vld [vmem:[%s5 + $0x8] sm:$0xff]
        %v1343 = vmul.f32 %v621, %v1336
        %v1344 = vmul.f32 %v673, %v1336
        %v1345 = vmul.f32 %v725, %v1336
        %v1346 = vmul.f32 %v777, %v1336
        %v1347 = vmul.f32 %v829, %v1338
        %v1348 = vmul.f32 %v881, %v1338
        %v1349 = vmul.f32 %v933, %v1338
        %v1350 = vmul.f32 %v985, %v1338
        %v1351 = vsub.f32 %v1343, %v1347
        %v1352 = vsub.f32 %v1344, %v1348
        %v1353 = vsub.f32 %v1345, %v1349
        %v1354 = vsub.f32 %v1346, %v1350
        %v1355 = vmul.f32 %v829, %v1336
        %v1356 = vmul.f32 %v881, %v1336
        %v1357 = vmul.f32 %v933, %v1336
        %v1358 = vmul.f32 %v985, %v1336
        %v1359 = vmul.f32 %v621, %v1338
        %v1360 = vmul.f32 %v673, %v1338
        %v1361 = vmul.f32 %v725, %v1338
        %v1362 = vmul.f32 %v777, %v1338
        %v1363 = vadd.f32 %v1355, %v1359
        %v1364 = vadd.f32 %v1356, %v1360
        %v1365 = vadd.f32 %v1357, %v1361
        %v1366 = vadd.f32 %v1358, %v1362
        %v1367 = vmul.f32 %v1056, %v1339
        %v1368 = vmul.f32 %v1059, %v1340
        %v1369 = vmul.f32 %v1109, %v1339
        %v1370 = vmul.f32 %v1112, %v1340
        %v1371 = vmul.f32 %v1162, %v1341
        %v1372 = vmul.f32 %v1165, %v1342
        %v1373 = vmul.f32 %v1215, %v1341
        %v1374 = vmul.f32 %v1218, %v1342
        %v1375 = vsub.f32 %v1367, %v1371
        %v1376 = vsub.f32 %v1368, %v1372
        %v1377 = vsub.f32 %v1369, %v1373
        %v1378 = vsub.f32 %v1370, %v1374
        %v1379 = vmul.f32 %v1162, %v1339
        %v1380 = vmul.f32 %v1165, %v1340
        %v1381 = vmul.f32 %v1215, %v1339
        %v1382 = vmul.f32 %v1218, %v1340
        %v1383 = vmul.f32 %v1056, %v1341
        %v1384 = vmul.f32 %v1059, %v1342
        %v1385 = vmul.f32 %v1109, %v1341
        %v1386 = vmul.f32 %v1112, %v1342
        %v1387 = vadd.f32 %v1379, %v1383
        %v1388 = vadd.f32 %v1380, %v1384
        %v1389 = vadd.f32 %v1381, %v1385
        %v1390 = vadd.f32 %v1382, %v1386
        %vm1391 = vcmask 31744
        %v1393 = vsel %vm1391, %v1363, 0
        %v1396 = vsel %vm1391, %v1387, 0
        %v1399 = vsel %vm1391, %v1388, 0
        %1401 = vmatprep.subr.mxu0 0.0
        %1402 = vmatpush1.xpose.msra.mxu0 %v1396
        %1403 = vmatprep.subr.mxu0 0.0
        %1404 = vmatpush1.xpose.msra.mxu0 %v1399
        %1405 = vmatprep.subr.mxu0 0.0
        %1406 = vmatpush1.xpose.msra.mxu0 0.0
        %1407 = vmatprep.subr.mxu0 0.0
        %1408 = vmatpush1.xpose.msra.mxu0 0.0
        %1409 = vmatprep.subr.mxu0 0.0
        %1410 = vmatpush1.xpose.msra.mxu0 0.0
        %1411 = vmatprep.subr.mxu0 0.0
        %1412 = vmatpush1.xpose.msra.mxu0 0.0
        %1413 = vmatprep.subr.mxu0 0.0
        %1414 = vmatpush1.xpose.msra.mxu0 0.0
        %1415 = vmatprep.subr.mxu0 0.0
        %1416 = vmatpush1.xpose.msra.mxu0 0.0
        %1417 = vmatprep.subr.mxu0 0.0
        %1418 = vmatpush1.xpose.msra.mxu0 0.0
        %1419 = vmatprep.subr.mxu0 0.0
        %1420 = vmatpush1.xpose.msra.mxu0 0.0
        %1421 = vmatprep.subr.mxu0 0.0
        %1422 = vmatpush1.xpose.msra.mxu0 0.0
        %1423 = vmatprep.subr.mxu0 0.0
        %1424 = vmatpush1.xpose.msra.mxu0 0.0
        %1425 = vmatprep.subr.mxu0 0.0
        %1426 = vmatpush1.xpose.msra.mxu0 0.0
        %1427 = vmatprep.subr.mxu0 0.0
        %1428 = vmatpush1.xpose.msra.mxu0 0.0
        %1429 = vmatprep.subr.mxu0 0.0
        %1430 = vmatpush1.xpose.msra.mxu0 0.0
        %1431 = vmatprep.subr.mxu0 0.0
        %1432 = vmatpush1.xpose.msra.mxu0 0.0
        %1433 = vmatprep.subr.mxu0 0.0
        %1434 = vmatpush1.xpose.msra.mxu0 0.0
        %1435 = vmatprep.subr.mxu0 0.0
        %1436 = vmatpush1.xpose.msra.mxu0 0.0
        %1437 = vmatprep.subr.mxu0 0.0
        %1438 = vmatpush1.xpose.msra.mxu0 0.0
        %1439 = vmatprep.subr.mxu0 0.0
        %1440 = vmatpush1.xpose.msra.mxu0 0.0
        %1441 = vmatprep.subr.mxu0 0.0
        %1442 = vmatpush1.xpose.msra.mxu0 0.0
        %1443 = vmatprep.subr.mxu0 0.0
        %1444 = vmatpush1.xpose.msra.mxu0 0.0
        %1445 = vmatprep.subr.mxu0 0.0
        %1446 = vmatpush1.xpose.msra.mxu0 0.0
        %1447 = vmatprep.subr.mxu0 0.0
        %1448 = vmatpush1.xpose.msra.mxu0 0.0
        %1449 = vmatprep.subr.mxu0 0.0
        %1450 = vmatpush1.xpose.msra.mxu0 0.0
        %1451 = vmatprep.subr.mxu0 0.0
        %1452 = vmatpush1.xpose.msra.mxu0 0.0
        %1453 = vmatprep.subr.mxu0 0.0
        %1454 = vmatpush1.xpose.msra.mxu0 0.0
        %1455 = vmatprep.subr.mxu0 0.0
        %1456 = vmatpush1.xpose.msra.mxu0 0.0
        %1457 = vmatprep.subr.mxu0 0.0
        %1458 = vmatpush1.xpose.msra.mxu0 0.0
        %1459 = vmatprep.subr.mxu0 0.0
        %1460 = vmatpush1.xpose.msra.mxu0 0.0
        %1461 = vmatprep.subr.mxu0 0.0
        %1462 = vmatpush1.xpose.msra.mxu0 0.0
        %1463 = vmatprep.subr.mxu0 0.0
        %1464 = vmatpush1.xpose.msra.mxu0 0.0
        %1465 = vmatprep.mubr.f32.mxu0 0.0
        %1466 = vmatmul.mubr.f32.gmra.mrb[0].mxu0 %v1393
        %v1467 = vpop.f32.mrb[0].mxu0
        %v1468 = vadd.f32 0.0, %v1467
        %v1469 = vpop.f32.mrb[0].mxu0
        %1470 = vdwg.mxu0
        %v1472 = vsel %vm1391, %v1364, 0
        %1474 = vmatprep.subr.mxu0 0.0
        %1475 = vmatpush1.xpose.msra.mxu0 %v1396
        %1476 = vmatprep.subr.mxu0 0.0
        %1477 = vmatpush1.xpose.msra.mxu0 %v1399
        %1478 = vmatprep.subr.mxu0 0.0
        %1479 = vmatpush1.xpose.msra.mxu0 0.0
        %1480 = vmatprep.subr.mxu0 0.0
        %1481 = vmatpush1.xpose.msra.mxu0 0.0
        %1482 = vmatprep.subr.mxu0 0.0
        %1483 = vmatpush1.xpose.msra.mxu0 0.0
        %1484 = vmatprep.subr.mxu0 0.0
        %1485 = vmatpush1.xpose.msra.mxu0 0.0
        %1486 = vmatprep.subr.mxu0 0.0
        %1487 = vmatpush1.xpose.msra.mxu0 0.0
        %1488 = vmatprep.subr.mxu0 0.0
        %1489 = vmatpush1.xpose.msra.mxu0 0.0
        %1490 = vmatprep.subr.mxu0 0.0
        %1491 = vmatpush1.xpose.msra.mxu0 0.0
        %1492 = vmatprep.subr.mxu0 0.0
        %1493 = vmatpush1.xpose.msra.mxu0 0.0
        %1494 = vmatprep.subr.mxu0 0.0
        %1495 = vmatpush1.xpose.msra.mxu0 0.0
        %1496 = vmatprep.subr.mxu0 0.0
        %1497 = vmatpush1.xpose.msra.mxu0 0.0
        %1498 = vmatprep.subr.mxu0 0.0
        %1499 = vmatpush1.xpose.msra.mxu0 0.0
        %1500 = vmatprep.subr.mxu0 0.0
        %1501 = vmatpush1.xpose.msra.mxu0 0.0
        %1502 = vmatprep.subr.mxu0 0.0
        %1503 = vmatpush1.xpose.msra.mxu0 0.0
        %1504 = vmatprep.subr.mxu0 0.0
        %1505 = vmatpush1.xpose.msra.mxu0 0.0
        %1506 = vmatprep.subr.mxu0 0.0
        %1507 = vmatpush1.xpose.msra.mxu0 0.0
        %1508 = vmatprep.subr.mxu0 0.0
        %1509 = vmatpush1.xpose.msra.mxu0 0.0
        %1510 = vmatprep.subr.mxu0 0.0
        %1511 = vmatpush1.xpose.msra.mxu0 0.0
        %1512 = vmatprep.subr.mxu0 0.0
        %1513 = vmatpush1.xpose.msra.mxu0 0.0
        %1514 = vmatprep.subr.mxu0 0.0
        %1515 = vmatpush1.xpose.msra.mxu0 0.0
        %1516 = vmatprep.subr.mxu0 0.0
        %1517 = vmatpush1.xpose.msra.mxu0 0.0
        %1518 = vmatprep.subr.mxu0 0.0
        %1519 = vmatpush1.xpose.msra.mxu0 0.0
        %1520 = vmatprep.subr.mxu0 0.0
        %1521 = vmatpush1.xpose.msra.mxu0 0.0
        %1522 = vmatprep.subr.mxu0 0.0
        %1523 = vmatpush1.xpose.msra.mxu0 0.0
        %1524 = vmatprep.subr.mxu0 0.0
        %1525 = vmatpush1.xpose.msra.mxu0 0.0
        %1526 = vmatprep.subr.mxu0 0.0
        %1527 = vmatpush1.xpose.msra.mxu0 0.0
        %1528 = vmatprep.subr.mxu0 0.0
        %1529 = vmatpush1.xpose.msra.mxu0 0.0
        %1530 = vmatprep.subr.mxu0 0.0
        %1531 = vmatpush1.xpose.msra.mxu0 0.0
        %1532 = vmatprep.subr.mxu0 0.0
        %1533 = vmatpush1.xpose.msra.mxu0 0.0
        %1534 = vmatprep.subr.mxu0 0.0
        %1535 = vmatpush1.xpose.msra.mxu0 0.0
        %1536 = vmatprep.subr.mxu0 0.0
        %1537 = vmatpush1.xpose.msra.mxu0 0.0
        %1538 = vmatprep.mubr.f32.mxu0 0.0
        %1539 = vmatmul.mubr.f32.gmra.mrb[0].mxu0 %v1472
        %v1540 = vpop.f32.mrb[0].mxu0
        %v1541 = vadd.f32 0.0, %v1540
        %v1542 = vpop.f32.mrb[0].mxu0
        %1543 = vdwg.mxu0
        %v1545 = vsel %vm1391, %v1365, 0
        %v1548 = vsel %vm1391, %v1389, 0
        %v1551 = vsel %vm1391, %v1390, 0
        %1553 = vmatprep.subr.mxu0 0.0
        %1554 = vmatpush1.xpose.msra.mxu0 %v1548
        %1555 = vmatprep.subr.mxu0 0.0
        %1556 = vmatpush1.xpose.msra.mxu0 %v1551
        %1557 = vmatprep.subr.mxu0 0.0
        %1558 = vmatpush1.xpose.msra.mxu0 0.0
        %1559 = vmatprep.subr.mxu0 0.0
        %1560 = vmatpush1.xpose.msra.mxu0 0.0
        %1561 = vmatprep.subr.mxu0 0.0
        %1562 = vmatpush1.xpose.msra.mxu0 0.0
        %1563 = vmatprep.subr.mxu0 0.0
        %1564 = vmatpush1.xpose.msra.mxu0 0.0
        %1565 = vmatprep.subr.mxu0 0.0
        %1566 = vmatpush1.xpose.msra.mxu0 0.0
        %1567 = vmatprep.subr.mxu0 0.0
        %1568 = vmatpush1.xpose.msra.mxu0 0.0
        %1569 = vmatprep.subr.mxu0 0.0
        %1570 = vmatpush1.xpose.msra.mxu0 0.0
        %1571 = vmatprep.subr.mxu0 0.0
        %1572 = vmatpush1.xpose.msra.mxu0 0.0
        %1573 = vmatprep.subr.mxu0 0.0
        %1574 = vmatpush1.xpose.msra.mxu0 0.0
        %1575 = vmatprep.subr.mxu0 0.0
        %1576 = vmatpush1.xpose.msra.mxu0 0.0
        %1577 = vmatprep.subr.mxu0 0.0
        %1578 = vmatpush1.xpose.msra.mxu0 0.0
        %1579 = vmatprep.subr.mxu0 0.0
        %1580 = vmatpush1.xpose.msra.mxu0 0.0
        %1581 = vmatprep.subr.mxu0 0.0
        %1582 = vmatpush1.xpose.msra.mxu0 0.0
        %1583 = vmatprep.subr.mxu0 0.0
        %1584 = vmatpush1.xpose.msra.mxu0 0.0
        %1585 = vmatprep.subr.mxu0 0.0
        %1586 = vmatpush1.xpose.msra.mxu0 0.0
        %1587 = vmatprep.subr.mxu0 0.0
        %1588 = vmatpush1.xpose.msra.mxu0 0.0
        %1589 = vmatprep.subr.mxu0 0.0
        %1590 = vmatpush1.xpose.msra.mxu0 0.0
        %1591 = vmatprep.subr.mxu0 0.0
        %1592 = vmatpush1.xpose.msra.mxu0 0.0
        %1593 = vmatprep.subr.mxu0 0.0
        %1594 = vmatpush1.xpose.msra.mxu0 0.0
        %1595 = vmatprep.subr.mxu0 0.0
        %1596 = vmatpush1.xpose.msra.mxu0 0.0
        %1597 = vmatprep.subr.mxu0 0.0
        %1598 = vmatpush1.xpose.msra.mxu0 0.0
        %1599 = vmatprep.subr.mxu0 0.0
        %1600 = vmatpush1.xpose.msra.mxu0 0.0
        %1601 = vmatprep.subr.mxu0 0.0
        %1602 = vmatpush1.xpose.msra.mxu0 0.0
        %1603 = vmatprep.subr.mxu0 0.0
        %1604 = vmatpush1.xpose.msra.mxu0 0.0
        %1605 = vmatprep.subr.mxu0 0.0
        %1606 = vmatpush1.xpose.msra.mxu0 0.0
        %1607 = vmatprep.subr.mxu0 0.0
        %1608 = vmatpush1.xpose.msra.mxu0 0.0
        %1609 = vmatprep.subr.mxu0 0.0
        %1610 = vmatpush1.xpose.msra.mxu0 0.0
        %1611 = vmatprep.subr.mxu0 0.0
        %1612 = vmatpush1.xpose.msra.mxu0 0.0
        %1613 = vmatprep.subr.mxu0 0.0
        %1614 = vmatpush1.xpose.msra.mxu0 0.0
        %1615 = vmatprep.subr.mxu0 0.0
        %1616 = vmatpush1.xpose.msra.mxu0 0.0
        %1617 = vmatprep.mubr.f32.mxu0 0.0
        %1618 = vmatmul.mubr.f32.gmra.mrb[0].mxu0 %v1545
        %v1619 = vpop.f32.mrb[0].mxu0
        %v1620 = vadd.f32 0.0, %v1619
        %v1621 = vpop.f32.mrb[0].mxu0
        %1622 = vdwg.mxu0
        %v1624 = vsel %vm1391, %v1366, 0
        %1626 = vmatprep.subr.mxu0 0.0
        %1627 = vmatpush1.xpose.msra.mxu0 %v1548
        %1628 = vmatprep.subr.mxu0 0.0
        %1629 = vmatpush1.xpose.msra.mxu0 %v1551
        %1630 = vmatprep.subr.mxu0 0.0
        %1631 = vmatpush1.xpose.msra.mxu0 0.0
        %1632 = vmatprep.subr.mxu0 0.0
        %1633 = vmatpush1.xpose.msra.mxu0 0.0
        %1634 = vmatprep.subr.mxu0 0.0
        %1635 = vmatpush1.xpose.msra.mxu0 0.0
        %1636 = vmatprep.subr.mxu0 0.0
        %1637 = vmatpush1.xpose.msra.mxu0 0.0
        %1638 = vmatprep.subr.mxu0 0.0
        %1639 = vmatpush1.xpose.msra.mxu0 0.0
        %1640 = vmatprep.subr.mxu0 0.0
        %1641 = vmatpush1.xpose.msra.mxu0 0.0
        %1642 = vmatprep.subr.mxu0 0.0
        %1643 = vmatpush1.xpose.msra.mxu0 0.0
        %1644 = vmatprep.subr.mxu0 0.0
        %1645 = vmatpush1.xpose.msra.mxu0 0.0
        %1646 = vmatprep.subr.mxu0 0.0
        %1647 = vmatpush1.xpose.msra.mxu0 0.0
        %1648 = vmatprep.subr.mxu0 0.0
        %1649 = vmatpush1.xpose.msra.mxu0 0.0
        %1650 = vmatprep.subr.mxu0 0.0
        %1651 = vmatpush1.xpose.msra.mxu0 0.0
        %1652 = vmatprep.subr.mxu0 0.0
        %1653 = vmatpush1.xpose.msra.mxu0 0.0
        %1654 = vmatprep.subr.mxu0 0.0
        %1655 = vmatpush1.xpose.msra.mxu0 0.0
        %1656 = vmatprep.subr.mxu0 0.0
        %1657 = vmatpush1.xpose.msra.mxu0 0.0
        %1658 = vmatprep.subr.mxu0 0.0
        %1659 = vmatpush1.xpose.msra.mxu0 0.0
        %1660 = vmatprep.subr.mxu0 0.0
        %1661 = vmatpush1.xpose.msra.mxu0 0.0
        %1662 = vmatprep.subr.mxu0 0.0
        %1663 = vmatpush1.xpose.msra.mxu0 0.0
        %1664 = vmatprep.subr.mxu0 0.0
        %1665 = vmatpush1.xpose.msra.mxu0 0.0
        %1666 = vmatprep.subr.mxu0 0.0
        %1667 = vmatpush1.xpose.msra.mxu0 0.0
        %1668 = vmatprep.subr.mxu0 0.0
        %1669 = vmatpush1.xpose.msra.mxu0 0.0
        %1670 = vmatprep.subr.mxu0 0.0
        %1671 = vmatpush1.xpose.msra.mxu0 0.0
        %1672 = vmatprep.subr.mxu0 0.0
        %1673 = vmatpush1.xpose.msra.mxu0 0.0
        %1674 = vmatprep.subr.mxu0 0.0
        %1675 = vmatpush1.xpose.msra.mxu0 0.0
        %1676 = vmatprep.subr.mxu0 0.0
        %1677 = vmatpush1.xpose.msra.mxu0 0.0
        %1678 = vmatprep.subr.mxu0 0.0
        %1679 = vmatpush1.xpose.msra.mxu0 0.0
        %1680 = vmatprep.subr.mxu0 0.0
        %1681 = vmatpush1.xpose.msra.mxu0 0.0
        %1682 = vmatprep.subr.mxu0 0.0
        %1683 = vmatpush1.xpose.msra.mxu0 0.0
        %1684 = vmatprep.subr.mxu0 0.0
        %1685 = vmatpush1.xpose.msra.mxu0 0.0
        %1686 = vmatprep.subr.mxu0 0.0
        %1687 = vmatpush1.xpose.msra.mxu0 0.0
        %1688 = vmatprep.subr.mxu0 0.0
        %1689 = vmatpush1.xpose.msra.mxu0 0.0
        %1690 = vmatprep.mubr.f32.mxu0 0.0
        %1691 = vmatmul.mubr.f32.gmra.mrb[0].mxu0 %v1624
        %v1692 = vpop.f32.mrb[0].mxu0
        %v1693 = vadd.f32 0.0, %v1692
        %v1694 = vpop.f32.mrb[0].mxu0
        %1695 = vdwg.mxu0
        %v1697 = vsel %vm1391, %v1351, 0
        %v1700 = vsel %vm1391, %v1375, 0
        %v1703 = vsel %vm1391, %v1376, 0
        %1705 = vmatprep.subr.mxu0 0.0
        %1706 = vmatpush1.xpose.msra.mxu0 %v1700
        %1707 = vmatprep.subr.mxu0 0.0
        %1708 = vmatpush1.xpose.msra.mxu0 %v1703
        %1709 = vmatprep.subr.mxu0 0.0
        %1710 = vmatpush1.xpose.msra.mxu0 0.0
        %1711 = vmatprep.subr.mxu0 0.0
        %1712 = vmatpush1.xpose.msra.mxu0 0.0
        %1713 = vmatprep.subr.mxu0 0.0
        %1714 = vmatpush1.xpose.msra.mxu0 0.0
        %1715 = vmatprep.subr.mxu0 0.0
        %1716 = vmatpush1.xpose.msra.mxu0 0.0
        %1717 = vmatprep.subr.mxu0 0.0
        %1718 = vmatpush1.xpose.msra.mxu0 0.0
        %1719 = vmatprep.subr.mxu0 0.0
        %1720 = vmatpush1.xpose.msra.mxu0 0.0
        %1721 = vmatprep.subr.mxu0 0.0
        %1722 = vmatpush1.xpose.msra.mxu0 0.0
        %1723 = vmatprep.subr.mxu0 0.0
        %1724 = vmatpush1.xpose.msra.mxu0 0.0
        %1725 = vmatprep.subr.mxu0 0.0
        %1726 = vmatpush1.xpose.msra.mxu0 0.0
        %1727 = vmatprep.subr.mxu0 0.0
        %1728 = vmatpush1.xpose.msra.mxu0 0.0
        %1729 = vmatprep.subr.mxu0 0.0
        %1730 = vmatpush1.xpose.msra.mxu0 0.0
        %1731 = vmatprep.subr.mxu0 0.0
        %1732 = vmatpush1.xpose.msra.mxu0 0.0
        %1733 = vmatprep.subr.mxu0 0.0
        %1734 = vmatpush1.xpose.msra.mxu0 0.0
        %1735 = vmatprep.subr.mxu0 0.0
        %1736 = vmatpush1.xpose.msra.mxu0 0.0
        %1737 = vmatprep.subr.mxu0 0.0
        %1738 = vmatpush1.xpose.msra.mxu0 0.0
        %1739 = vmatprep.subr.mxu0 0.0
        %1740 = vmatpush1.xpose.msra.mxu0 0.0
        %1741 = vmatprep.subr.mxu0 0.0
        %1742 = vmatpush1.xpose.msra.mxu0 0.0
        %1743 = vmatprep.subr.mxu0 0.0
        %1744 = vmatpush1.xpose.msra.mxu0 0.0
        %1745 = vmatprep.subr.mxu0 0.0
        %1746 = vmatpush1.xpose.msra.mxu0 0.0
        %1747 = vmatprep.subr.mxu0 0.0
        %1748 = vmatpush1.xpose.msra.mxu0 0.0
        %1749 = vmatprep.subr.mxu0 0.0
        %1750 = vmatpush1.xpose.msra.mxu0 0.0
        %1751 = vmatprep.subr.mxu0 0.0
        %1752 = vmatpush1.xpose.msra.mxu0 0.0
        %1753 = vmatprep.subr.mxu0 0.0
        %1754 = vmatpush1.xpose.msra.mxu0 0.0
        %1755 = vmatprep.subr.mxu0 0.0
        %1756 = vmatpush1.xpose.msra.mxu0 0.0
        %1757 = vmatprep.subr.mxu0 0.0
        %1758 = vmatpush1.xpose.msra.mxu0 0.0
        %1759 = vmatprep.subr.mxu0 0.0
        %1760 = vmatpush1.xpose.msra.mxu0 0.0
        %1761 = vmatprep.subr.mxu0 0.0
        %1762 = vmatpush1.xpose.msra.mxu0 0.0
        %1763 = vmatprep.subr.mxu0 0.0
        %1764 = vmatpush1.xpose.msra.mxu0 0.0
        %1765 = vmatprep.subr.mxu0 0.0
        %1766 = vmatpush1.xpose.msra.mxu0 0.0
        %1767 = vmatprep.subr.mxu0 0.0
        %1768 = vmatpush1.xpose.msra.mxu0 0.0
        %1769 = vmatprep.mubr.f32.mxu0 0.0
        %1770 = vmatmul.mubr.f32.gmra.mrb[0].mxu0 %v1697
        %v1771 = vpop.f32.mrb[0].mxu0
        %v1772 = vadd.f32 %v1468, %v1771
        %v1773 = vpop.f32.mrb[0].mxu0
        %1774 = vdwg.mxu0
        %v1776 = vsel %vm1391, %v1352, 0
        %1778 = vmatprep.subr.mxu0 0.0
        %1779 = vmatpush1.xpose.msra.mxu0 %v1700
        %1780 = vmatprep.subr.mxu0 0.0
        %1781 = vmatpush1.xpose.msra.mxu0 %v1703
        %1782 = vmatprep.subr.mxu0 0.0
        %1783 = vmatpush1.xpose.msra.mxu0 0.0
        %1784 = vmatprep.subr.mxu0 0.0
        %1785 = vmatpush1.xpose.msra.mxu0 0.0
        %1786 = vmatprep.subr.mxu0 0.0
        %1787 = vmatpush1.xpose.msra.mxu0 0.0
        %1788 = vmatprep.subr.mxu0 0.0
        %1789 = vmatpush1.xpose.msra.mxu0 0.0
        %1790 = vmatprep.subr.mxu0 0.0
        %1791 = vmatpush1.xpose.msra.mxu0 0.0
        %1792 = vmatprep.subr.mxu0 0.0
        %1793 = vmatpush1.xpose.msra.mxu0 0.0
        %1794 = vmatprep.subr.mxu0 0.0
        %1795 = vmatpush1.xpose.msra.mxu0 0.0
        %1796 = vmatprep.subr.mxu0 0.0
        %1797 = vmatpush1.xpose.msra.mxu0 0.0
        %1798 = vmatprep.subr.mxu0 0.0
        %1799 = vmatpush1.xpose.msra.mxu0 0.0
        %1800 = vmatprep.subr.mxu0 0.0
        %1801 = vmatpush1.xpose.msra.mxu0 0.0
        %1802 = vmatprep.subr.mxu0 0.0
        %1803 = vmatpush1.xpose.msra.mxu0 0.0
        %1804 = vmatprep.subr.mxu0 0.0
        %1805 = vmatpush1.xpose.msra.mxu0 0.0
        %1806 = vmatprep.subr.mxu0 0.0
        %1807 = vmatpush1.xpose.msra.mxu0 0.0
        %1808 = vmatprep.subr.mxu0 0.0
        %1809 = vmatpush1.xpose.msra.mxu0 0.0
        %1810 = vmatprep.subr.mxu0 0.0
        %1811 = vmatpush1.xpose.msra.mxu0 0.0
        %1812 = vmatprep.subr.mxu0 0.0
        %1813 = vmatpush1.xpose.msra.mxu0 0.0
        %1814 = vmatprep.subr.mxu0 0.0
        %1815 = vmatpush1.xpose.msra.mxu0 0.0
        %1816 = vmatprep.subr.mxu0 0.0
        %1817 = vmatpush1.xpose.msra.mxu0 0.0
        %1818 = vmatprep.subr.mxu0 0.0
        %1819 = vmatpush1.xpose.msra.mxu0 0.0
        %1820 = vmatprep.subr.mxu0 0.0
        %1821 = vmatpush1.xpose.msra.mxu0 0.0
        %1822 = vmatprep.subr.mxu0 0.0
        %1823 = vmatpush1.xpose.msra.mxu0 0.0
        %1824 = vmatprep.subr.mxu0 0.0
        %1825 = vmatpush1.xpose.msra.mxu0 0.0
        %1826 = vmatprep.subr.mxu0 0.0
        %1827 = vmatpush1.xpose.msra.mxu0 0.0
        %1828 = vmatprep.subr.mxu0 0.0
        %1829 = vmatpush1.xpose.msra.mxu0 0.0
        %1830 = vmatprep.subr.mxu0 0.0
        %1831 = vmatpush1.xpose.msra.mxu0 0.0
        %1832 = vmatprep.subr.mxu0 0.0
        %1833 = vmatpush1.xpose.msra.mxu0 0.0
        %1834 = vmatprep.subr.mxu0 0.0
        %1835 = vmatpush1.xpose.msra.mxu0 0.0
        %1836 = vmatprep.subr.mxu0 0.0
        %1837 = vmatpush1.xpose.msra.mxu0 0.0
        %1838 = vmatprep.subr.mxu0 0.0
        %1839 = vmatpush1.xpose.msra.mxu0 0.0
        %1840 = vmatprep.subr.mxu0 0.0
        %1841 = vmatpush1.xpose.msra.mxu0 0.0
        %1842 = vmatprep.mubr.f32.mxu0 0.0
        %1843 = vmatmul.mubr.f32.gmra.mrb[0].mxu0 %v1776
        %v1844 = vpop.f32.mrb[0].mxu0
        %v1845 = vadd.f32 %v1541, %v1844
        %v1846 = vpop.f32.mrb[0].mxu0
        %1847 = vdwg.mxu0
        %v1849 = vsel %vm1391, %v1353, 0
        %v1852 = vsel %vm1391, %v1377, 0
        %v1855 = vsel %vm1391, %v1378, 0
        %1857 = vmatprep.subr.mxu0 0.0
        %1858 = vmatpush1.xpose.msra.mxu0 %v1852
        %1859 = vmatprep.subr.mxu0 0.0
        %1860 = vmatpush1.xpose.msra.mxu0 %v1855
        %1861 = vmatprep.subr.mxu0 0.0
        %1862 = vmatpush1.xpose.msra.mxu0 0.0
        %1863 = vmatprep.subr.mxu0 0.0
        %1864 = vmatpush1.xpose.msra.mxu0 0.0
        %1865 = vmatprep.subr.mxu0 0.0
        %1866 = vmatpush1.xpose.msra.mxu0 0.0
        %1867 = vmatprep.subr.mxu0 0.0
        %1868 = vmatpush1.xpose.msra.mxu0 0.0
        %1869 = vmatprep.subr.mxu0 0.0
        %1870 = vmatpush1.xpose.msra.mxu0 0.0
        %1871 = vmatprep.subr.mxu0 0.0
        %1872 = vmatpush1.xpose.msra.mxu0 0.0
        %1873 = vmatprep.subr.mxu0 0.0
        %1874 = vmatpush1.xpose.msra.mxu0 0.0
        %1875 = vmatprep.subr.mxu0 0.0
        %1876 = vmatpush1.xpose.msra.mxu0 0.0
        %1877 = vmatprep.subr.mxu0 0.0
        %1878 = vmatpush1.xpose.msra.mxu0 0.0
        %1879 = vmatprep.subr.mxu0 0.0
        %1880 = vmatpush1.xpose.msra.mxu0 0.0
        %1881 = vmatprep.subr.mxu0 0.0
        %1882 = vmatpush1.xpose.msra.mxu0 0.0
        %1883 = vmatprep.subr.mxu0 0.0
        %1884 = vmatpush1.xpose.msra.mxu0 0.0
        %1885 = vmatprep.subr.mxu0 0.0
        %1886 = vmatpush1.xpose.msra.mxu0 0.0
        %1887 = vmatprep.subr.mxu0 0.0
        %1888 = vmatpush1.xpose.msra.mxu0 0.0
        %1889 = vmatprep.subr.mxu0 0.0
        %1890 = vmatpush1.xpose.msra.mxu0 0.0
        %1891 = vmatprep.subr.mxu0 0.0
        %1892 = vmatpush1.xpose.msra.mxu0 0.0
        %1893 = vmatprep.subr.mxu0 0.0
        %1894 = vmatpush1.xpose.msra.mxu0 0.0
        %1895 = vmatprep.subr.mxu0 0.0
        %1896 = vmatpush1.xpose.msra.mxu0 0.0
        %1897 = vmatprep.subr.mxu0 0.0
        %1898 = vmatpush1.xpose.msra.mxu0 0.0
        %1899 = vmatprep.subr.mxu0 0.0
        %1900 = vmatpush1.xpose.msra.mxu0 0.0
        %1901 = vmatprep.subr.mxu0 0.0
        %1902 = vmatpush1.xpose.msra.mxu0 0.0
        %1903 = vmatprep.subr.mxu0 0.0
        %1904 = vmatpush1.xpose.msra.mxu0 0.0
        %1905 = vmatprep.subr.mxu0 0.0
        %1906 = vmatpush1.xpose.msra.mxu0 0.0
        %1907 = vmatprep.subr.mxu0 0.0
        %1908 = vmatpush1.xpose.msra.mxu0 0.0
        %1909 = vmatprep.subr.mxu0 0.0
        %1910 = vmatpush1.xpose.msra.mxu0 0.0
        %1911 = vmatprep.subr.mxu0 0.0
        %1912 = vmatpush1.xpose.msra.mxu0 0.0
        %1913 = vmatprep.subr.mxu0 0.0
        %1914 = vmatpush1.xpose.msra.mxu0 0.0
        %1915 = vmatprep.subr.mxu0 0.0
        %1916 = vmatpush1.xpose.msra.mxu0 0.0
        %1917 = vmatprep.subr.mxu0 0.0
        %1918 = vmatpush1.xpose.msra.mxu0 0.0
        %1919 = vmatprep.subr.mxu0 0.0
        %1920 = vmatpush1.xpose.msra.mxu0 0.0
        %1921 = vmatprep.mubr.f32.mxu0 0.0
        %1922 = vmatmul.mubr.f32.gmra.mrb[0].mxu0 %v1849
        %v1923 = vpop.f32.mrb[0].mxu0
        %v1924 = vadd.f32 %v1620, %v1923
        %v1925 = vpop.f32.mrb[0].mxu0
        %1926 = vdwg.mxu0
        %v1928 = vsel %vm1391, %v1354, 0
        %1930 = vmatprep.subr.mxu0 0.0
        %1931 = vmatpush1.xpose.msra.mxu0 %v1852
        %1932 = vmatprep.subr.mxu0 0.0
        %1933 = vmatpush1.xpose.msra.mxu0 %v1855
        %1934 = vmatprep.subr.mxu0 0.0
        %1935 = vmatpush1.xpose.msra.mxu0 0.0
        %1936 = vmatprep.subr.mxu0 0.0
        %1937 = vmatpush1.xpose.msra.mxu0 0.0
        %1938 = vmatprep.subr.mxu0 0.0
        %1939 = vmatpush1.xpose.msra.mxu0 0.0
        %1940 = vmatprep.subr.mxu0 0.0
        %1941 = vmatpush1.xpose.msra.mxu0 0.0
        %1942 = vmatprep.subr.mxu0 0.0
        %1943 = vmatpush1.xpose.msra.mxu0 0.0
        %1944 = vmatprep.subr.mxu0 0.0
        %1945 = vmatpush1.xpose.msra.mxu0 0.0
        %1946 = vmatprep.subr.mxu0 0.0
        %1947 = vmatpush1.xpose.msra.mxu0 0.0
        %1948 = vmatprep.subr.mxu0 0.0
        %1949 = vmatpush1.xpose.msra.mxu0 0.0
        %1950 = vmatprep.subr.mxu0 0.0
        %1951 = vmatpush1.xpose.msra.mxu0 0.0
        %1952 = vmatprep.subr.mxu0 0.0
        %1953 = vmatpush1.xpose.msra.mxu0 0.0
        %1954 = vmatprep.subr.mxu0 0.0
        %1955 = vmatpush1.xpose.msra.mxu0 0.0
        %1956 = vmatprep.subr.mxu0 0.0
        %1957 = vmatpush1.xpose.msra.mxu0 0.0
        %1958 = vmatprep.subr.mxu0 0.0
        %1959 = vmatpush1.xpose.msra.mxu0 0.0
        %1960 = vmatprep.subr.mxu0 0.0
        %1961 = vmatpush1.xpose.msra.mxu0 0.0
        %1962 = vmatprep.subr.mxu0 0.0
        %1963 = vmatpush1.xpose.msra.mxu0 0.0
        %1964 = vmatprep.subr.mxu0 0.0
        %1965 = vmatpush1.xpose.msra.mxu0 0.0
        %1966 = vmatprep.subr.mxu0 0.0
        %1967 = vmatpush1.xpose.msra.mxu0 0.0
        %1968 = vmatprep.subr.mxu0 0.0
        %1969 = vmatpush1.xpose.msra.mxu0 0.0
        %1970 = vmatprep.subr.mxu0 0.0
        %1971 = vmatpush1.xpose.msra.mxu0 0.0
        %1972 = vmatprep.subr.mxu0 0.0
        %1973 = vmatpush1.xpose.msra.mxu0 0.0
        %1974 = vmatprep.subr.mxu0 0.0
        %1975 = vmatpush1.xpose.msra.mxu0 0.0
        %1976 = vmatprep.subr.mxu0 0.0
        %1977 = vmatpush1.xpose.msra.mxu0 0.0
        %1978 = vmatprep.subr.mxu0 0.0
        %1979 = vmatpush1.xpose.msra.mxu0 0.0
        %1980 = vmatprep.subr.mxu0 0.0
        %1981 = vmatpush1.xpose.msra.mxu0 0.0
        %1982 = vmatprep.subr.mxu0 0.0
        %1983 = vmatpush1.xpose.msra.mxu0 0.0
        %1984 = vmatprep.subr.mxu0 0.0
        %1985 = vmatpush1.xpose.msra.mxu0 0.0
        %1986 = vmatprep.subr.mxu0 0.0
        %1987 = vmatpush1.xpose.msra.mxu0 0.0
        %1988 = vmatprep.subr.mxu0 0.0
        %1989 = vmatpush1.xpose.msra.mxu0 0.0
        %1990 = vmatprep.subr.mxu0 0.0
        %1991 = vmatpush1.xpose.msra.mxu0 0.0
        %1992 = vmatprep.subr.mxu0 0.0
        %1993 = vmatpush1.xpose.msra.mxu0 0.0
        %1994 = vmatprep.mubr.f32.mxu0 0.0
        %1995 = vmatmul.mubr.f32.gmra.mrb[0].mxu0 %v1928
        %v1996 = vpop.f32.mrb[0].mxu0
        %v1997 = vadd.f32 %v1693, %v1996
        %v1998 = vpop.f32.mrb[0].mxu0
        %1999 = vdwg.mxu0
        %s2000 = smul.u32 %s28, 8
        %v2001 = vlaneseq
        %v2002 = vshrl.u32 %v2001, 7
        %v2003 = vstv %s2000
        %v2004 = vadd.s32 %v2003, %v2002
        %v2005 = vlaneseq
        %v2006 = vand.u32 %v2005, 127
        %vm2007 = vcmp.le.s32.totalorder %v2006, %v2004
        %v2008 = vsel %vm2007, 1, 0
        %vm2009 = vcmp.eq.s32.totalorder %v2008, 1
        %v2010 = vsel %vm2009, %v1772, -1e+30
        %v2011 = vsel %vm2009, %v1845, -1e+30
        %v2012 = vsel %vm2009, %v1924, -1e+30
        %v2013 = vsel %vm2009, %v1997, -1e+30
        %vm2014 = vcmask 130048
        %v2015 = vsel %vm2014, %v2010, -inf
        %2016 = vmax.xlane.f32.xlu0 %v2015
        %v2017 = vpop.xlane.xlu0 %2016
        %v2018 = vsel %vm2014, %v2011, -inf
        %2019 = vmax.xlane.f32.xlu0 %v2018
        %v2020 = vpop.xlane.xlu0 %2019
        %v2021 = vsel %vm2014, %v2012, -inf
        %2022 = vmax.xlane.f32.xlu0 %v2021
        %v2023 = vpop.xlane.xlu0 %2022
        %v2024 = vsel %vm2014, %v2013, -inf
        %2025 = vmax.xlane.f32.xlu0 %v2024
        %v2026 = vpop.xlane.xlu0 %2025
        %v2027 = vsub.f32 %v2010, %v2017
        %v2028 = vsub.f32 %v2011, %v2020
        %v2029 = vsub.f32 %v2012, %v2023
        %v2030 = vsub.f32 %v2013, %v2026
        %v2031 = vmul.f32 %v2027, 1.442695
        %v2032 = vpow.pop %v2031
        %v2033 = vmul.f32 %v2028, 1.442695
        %v2034 = vpow.pop %v2033
        %v2035 = vmul.f32 %v2029, 1.442695
        %v2036 = vpow.pop %v2035
        %v2037 = vmul.f32 %v2030, 1.442695
        %v2038 = vpow.pop %v2037
        %v2039 = vsel %vm2014, %v2032, 0.0
        %2040 = vadd.xlane.f32.xlu0 %v2039
        %v2041 = vpop.xlane.xlu0 %2040
        %v2042 = vsel %vm2014, %v2034, 0.0
        %2043 = vadd.xlane.f32.xlu0 %v2042
        %v2044 = vpop.xlane.xlu0 %2043
        %v2045 = vsel %vm2014, %v2036, 0.0
        %2046 = vadd.xlane.f32.xlu0 %v2045
        %v2047 = vpop.xlane.xlu0 %2046
        %v2048 = vsel %vm2014, %v2038, 0.0
        %2049 = vadd.xlane.f32.xlu0 %v2048
        %v2050 = vpop.xlane.xlu0 %2049
        %v2051 = vrcp.pop %v2041
        %v2052 = vrcp.pop %v2044
        %v2053 = vrcp.pop %v2047
        %v2054 = vrcp.pop %v2050
        %v2055 = vmul.f32 %v2032, %v2051
        %v2056 = vmul.f32 %v2034, %v2052
        %v2057 = vmul.f32 %v2036, %v2053
        %v2058 = vmul.f32 %v2038, %v2054
        %v2060 = vsel %vm2014, %v2055, 0
        %2062 = vmatprep.subr.mxu0 0.0
        %2063 = vmatpush1.msra.mxu0 %v1276
        %2064 = vmatprep.subr.mxu0 0.0
        %2065 = vmatpush1.msra.mxu0 %v1279
        %2066 = vmatprep.subr.mxu0 0.0
        %2067 = vmatpush1.msra.mxu0 0.0
        %2068 = vmatprep.subr.mxu0 0.0
        %2069 = vmatpush1.msra.mxu0 0.0
        %2070 = vmatprep.subr.mxu0 0.0
        %2071 = vmatpush1.msra.mxu0 0.0
        %2072 = vmatprep.subr.mxu0 0.0
        %2073 = vmatpush1.msra.mxu0 0.0
        %2074 = vmatprep.subr.mxu0 0.0
        %2075 = vmatpush1.msra.mxu0 0.0
        %2076 = vmatprep.subr.mxu0 0.0
        %2077 = vmatpush1.msra.mxu0 0.0
        %2078 = vmatprep.subr.mxu0 0.0
        %2079 = vmatpush1.msra.mxu0 0.0
        %2080 = vmatprep.subr.mxu0 0.0
        %2081 = vmatpush1.msra.mxu0 0.0
        %2082 = vmatprep.subr.mxu0 0.0
        %2083 = vmatpush1.msra.mxu0 0.0
        %2084 = vmatprep.subr.mxu0 0.0
        %2085 = vmatpush1.msra.mxu0 0.0
        %2086 = vmatprep.subr.mxu0 0.0
        %2087 = vmatpush1.msra.mxu0 0.0
        %2088 = vmatprep.subr.mxu0 0.0
        %2089 = vmatpush1.msra.mxu0 0.0
        %2090 = vmatprep.subr.mxu0 0.0
        %2091 = vmatpush1.msra.mxu0 0.0
        %2092 = vmatprep.subr.mxu0 0.0
        %2093 = vmatpush1.msra.mxu0 0.0
        %2094 = vmatprep.subr.mxu0 0.0
        %2095 = vmatpush1.msra.mxu0 0.0
        %2096 = vmatprep.subr.mxu0 0.0
        %2097 = vmatpush1.msra.mxu0 0.0
        %2098 = vmatprep.subr.mxu0 0.0
        %2099 = vmatpush1.msra.mxu0 0.0
        %2100 = vmatprep.subr.mxu0 0.0
        %2101 = vmatpush1.msra.mxu0 0.0
        %2102 = vmatprep.subr.mxu0 0.0
        %2103 = vmatpush1.msra.mxu0 0.0
        %2104 = vmatprep.subr.mxu0 0.0
        %2105 = vmatpush1.msra.mxu0 0.0
        %2106 = vmatprep.subr.mxu0 0.0
        %2107 = vmatpush1.msra.mxu0 0.0
        %2108 = vmatprep.subr.mxu0 0.0
        %2109 = vmatpush1.msra.mxu0 0.0
        %2110 = vmatprep.subr.mxu0 0.0
        %2111 = vmatpush1.msra.mxu0 0.0
        %2112 = vmatprep.subr.mxu0 0.0
        %2113 = vmatpush1.msra.mxu0 0.0
        %2114 = vmatprep.subr.mxu0 0.0
        %2115 = vmatpush1.msra.mxu0 0.0
        %2116 = vmatprep.subr.mxu0 0.0
        %2117 = vmatpush1.msra.mxu0 0.0
        %2118 = vmatprep.subr.mxu0 0.0
        %2119 = vmatpush1.msra.mxu0 0.0
        %2120 = vmatprep.subr.mxu0 0.0
        %2121 = vmatpush1.msra.mxu0 0.0
        %2122 = vmatprep.subr.mxu0 0.0
        %2123 = vmatpush1.msra.mxu0 0.0
        %2124 = vmatprep.subr.mxu0 0.0
        %2125 = vmatpush1.msra.mxu0 0.0
        %2126 = vmatprep.mubr.f32.mxu0 0.0
        %2127 = vmatmul.mubr.f32.gmra.mrb[0].mxu0 %v2060
        %v2128 = vpop.f32.mrb[0].mxu0
        %v2129 = vadd.f32 0.0, %v2128
        %v2130 = vpop.f32.mrb[0].mxu0
        %2131 = vdwg.mxu0
        %v2133 = vsel %vm2014, %v2056, 0
        %2135 = vmatprep.subr.mxu0 0.0
        %2136 = vmatpush1.msra.mxu0 %v1276
        %2137 = vmatprep.subr.mxu0 0.0
        %2138 = vmatpush1.msra.mxu0 %v1279
        %2139 = vmatprep.subr.mxu0 0.0
        %2140 = vmatpush1.msra.mxu0 0.0
        %2141 = vmatprep.subr.mxu0 0.0
        %2142 = vmatpush1.msra.mxu0 0.0
        %2143 = vmatprep.subr.mxu0 0.0
        %2144 = vmatpush1.msra.mxu0 0.0
        %2145 = vmatprep.subr.mxu0 0.0
        %2146 = vmatpush1.msra.mxu0 0.0
        %2147 = vmatprep.subr.mxu0 0.0
        %2148 = vmatpush1.msra.mxu0 0.0
        %2149 = vmatprep.subr.mxu0 0.0
        %2150 = vmatpush1.msra.mxu0 0.0
        %2151 = vmatprep.subr.mxu0 0.0
        %2152 = vmatpush1.msra.mxu0 0.0
        %2153 = vmatprep.subr.mxu0 0.0
        %2154 = vmatpush1.msra.mxu0 0.0
        %2155 = vmatprep.subr.mxu0 0.0
        %2156 = vmatpush1.msra.mxu0 0.0
        %2157 = vmatprep.subr.mxu0 0.0
        %2158 = vmatpush1.msra.mxu0 0.0
        %2159 = vmatprep.subr.mxu0 0.0
        %2160 = vmatpush1.msra.mxu0 0.0
        %2161 = vmatprep.subr.mxu0 0.0
        %2162 = vmatpush1.msra.mxu0 0.0
        %2163 = vmatprep.subr.mxu0 0.0
        %2164 = vmatpush1.msra.mxu0 0.0
        %2165 = vmatprep.subr.mxu0 0.0
        %2166 = vmatpush1.msra.mxu0 0.0
        %2167 = vmatprep.subr.mxu0 0.0
        %2168 = vmatpush1.msra.mxu0 0.0
        %2169 = vmatprep.subr.mxu0 0.0
        %2170 = vmatpush1.msra.mxu0 0.0
        %2171 = vmatprep.subr.mxu0 0.0
        %2172 = vmatpush1.msra.mxu0 0.0
        %2173 = vmatprep.subr.mxu0 0.0
        %2174 = vmatpush1.msra.mxu0 0.0
        %2175 = vmatprep.subr.mxu0 0.0
        %2176 = vmatpush1.msra.mxu0 0.0
        %2177 = vmatprep.subr.mxu0 0.0
        %2178 = vmatpush1.msra.mxu0 0.0
        %2179 = vmatprep.subr.mxu0 0.0
        %2180 = vmatpush1.msra.mxu0 0.0
        %2181 = vmatprep.subr.mxu0 0.0
        %2182 = vmatpush1.msra.mxu0 0.0
        %2183 = vmatprep.subr.mxu0 0.0
        %2184 = vmatpush1.msra.mxu0 0.0
        %2185 = vmatprep.subr.mxu0 0.0
        %2186 = vmatpush1.msra.mxu0 0.0
        %2187 = vmatprep.subr.mxu0 0.0
        %2188 = vmatpush1.msra.mxu0 0.0
        %2189 = vmatprep.subr.mxu0 0.0
        %2190 = vmatpush1.msra.mxu0 0.0
        %2191 = vmatprep.subr.mxu0 0.0
        %2192 = vmatpush1.msra.mxu0 0.0
        %2193 = vmatprep.subr.mxu0 0.0
        %2194 = vmatpush1.msra.mxu0 0.0
        %2195 = vmatprep.subr.mxu0 0.0
        %2196 = vmatpush1.msra.mxu0 0.0
        %2197 = vmatprep.subr.mxu0 0.0
        %2198 = vmatpush1.msra.mxu0 0.0
        %2199 = vmatprep.mubr.f32.mxu0 0.0
        %2200 = vmatmul.mubr.f32.gmra.mrb[0].mxu0 %v2133
        %v2201 = vpop.f32.mrb[0].mxu0
        %v2202 = vadd.f32 0.0, %v2201
        %v2203 = vpop.f32.mrb[0].mxu0
        %2204 = vdwg.mxu0
        %v2206 = vsel %vm2014, %v2057, 0
        %2208 = vmatprep.subr.mxu0 0.0
        %2209 = vmatpush1.msra.mxu0 %v1329
        %2210 = vmatprep.subr.mxu0 0.0
        %2211 = vmatpush1.msra.mxu0 %v1332
        %2212 = vmatprep.subr.mxu0 0.0
        %2213 = vmatpush1.msra.mxu0 0.0
        %2214 = vmatprep.subr.mxu0 0.0
        %2215 = vmatpush1.msra.mxu0 0.0
        %2216 = vmatprep.subr.mxu0 0.0
        %2217 = vmatpush1.msra.mxu0 0.0
        %2218 = vmatprep.subr.mxu0 0.0
        %2219 = vmatpush1.msra.mxu0 0.0
        %2220 = vmatprep.subr.mxu0 0.0
        %2221 = vmatpush1.msra.mxu0 0.0
        %2222 = vmatprep.subr.mxu0 0.0
        %2223 = vmatpush1.msra.mxu0 0.0
        %2224 = vmatprep.subr.mxu0 0.0
        %2225 = vmatpush1.msra.mxu0 0.0
        %2226 = vmatprep.subr.mxu0 0.0
        %2227 = vmatpush1.msra.mxu0 0.0
        %2228 = vmatprep.subr.mxu0 0.0
        %2229 = vmatpush1.msra.mxu0 0.0
        %2230 = vmatprep.subr.mxu0 0.0
        %2231 = vmatpush1.msra.mxu0 0.0
        %2232 = vmatprep.subr.mxu0 0.0
        %2233 = vmatpush1.msra.mxu0 0.0
        %2234 = vmatprep.subr.mxu0 0.0
        %2235 = vmatpush1.msra.mxu0 0.0
        %2236 = vmatprep.subr.mxu0 0.0
        %2237 = vmatpush1.msra.mxu0 0.0
        %2238 = vmatprep.subr.mxu0 0.0
        %2239 = vmatpush1.msra.mxu0 0.0
        %2240 = vmatprep.subr.mxu0 0.0
        %2241 = vmatpush1.msra.mxu0 0.0
        %2242 = vmatprep.subr.mxu0 0.0
        %2243 = vmatpush1.msra.mxu0 0.0
        %2244 = vmatprep.subr.mxu0 0.0
        %2245 = vmatpush1.msra.mxu0 0.0
        %2246 = vmatprep.subr.mxu0 0.0
        %2247 = vmatpush1.msra.mxu0 0.0
        %2248 = vmatprep.subr.mxu0 0.0
        %2249 = vmatpush1.msra.mxu0 0.0
        %2250 = vmatprep.subr.mxu0 0.0
        %2251 = vmatpush1.msra.mxu0 0.0
        %2252 = vmatprep.subr.mxu0 0.0
        %2253 = vmatpush1.msra.mxu0 0.0
        %2254 = vmatprep.subr.mxu0 0.0
        %2255 = vmatpush1.msra.mxu0 0.0
        %2256 = vmatprep.subr.mxu0 0.0
        %2257 = vmatpush1.msra.mxu0 0.0
        %2258 = vmatprep.subr.mxu0 0.0
        %2259 = vmatpush1.msra.mxu0 0.0
        %2260 = vmatprep.subr.mxu0 0.0
        %2261 = vmatpush1.msra.mxu0 0.0
        %2262 = vmatprep.subr.mxu0 0.0
        %2263 = vmatpush1.msra.mxu0 0.0
        %2264 = vmatprep.subr.mxu0 0.0
        %2265 = vmatpush1.msra.mxu0 0.0
        %2266 = vmatprep.subr.mxu0 0.0
        %2267 = vmatpush1.msra.mxu0 0.0
        %2268 = vmatprep.subr.mxu0 0.0
        %2269 = vmatpush1.msra.mxu0 0.0
        %2270 = vmatprep.subr.mxu0 0.0
        %2271 = vmatpush1.msra.mxu0 0.0
        %2272 = vmatprep.mubr.f32.mxu0 0.0
        %2273 = vmatmul.mubr.f32.gmra.mrb[0].mxu0 %v2206
        %v2274 = vpop.f32.mrb[0].mxu0
        %v2275 = vadd.f32 0.0, %v2274
        %v2276 = vpop.f32.mrb[0].mxu0
        %2277 = vdwg.mxu0
        %v2279 = vsel %vm2014, %v2058, 0
        %2281 = vmatprep.subr.mxu0 0.0
        %2282 = vmatpush1.msra.mxu0 %v1329
        %2283 = vmatprep.subr.mxu0 0.0
        %2284 = vmatpush1.msra.mxu0 %v1332
        %2285 = vmatprep.subr.mxu0 0.0
        %2286 = vmatpush1.msra.mxu0 0.0
        %2287 = vmatprep.subr.mxu0 0.0
        %2288 = vmatpush1.msra.mxu0 0.0
        %2289 = vmatprep.subr.mxu0 0.0
        %2290 = vmatpush1.msra.mxu0 0.0
        %2291 = vmatprep.subr.mxu0 0.0
        %2292 = vmatpush1.msra.mxu0 0.0
        %2293 = vmatprep.subr.mxu0 0.0
        %2294 = vmatpush1.msra.mxu0 0.0
        %2295 = vmatprep.subr.mxu0 0.0
        %2296 = vmatpush1.msra.mxu0 0.0
        %2297 = vmatprep.subr.mxu0 0.0
        %2298 = vmatpush1.msra.mxu0 0.0
        %2299 = vmatprep.subr.mxu0 0.0
        %2300 = vmatpush1.msra.mxu0 0.0
        %2301 = vmatprep.subr.mxu0 0.0
        %2302 = vmatpush1.msra.mxu0 0.0
        %2303 = vmatprep.subr.mxu0 0.0
        %2304 = vmatpush1.msra.mxu0 0.0
        %2305 = vmatprep.subr.mxu0 0.0
        %2306 = vmatpush1.msra.mxu0 0.0
        %2307 = vmatprep.subr.mxu0 0.0
        %2308 = vmatpush1.msra.mxu0 0.0
        %2309 = vmatprep.subr.mxu0 0.0
        %2310 = vmatpush1.msra.mxu0 0.0
        %2311 = vmatprep.subr.mxu0 0.0
        %2312 = vmatpush1.msra.mxu0 0.0
        %2313 = vmatprep.subr.mxu0 0.0
        %2314 = vmatpush1.msra.mxu0 0.0
        %2315 = vmatprep.subr.mxu0 0.0
        %2316 = vmatpush1.msra.mxu0 0.0
        %2317 = vmatprep.subr.mxu0 0.0
        %2318 = vmatpush1.msra.mxu0 0.0
        %2319 = vmatprep.subr.mxu0 0.0
        %2320 = vmatpush1.msra.mxu0 0.0
        %2321 = vmatprep.subr.mxu0 0.0
        %2322 = vmatpush1.msra.mxu0 0.0
        %2323 = vmatprep.subr.mxu0 0.0
        %2324 = vmatpush1.msra.mxu0 0.0
        %2325 = vmatprep.subr.mxu0 0.0
        %2326 = vmatpush1.msra.mxu0 0.0
        %2327 = vmatprep.subr.mxu0 0.0
        %2328 = vmatpush1.msra.mxu0 0.0
        %2329 = vmatprep.subr.mxu0 0.0
        %2330 = vmatpush1.msra.mxu0 0.0
        %2331 = vmatprep.subr.mxu0 0.0
        %2332 = vmatpush1.msra.mxu0 0.0
        %2333 = vmatprep.subr.mxu0 0.0
        %2334 = vmatpush1.msra.mxu0 0.0
        %2335 = vmatprep.subr.mxu0 0.0
        %2336 = vmatpush1.msra.mxu0 0.0
        %2337 = vmatprep.subr.mxu0 0.0
        %2338 = vmatpush1.msra.mxu0 0.0
        %2339 = vmatprep.subr.mxu0 0.0
        %2340 = vmatpush1.msra.mxu0 0.0
        %2341 = vmatprep.subr.mxu0 0.0
        %2342 = vmatpush1.msra.mxu0 0.0
        %2343 = vmatprep.subr.mxu0 0.0
        %2344 = vmatpush1.msra.mxu0 0.0
        %2345 = vmatprep.mubr.f32.mxu0 0.0
        %2346 = vmatmul.mubr.f32.gmra.mrb[0].mxu0 %v2279
        %v2347 = vpop.f32.mrb[0].mxu0
        %v2348 = vadd.f32 0.0, %v2347
        %v2349 = vpop.f32.mrb[0].mxu0
        %2350 = vdwg.mxu0
        %v2351 = vpack.c.bf16 %v2129, %v2129
        %v2352 = vpack.c.bf16 %v2202, %v2202
        %v2353 = vpack.c.bf16 %v2275, %v2275
        %v2354 = vpack.c.bf16 %v2348, %v2348
        %v2355 = vld [vmem:[%s11] sm:$0xf]
        %v2356 = vld [vmem:[%s11 + $0x4] sm:$0xf]
        %v2357 = vld [vmem:[%s11 + $0x8] sm:$0xf]
        %v2358 = vld [vmem:[%s11 + $0xc] sm:$0xf]
        %vm2359 = vcmask 64512
        %v2361 = vsel %vm2359, %v2351, 0
        %vm2363 = vcmask 1043456
        %v2365 = vsel %vm2363, %v2355, 0
        %2367 = vmatprep.subr.bf16.mxu0 0
        %2368 = vmatpush1.bf16.msra.mxu0 %v2365
        %2369 = vmatprep.subr.bf16.mxu0 0
        %2370 = vmatpush1.bf16.msra.mxu0 0
        %2371 = vmatprep.subr.bf16.mxu0 0
        %2372 = vmatpush1.bf16.msra.mxu0 0
        %2373 = vmatprep.subr.bf16.mxu0 0
        %2374 = vmatpush1.bf16.msra.mxu0 0
        %2375 = vmatprep.subr.bf16.mxu0 0
        %2376 = vmatpush1.bf16.msra.mxu0 0
        %2377 = vmatprep.subr.bf16.mxu0 0
        %2378 = vmatpush1.bf16.msra.mxu0 0
        %2379 = vmatprep.subr.bf16.mxu0 0
        %2380 = vmatpush1.bf16.msra.mxu0 0
        %2381 = vmatprep.subr.bf16.mxu0 0
        %2382 = vmatpush1.bf16.msra.mxu0 0
        %2383 = vmatprep.subr.bf16.mxu0 0
        %2384 = vmatpush1.bf16.msra.mxu0 0
        %2385 = vmatprep.subr.bf16.mxu0 0
        %2386 = vmatpush1.bf16.msra.mxu0 0
        %2387 = vmatprep.subr.bf16.mxu0 0
        %2388 = vmatpush1.bf16.msra.mxu0 0
        %2389 = vmatprep.subr.bf16.mxu0 0
        %2390 = vmatpush1.bf16.msra.mxu0 0
        %2391 = vmatprep.subr.bf16.mxu0 0
        %2392 = vmatpush1.bf16.msra.mxu0 0
        %2393 = vmatprep.subr.bf16.mxu0 0
        %2394 = vmatpush1.bf16.msra.mxu0 0
        %2395 = vmatprep.subr.bf16.mxu0 0
        %2396 = vmatpush1.bf16.msra.mxu0 0
        %2397 = vmatprep.subr.bf16.mxu0 0
        %2398 = vmatpush1.bf16.msra.mxu0 0
        %2399 = vmatprep.mubr.bf16.mxu0 0
        %2400 = vmatmul.mubr.bf16.gmra.mrb[0].mxu0 %v2361
        %v2401 = vpop.f32.mrb[0].mxu0
        %v2402 = vadd.f32 0.0, %v2401
        %v2403 = vpop.f32.mrb[0].mxu0
        %v2404 = vpop.f32.mrb[0].mxu0
        %v2405 = vpop.f32.mrb[0].mxu0
        %2406 = vdwg.mxu0
        %v2408 = vsel %vm2359, %v2352, 0
        %v2411 = vsel %vm2363, %v2356, 0
        %2413 = vmatprep.subr.bf16.mxu0 0
        %2414 = vmatpush1.bf16.msra.mxu0 %v2411
        %2415 = vmatprep.subr.bf16.mxu0 0
        %2416 = vmatpush1.bf16.msra.mxu0 0
        %2417 = vmatprep.subr.bf16.mxu0 0
        %2418 = vmatpush1.bf16.msra.mxu0 0
        %2419 = vmatprep.subr.bf16.mxu0 0
        %2420 = vmatpush1.bf16.msra.mxu0 0
        %2421 = vmatprep.subr.bf16.mxu0 0
        %2422 = vmatpush1.bf16.msra.mxu0 0
        %2423 = vmatprep.subr.bf16.mxu0 0
        %2424 = vmatpush1.bf16.msra.mxu0 0
        %2425 = vmatprep.subr.bf16.mxu0 0
        %2426 = vmatpush1.bf16.msra.mxu0 0
        %2427 = vmatprep.subr.bf16.mxu0 0
        %2428 = vmatpush1.bf16.msra.mxu0 0
        %2429 = vmatprep.subr.bf16.mxu0 0
        %2430 = vmatpush1.bf16.msra.mxu0 0
        %2431 = vmatprep.subr.bf16.mxu0 0
        %2432 = vmatpush1.bf16.msra.mxu0 0
        %2433 = vmatprep.subr.bf16.mxu0 0
        %2434 = vmatpush1.bf16.msra.mxu0 0
        %2435 = vmatprep.subr.bf16.mxu0 0
        %2436 = vmatpush1.bf16.msra.mxu0 0
        %2437 = vmatprep.subr.bf16.mxu0 0
        %2438 = vmatpush1.bf16.msra.mxu0 0
        %2439 = vmatprep.subr.bf16.mxu0 0
        %2440 = vmatpush1.bf16.msra.mxu0 0
        %2441 = vmatprep.subr.bf16.mxu0 0
        %2442 = vmatpush1.bf16.msra.mxu0 0
        %2443 = vmatprep.subr.bf16.mxu0 0
        %2444 = vmatpush1.bf16.msra.mxu0 0
        %2445 = vmatprep.mubr.bf16.mxu0 0
        %2446 = vmatmul.mubr.bf16.gmra.mrb[0].mxu0 %v2408
        %v2447 = vpop.f32.mrb[0].mxu0
        %v2448 = vadd.f32 0.0, %v2447
        %v2449 = vpop.f32.mrb[0].mxu0
        %v2450 = vpop.f32.mrb[0].mxu0
        %v2451 = vpop.f32.mrb[0].mxu0
        %2452 = vdwg.mxu0
        %v2454 = vsel %vm2359, %v2353, 0
        %v2457 = vsel %vm2363, %v2357, 0
        %2459 = vmatprep.subr.bf16.mxu0 0
        %2460 = vmatpush1.bf16.msra.mxu0 %v2457
        %2461 = vmatprep.subr.bf16.mxu0 0
        %2462 = vmatpush1.bf16.msra.mxu0 0
        %2463 = vmatprep.subr.bf16.mxu0 0
        %2464 = vmatpush1.bf16.msra.mxu0 0
        %2465 = vmatprep.subr.bf16.mxu0 0
        %2466 = vmatpush1.bf16.msra.mxu0 0
        %2467 = vmatprep.subr.bf16.mxu0 0
        %2468 = vmatpush1.bf16.msra.mxu0 0
        %2469 = vmatprep.subr.bf16.mxu0 0
        %2470 = vmatpush1.bf16.msra.mxu0 0
        %2471 = vmatprep.subr.bf16.mxu0 0
        %2472 = vmatpush1.bf16.msra.mxu0 0
        %2473 = vmatprep.subr.bf16.mxu0 0
        %2474 = vmatpush1.bf16.msra.mxu0 0
        %2475 = vmatprep.subr.bf16.mxu0 0
        %2476 = vmatpush1.bf16.msra.mxu0 0
        %2477 = vmatprep.subr.bf16.mxu0 0
        %2478 = vmatpush1.bf16.msra.mxu0 0
        %2479 = vmatprep.subr.bf16.mxu0 0
        %2480 = vmatpush1.bf16.msra.mxu0 0
        %2481 = vmatprep.subr.bf16.mxu0 0
        %2482 = vmatpush1.bf16.msra.mxu0 0
        %2483 = vmatprep.subr.bf16.mxu0 0
        %2484 = vmatpush1.bf16.msra.mxu0 0
        %2485 = vmatprep.subr.bf16.mxu0 0
        %2486 = vmatpush1.bf16.msra.mxu0 0
        %2487 = vmatprep.subr.bf16.mxu0 0
        %2488 = vmatpush1.bf16.msra.mxu0 0
        %2489 = vmatprep.subr.bf16.mxu0 0
        %2490 = vmatpush1.bf16.msra.mxu0 0
        %2491 = vmatprep.mubr.bf16.mxu0 0
        %2492 = vmatmul.mubr.bf16.gmra.mrb[0].mxu0 %v2454
        %v2493 = vpop.f32.mrb[0].mxu0
        %v2494 = vadd.f32 0.0, %v2493
        %v2495 = vpop.f32.mrb[0].mxu0
        %v2496 = vpop.f32.mrb[0].mxu0
        %v2497 = vpop.f32.mrb[0].mxu0
        %2498 = vdwg.mxu0
        %v2500 = vsel %vm2359, %v2354, 0
        %v2503 = vsel %vm2363, %v2358, 0
        %2505 = vmatprep.subr.bf16.mxu0 0
        %2506 = vmatpush1.bf16.msra.mxu0 %v2503
        %2507 = vmatprep.subr.bf16.mxu0 0
        %2508 = vmatpush1.bf16.msra.mxu0 0
        %2509 = vmatprep.subr.bf16.mxu0 0
        %2510 = vmatpush1.bf16.msra.mxu0 0
        %2511 = vmatprep.subr.bf16.mxu0 0
        %2512 = vmatpush1.bf16.msra.mxu0 0
        %2513 = vmatprep.subr.bf16.mxu0 0
        %2514 = vmatpush1.bf16.msra.mxu0 0
        %2515 = vmatprep.subr.bf16.mxu0 0
        %2516 = vmatpush1.bf16.msra.mxu0 0
        %2517 = vmatprep.subr.bf16.mxu0 0
        %2518 = vmatpush1.bf16.msra.mxu0 0
        %2519 = vmatprep.subr.bf16.mxu0 0
        %2520 = vmatpush1.bf16.msra.mxu0 0
        %2521 = vmatprep.subr.bf16.mxu0 0
        %2522 = vmatpush1.bf16.msra.mxu0 0
        %2523 = vmatprep.subr.bf16.mxu0 0
        %2524 = vmatpush1.bf16.msra.mxu0 0
        %2525 = vmatprep.subr.bf16.mxu0 0
        %2526 = vmatpush1.bf16.msra.mxu0 0
        %2527 = vmatprep.subr.bf16.mxu0 0
        %2528 = vmatpush1.bf16.msra.mxu0 0
        %2529 = vmatprep.subr.bf16.mxu0 0
        %2530 = vmatpush1.bf16.msra.mxu0 0
        %2531 = vmatprep.subr.bf16.mxu0 0
        %2532 = vmatpush1.bf16.msra.mxu0 0
        %2533 = vmatprep.subr.bf16.mxu0 0
        %2534 = vmatpush1.bf16.msra.mxu0 0
        %2535 = vmatprep.subr.bf16.mxu0 0
        %2536 = vmatpush1.bf16.msra.mxu0 0
        %2537 = vmatprep.mubr.bf16.mxu0 0
        %2538 = vmatmul.mubr.bf16.gmra.mrb[0].mxu0 %v2500
        %v2539 = vpop.f32.mrb[0].mxu0
        %v2540 = vadd.f32 0.0, %v2539
        %v2541 = vpop.f32.mrb[0].mxu0
        %v2542 = vpop.f32.mrb[0].mxu0
        %v2543 = vpop.f32.mrb[0].mxu0
        %2544 = vdwg.mxu0
        %v2545 = vsel %vm503, %v2402, 0.0
        %v2546 = vsel %vm503, %v2448, 0.0
        %v2547 = vadd.f32 %v2545, %v2546
        %v2548 = vsel %vm503, %v2494, 0.0
        %v2549 = vadd.f32 %v2547, %v2548
        %v2550 = vsel %vm503, %v2540, 0.0
        %v2551 = vadd.f32 %v2549, %v2550
        %v2552 = vadd.f32 %v498, %v2551
        %v2553 = vld [vmem:[%s7] sm:$0x1]
        %v2554 = vmul.f32 %v2552, %v2552
        %v2555 = vsel %vm503, %v2554, 0.0
        %2556 = vadd.xlane.f32.xlu0 %v2555
        %v2557 = vpop.xlane.xlu0 %2556
        %v2558 = vmul.f32 %v2557, %v507
        %v2559 = vadd.f32 %v2558, 1e-06
        %v2560 = vrsqrt.pop %v2559
        %v2561 = vmul.f32 %v2552, %v2560
        %v2563 = vlaneseq
        %v2564 = vshrl.u32 %v2563, 7
        %v2565 = vsub.s32 0, %v2564
        %v2566 = vrot.slane %v2553, %v2565
        %v2568 = vmul.f32 %v2561, %v2566
        %v2569 = vpack.c.bf16 %v2568, %v2568
        %v2570 = vld [vmem:[%s12] sm:$0xf]
        %v2571 = vld [vmem:[%s12 + $0x4] sm:$0xf]
        %v2572 = vld [vmem:[%s12 + $0x8] sm:$0xf]
        %v2573 = vld [vmem:[%s12 + $0xc] sm:$0xf]
        %v2578 = vunpack.c.l.b16 %v2570
        %v2579 = vunpack.c.l.b16 %v2571
        %v2580 = vunpack.c.l.b16 %v2572
        %v2581 = vunpack.c.l.b16 %v2573
        %v2582 = vpack.c.b16 %v2579, %v2578
        %v2583 = vpack.c.b16 %v2581, %v2580
        %v2587 = vsel %vm503, %v2569, 0
        %2589 = vmatprep.subr.bf16.mxu0 0
        %2590 = vmatpush1.bf16.msra.mxu0 %v2582
        %2591 = vmatprep.subr.bf16.mxu0 0
        %2592 = vmatpush1.bf16.msra.mxu0 %v2583
        %2593 = vmatprep.subr.bf16.mxu0 0
        %2594 = vmatpush1.bf16.msra.mxu0 0
        %2595 = vmatprep.subr.bf16.mxu0 0
        %2596 = vmatpush1.bf16.msra.mxu0 0
        %2597 = vmatprep.subr.bf16.mxu0 0
        %2598 = vmatpush1.bf16.msra.mxu0 0
        %2599 = vmatprep.subr.bf16.mxu0 0
        %2600 = vmatpush1.bf16.msra.mxu0 0
        %2601 = vmatprep.subr.bf16.mxu0 0
        %2602 = vmatpush1.bf16.msra.mxu0 0
        %2603 = vmatprep.subr.bf16.mxu0 0
        %2604 = vmatpush1.bf16.msra.mxu0 0
        %2605 = vmatprep.subr.bf16.mxu0 0
        %2606 = vmatpush1.bf16.msra.mxu0 0
        %2607 = vmatprep.subr.bf16.mxu0 0
        %2608 = vmatpush1.bf16.msra.mxu0 0
        %2609 = vmatprep.subr.bf16.mxu0 0
        %2610 = vmatpush1.bf16.msra.mxu0 0
        %2611 = vmatprep.subr.bf16.mxu0 0
        %2612 = vmatpush1.bf16.msra.mxu0 0
        %2613 = vmatprep.subr.bf16.mxu0 0
        %2614 = vmatpush1.bf16.msra.mxu0 0
        %2615 = vmatprep.subr.bf16.mxu0 0
        %2616 = vmatpush1.bf16.msra.mxu0 0
        %2617 = vmatprep.subr.bf16.mxu0 0
        %2618 = vmatpush1.bf16.msra.mxu0 0
        %2619 = vmatprep.subr.bf16.mxu0 0
        %2620 = vmatpush1.bf16.msra.mxu0 0
        %2621 = vmatprep.mubr.bf16.mxu0 0
        %2622 = vmatmul.mubr.bf16.gmra.mrb[0].mxu0 %v2587
        %v2623 = vpop.f32.mrb[0].mxu0
        %v2624 = vadd.f32 0.0, %v2623
        %v2625 = vpop.f32.mrb[0].mxu0
        %v2626 = vpop.f32.mrb[0].mxu0
        %v2627 = vpop.f32.mrb[0].mxu0
        %2628 = vdwg.mxu0
        %v2629 = vxor.u32 %v2624, 2147483648
        %v2630 = vmul.f32 %v2629, 1.442695
        %v2631 = vpow.pop %v2630
        %v2632 = vadd.f32 %v2631, 1.0
        %v2633 = vrcp.pop %v2632
        %v2634 = vmul.f32 1.0, %v2633
        %v2635 = vmul.f32 %v2624, %v2634
        %2637 = vrot.lane.b32.xlu0 %v2624, 64
        %v2638 = vpop.permute.xlu0 %2637
        %v2640 = vmul.f32 %v2635, %v2638
        %v2641 = vpack.c.bf16 %v2640, %v2640
        %v2642 = vld [vmem:[%s13] sm:$0xf]
        %v2643 = vld [vmem:[%s13 + $0x4] sm:$0xf]
        %v2644 = vld [vmem:[%s13 + $0x8] sm:$0xf]
        %v2645 = vld [vmem:[%s13 + $0xc] sm:$0xf]
        %v2646 = vld [vmem:[%s13 + $0x10] sm:$0xf]
        %v2647 = vld [vmem:[%s13 + $0x14] sm:$0xf]
        %v2648 = vld [vmem:[%s13 + $0x18] sm:$0xf]
        %v2649 = vld [vmem:[%s13 + $0x1c] sm:$0xf]
        %v2658 = vunpack.c.l.b16 %v2642
        %v2659 = vunpack.c.l.b16 %v2643
        %v2660 = vunpack.c.l.b16 %v2644
        %v2661 = vunpack.c.l.b16 %v2645
        %v2662 = vunpack.c.l.b16 %v2646
        %v2663 = vunpack.c.l.b16 %v2647
        %v2664 = vunpack.c.l.b16 %v2648
        %v2665 = vunpack.c.l.b16 %v2649
        %v2666 = vpack.c.b16 %v2659, %v2658
        %v2667 = vpack.c.b16 %v2661, %v2660
        %v2668 = vpack.c.b16 %v2663, %v2662
        %v2669 = vpack.c.b16 %v2665, %v2664
        %vm2674 = vcmask 523264
        %v2676 = vsel %vm2674, %v2641, 0
        %2678 = vmatprep.subr.bf16.mxu0 0
        %2679 = vmatpush1.bf16.msra.mxu0 %v2666
        %2680 = vmatprep.subr.bf16.mxu0 0
        %2681 = vmatpush1.bf16.msra.mxu0 %v2667
        %2682 = vmatprep.subr.bf16.mxu0 0
        %2683 = vmatpush1.bf16.msra.mxu0 %v2668
        %2684 = vmatprep.subr.bf16.mxu0 0
        %2685 = vmatpush1.bf16.msra.mxu0 %v2669
        %2686 = vmatprep.subr.bf16.mxu0 0
        %2687 = vmatpush1.bf16.msra.mxu0 0
        %2688 = vmatprep.subr.bf16.mxu0 0
        %2689 = vmatpush1.bf16.msra.mxu0 0
        %2690 = vmatprep.subr.bf16.mxu0 0
        %2691 = vmatpush1.bf16.msra.mxu0 0
        %2692 = vmatprep.subr.bf16.mxu0 0
        %2693 = vmatpush1.bf16.msra.mxu0 0
        %2694 = vmatprep.subr.bf16.mxu0 0
        %2695 = vmatpush1.bf16.msra.mxu0 0
        %2696 = vmatprep.subr.bf16.mxu0 0
        %2697 = vmatpush1.bf16.msra.mxu0 0
        %2698 = vmatprep.subr.bf16.mxu0 0
        %2699 = vmatpush1.bf16.msra.mxu0 0
        %2700 = vmatprep.subr.bf16.mxu0 0
        %2701 = vmatpush1.bf16.msra.mxu0 0
        %2702 = vmatprep.subr.bf16.mxu0 0
        %2703 = vmatpush1.bf16.msra.mxu0 0
        %2704 = vmatprep.subr.bf16.mxu0 0
        %2705 = vmatpush1.bf16.msra.mxu0 0
        %2706 = vmatprep.subr.bf16.mxu0 0
        %2707 = vmatpush1.bf16.msra.mxu0 0
        %2708 = vmatprep.subr.bf16.mxu0 0
        %2709 = vmatpush1.bf16.msra.mxu0 0
        %2710 = vmatprep.mubr.bf16.mxu0 0
        %2711 = vmatmul.mubr.bf16.gmra.mrb[0].mxu0 %v2676
        %v2712 = vpop.f32.mrb[0].mxu0
        %v2713 = vadd.f32 0.0, %v2712
        %v2714 = vpop.f32.mrb[0].mxu0
        %v2715 = vpop.f32.mrb[0].mxu0
        %v2716 = vpop.f32.mrb[0].mxu0
        %2717 = vdwg.mxu0
        %v2718 = vadd.f32 %v2552, %v2713
        %2719 = vst.msk [vmem:[%s484] sm:$0xff] %vm503, %v2718
        %s2720 = sand.u32 %s345, 1
        %s2721 = scalar_lea.sflag [#allocation3], %s2720
        %s2722 = sand.u32 %s345, 1
        %s2723 = smul.addr %s2722, 8
        %s2724 = scalar_lea.vmem [#allocation2], %s2723
        // Predicated region
        $region77: #{tpu_custom_call.1} parent=75 // pred_check
          %p2725 = pneg %p355
        $region78: #{tpu_custom_call.1} parent=75 // pred_check_branch
          %2727 = sbr.rel (%p2725) target = $region80
        $region79: #{tpu_custom_call.1} parent=75 // pred_region
          %s2729 = ssub.s32 128, 128
          %2730 = vsyncadd %s2721, %s2729
          %s2731 = smul.addr %s28, 128
          %s2732 = scalar_lea.hbm %s14, %s2731
          %s2734 = sshll.u32 %s2724, 4
          %s2735 = int_to_ptr.vmem [resolvable:$true] %s2734
          %2737 = dma.vmem_to_hbm [thread:$0]  %s2735, 128, %s2732, %s2721
        $region80: #{tpu_custom_call.1} parent=75 // pred_fallthru
          _
      $region76: #{tpu_custom_call.1} parent=5 // pred_fallthru
        _
      %p2738 = scmp.le.s32.totalorder 2, %s23
      // Predicated region
      $region81: #{tpu_custom_call.1} parent=5 // pred_check
        %p2739 = pneg %p2738
      $region82: #{tpu_custom_call.1} parent=5 // pred_check_branch
        %2741 = sbr.rel (%p2739) target = $region84
      $region83: #{tpu_custom_call.1} parent=5 // pred_region
        %s2742 = ssub.s32 %s23, 2
        // Predicated region
        $region85: #{tpu_custom_call.1} parent=83 // pred_check
          %p2743 = pneg %p361
        $region86: #{tpu_custom_call.1} parent=83 // pred_check_branch
          %2745 = sbr.rel (%p2743) target = $region88
        $region87: #{tpu_custom_call.1} parent=83 // pred_region
          %s2746 = sand.u32 %s346, 1
          %s2747 = scalar_lea.sflag [#allocation3], %s2746
          %s2748 = sand.u32 %s346, 1
          %s2749 = smul.addr %s2748, 8
          %s2750 = scalar_lea.vmem [#allocation2], %s2749
          %2751 = dma.done %s2747, 128
        $region88: #{tpu_custom_call.1} parent=83 // pred_fallthru
          _
      $region84: #{tpu_custom_call.1} parent=5 // pred_fallthru
        _
    $region6: #{tpu_custom_call.1} parent=1 // loop_footer
      %s27 = sadd.s32 1, %s23
    $region7: #{tpu_custom_call.1} parent=1 // loop_footer_branch
      %22 = sbr.rel target = $region3
    $region8: #{tpu_custom_call.1} parent=1 // loop_exit
      _
    %2752 = vsyncpa [#allocation3], 1
    %s2753 = scalar_lea.sflag [#allocation3], 1
    %2754 = vsyncpa %s2753, 1

</llo_original>
